<compile_context>
chip_gen: v5e
topology: v5e:2x2
jax: 0.10.0
libtpu: 0.0.40
codegen_flags: <defaults>
</compile_context>

<pallas_src>
import functools

import jax
import jax.numpy as jnp
from jax import lax
from jax.experimental import pallas as pl
from jax.experimental.pallas import tpu as pltpu

EPS = 1e-5    # nn.BatchNorm2d default eps
LANE = 128    # TPU lane width


def _round_up(n, m):
    return ((n + m - 1) // m) * m


def _silu(z):
    # SiLU(z) = z * sigmoid(z); sigmoid via tanh keeps the transcendental on the
    # EUP and avoids a VALU divide.  Exact to ~1 ulp in f32.
    return z * (0.5 * (jnp.tanh(0.5 * z) + 1.0))


def _conv3x3_mxu(src, w_ref, H, W):
    """3x3 'same' conv as nine MXU matmuls.

    src(dy, dx) -> (H, W, Cin) f32 window for tap (dy, dx) of the padded input.
    w_ref: (3, 3, Cin, Cout) ref.  Returns (H*W, Cout) f32.
    """
    acc = None
    for dy in range(3):
        for dx in range(3):
            patch = src(dy, dx).reshape(H * W, -1)                 # (H*W, Cin)
            t = jnp.dot(patch, w_ref[dy, dx],                      # (Cin, Cout)
                        preferred_element_type=jnp.float32)
            acc = t if acc is None else acc + t
    return acc


# --------------------------- kernels ---------------------------------------


def _conv_stats_kernel(xpad_ref, w_ref, y_ref, stats_ref):
    # xpad_ref : (1, H+2, W+2, Cin_p)  spatially pre-padded, channel-padded tile
    # w_ref    : (3, 3, Cin_p, Cout_p)
    # y_ref    : (1, H, W, Cout_p)     raw conv output (pre-BN)
    # stats_ref: (1, 2, Cout_p)        per-tile [sum, sum_of_squares] over (H, W)
    _, Hp, Wp, _ = xpad_ref.shape
    H, W = Hp - 2, Wp - 2
    Cout = w_ref.shape[-1]

    acc = _conv3x3_mxu(lambda dy, dx: xpad_ref[0, dy:dy + H, dx:dx + W, :],
                       w_ref, H, W)

    y_ref[0] = acc.reshape(H, W, Cout)
    stats_ref[0, 0:1, :] = jnp.sum(acc, axis=0, keepdims=True)
    stats_ref[0, 1:2, :] = jnp.sum(acc * acc, axis=0, keepdims=True)


def _bn_silu_conv_stats_kernel(y1_ref, scale_ref, bias_ref, w_ref,
                               y2_ref, stats_ref, zpad_ref):
    # y1_ref   : (1, H, W, C1)   raw cv1 output
    # scale_ref, bias_ref: (1, C1)  folded BN1 scale / bias
    # w_ref    : (3, 3, C1, C2)
    # y2_ref   : (1, H, W, C2)   raw cv2 output (pre-BN)
    # stats_ref: (1, 2, C2)
    # zpad_ref : VMEM scratch (H+2, W+2, C1) halo buffer for SiLU(BN1(y1))
    _, H, W, C1 = y1_ref.shape
    C2 = w_ref.shape[-1]

    z = _silu(y1_ref[0] * scale_ref[...] + bias_ref[...])          # (H, W, C1)

    # Zero only the 1-pixel halo border; write the interior exactly once.
    zpad_ref[0:1, :, :] = jnp.zeros((1, W + 2, C1), jnp.float32)
    zpad_ref[H + 1:H + 2, :, :] = jnp.zeros((1, W + 2, C1), jnp.float32)
    zpad_ref[1:H + 1, 0:1, :] = jnp.zeros((H, 1, C1), jnp.float32)
    zpad_ref[1:H + 1, W + 1:W + 2, :] = jnp.zeros((H, 1, C1), jnp.float32)
    zpad_ref[1:H + 1, 1:W + 1, :] = z

    acc = _conv3x3_mxu(lambda dy, dx: zpad_ref[dy:dy + H, dx:dx + W, :],
                       w_ref, H, W)

    y2_ref[0] = acc.reshape(H, W, C2)
    stats_ref[0, 0:1, :] = jnp.sum(acc, axis=0, keepdims=True)
    stats_ref[0, 1:2, :] = jnp.sum(acc * acc, axis=0, keepdims=True)


def _residual_bn_silu_kernel(x_ref, y2_ref, scale_ref, bias_ref, out_ref):
    z = _silu(y2_ref[0] * scale_ref[...] + bias_ref[...])
    out_ref[0] = x_ref[0] + z


def _bn_silu_kernel(y2_ref, scale_ref, bias_ref, out_ref):
    out_ref[0] = _silu(y2_ref[0] * scale_ref[...] + bias_ref[...])


# --------------------------- wrapper ----------------------------------------


def _fold_bn(stats, gamma, beta, n):
    """Reduce per-tile [sum, sumsq] partials and fold BN into scale/bias.

    Training-mode batch stats, biased variance:
      scale = gamma * rsqrt(var + eps);  bias = beta - mean * scale
    """
    s = jnp.sum(stats, axis=0)                          # (2, C)
    mean = s[0] / n
    var = jnp.maximum(s[1] / n - mean * mean, 0.0)
    scale = gamma * lax.rsqrt(var + EPS)
    bias = beta - mean * scale
    return scale.reshape(1, -1), bias.reshape(1, -1)


@functools.partial(jax.jit, static_argnames=("shortcut",))
def bottleneck_pallas(x, w1, g1, b1, w2, g2, b2, shortcut=True):
    """Bottleneck forward.

    x: (B, H, W, Cin) f32 NHWC.  w1: (3,3,Cin,c_), w2: (3,3,c_,Cout) HWIO.
    g*/b*: per-channel BatchNorm weight / bias vectors.
    """
    B, H, W, Cin = x.shape
    c_ = w1.shape[-1]
    Cout = w2.shape[-1]
    add = bool(shortcut) and (Cin == Cout)

    # ---- pad channels to lane width (no-op at realistic YOLO channel counts) ----
    Cp, C1p, C2p = (_round_up(c, LANE) for c in (Cin, c_, Cout))
    x_cp = jnp.pad(x.astype(jnp.float32), ((0, 0),) * 3 + ((0, Cp - Cin),))
    x_sp = jnp.pad(x_cp, ((0, 0), (1, 1), (1, 1), (0, 0)))       # spatial halo, done once
    w1p = jnp.pad(w1.astype(jnp.float32),
                  ((0, 0), (0, 0), (0, Cp - Cin), (0, C1p - c_)))
    w2p = jnp.pad(w2.astype(jnp.float32),
                  ((0, 0), (0, 0), (0, C1p - c_), (0, C2p - Cout)))
    g1p = jnp.pad(g1.reshape(-1).astype(jnp.float32), (0, C1p - c_))
    b1p = jnp.pad(b1.reshape(-1).astype(jnp.float32), (0, C1p - c_))
    g2p = jnp.pad(g2.reshape(-1).astype(jnp.float32), (0, C2p - Cout))
    b2p = jnp.pad(b2.reshape(-1).astype(jnp.float32), (0, C2p - Cout))

    n = B * H * W
    parallel = pltpu.CompilerParams(dimension_semantics=("parallel",))

    def img_spec(h, w, c):
        return pl.BlockSpec((1, h, w, c), lambda bb: (bb, 0, 0, 0))

    def full_spec(shape):
        return pl.BlockSpec(shape, lambda bb: (0,) * len(shape))

    def stats_spec(c):
        return pl.BlockSpec((1, 2, c), lambda bb: (bb, 0, 0))

    def vec_spec(c):
        return pl.BlockSpec((1, c), lambda bb: (0, 0))

    # ---- cv1: conv3x3 on the MXU + fused per-tile BN partial sums ----
    cost1 = pl.CostEstimate(
        flops=2 * n * 9 * Cp * C1p, transcendentals=0,
        bytes_accessed=4 * (x_sp.size + w1p.size + n * C1p + B * 2 * C1p))
    y1, st1 = pl.pallas_call(
        _conv_stats_kernel,
        grid=(B,),
        in_specs=[img_spec(H + 2, W + 2, Cp), full_spec((3, 3, Cp, C1p))],
        out_specs=(img_spec(H, W, C1p), stats_spec(C1p)),
        out_shape=(jax.ShapeDtypeStruct((B, H, W, C1p), jnp.float32),
                   jax.ShapeDtypeStruct((B, 2, C1p), jnp.float32)),
        compiler_params=parallel,
        cost_estimate=cost1,
    )(x_sp, w1p)
    scale1, bias1 = _fold_bn(st1, g1p, b1p, n)

    # ---- cv2: BN1+SiLU fused with conv3x3 + fused BN2 partial sums ----
    cost2 = pl.CostEstimate(
        flops=2 * n * 9 * C1p * C2p, transcendentals=n * C1p,
        bytes_accessed=4 * (n * C1p + w2p.size + n * C2p + B * 2 * C2p))
    y2, st2 = pl.pallas_call(
        _bn_silu_conv_stats_kernel,
        grid=(B,),
        in_specs=[img_spec(H, W, C1p), vec_spec(C1p), vec_spec(C1p),
                  full_spec((3, 3, C1p, C2p))],
        out_specs=(img_spec(H, W, C2p), stats_spec(C2p)),
        out_shape=(jax.ShapeDtypeStruct((B, H, W, C2p), jnp.float32),
                   jax.ShapeDtypeStruct((B, 2, C2p), jnp.float32)),
        scratch_shapes=[pltpu.VMEM((H + 2, W + 2, C1p), jnp.float32)],
        compiler_params=parallel,
        cost_estimate=cost2,
    )(y1, scale1, bias1, w2p)
    scale2, bias2 = _fold_bn(st2, g2p, b2p, n)

    # ---- BN2 + SiLU (+ residual) ----
    cost3 = pl.CostEstimate(
        flops=4 * n * C2p, transcendentals=n * C2p,
        bytes_accessed=4 * n * C2p * (3 if add else 2))
    if add:
        out = pl.pallas_call(
            _residual_bn_silu_kernel,
            grid=(B,),
            in_specs=[img_spec(H, W, Cp), img_spec(H, W, C2p),
                      vec_spec(C2p), vec_spec(C2p)],
            out_specs=img_spec(H, W, C2p),
            out_shape=jax.ShapeDtypeStruct((B, H, W, C2p), jnp.float32),
            compiler_params=parallel,
            cost_estimate=cost3,
        )(x_cp, y2, scale2, bias2)
    else:
        out = pl.pallas_call(
            _bn_silu_kernel,
            grid=(B,),
            in_specs=[img_spec(H, W, C2p), vec_spec(C2p), vec_spec(C2p)],
            out_specs=img_spec(H, W, C2p),
            out_shape=jax.ShapeDtypeStruct((B, H, W, C2p), jnp.float32),
            compiler_params=parallel,
            cost_estimate=cost3,
        )(y2, scale2, bias2)

    return out[..., :Cout]


if __name__ == "__main__":
    key = jax.random.PRNGKey(0)
    B, C, H, W = 2, 4, 16, 16          # Cin == Cout -> shortcut add
    expand = 0.5
    c_ = int(C * expand)

    kx, k1, k2, kg1, kb1, kg2, kb2 = jax.random.split(key, 7)
    x = jax.random.normal(kx, (B, H, W, C), jnp.float32)              # NHWC input
    w1 = 0.3 * jax.random.normal(k1, (3, 3, C, c_), jnp.float32)      # HWIO
    w2 = 0.3 * jax.random.normal(k2, (3, 3, c_, C), jnp.float32)      # HWIO
    g1 = 1.0 + 0.1 * jax.random.normal(kg1, (c_,), jnp.float32)
    b1 = 0.1 * jax.random.normal(kb1, (c_,), jnp.float32)
    g2 = 1.0 + 0.1 * jax.random.normal(kg2, (C,), jnp.float32)
    b2 = 0.1 * jax.random.normal(kb2, (C,), jnp.float32)

    out = jax.block_until_ready(bottleneck_pallas(x, w1, g1, b1, w2, g2, b2))

    # --- pure-JAX reference for a correctness sanity check ---
    def conv_ref(xx, ww):
        return lax.conv_general_dilated(
            xx, ww, window_strides=(1, 1), padding="SAME",
            dimension_numbers=("NHWC", "HWIO", "NHWC"),
            precision=lax.Precision.HIGHEST)

    def bn_silu_ref(y, g, b):
        m = y.mean(axis=(0, 1, 2), keepdims=True)
        v = ((y - m) ** 2).mean(axis=(0, 1, 2), keepdims=True)
        z = (y - m) / jnp.sqrt(v + EPS) * g.reshape(1, 1, 1, -1) + b.reshape(1, 1, 1, -1)
        return z * jax.nn.sigmoid(z)

    ref = x + bn_silu_ref(conv_ref(bn_silu_ref(conv_ref(x, w1), g1, b1), w2), g2, b2)
    err = float(jnp.max(jnp.abs(out - ref)))
    assert jnp.allclose(out, ref, atol=1e-3, rtol=1e-3), f"max abs err {err}"

    # TODO(synk): BatchNorm running_mean/running_var momentum updates are training-side
    # state mutations with no effect on the forward output; not modeled in the kernels.
    print("KERNEL_OK")
</pallas_src>

<mosaic_0001>
module attributes {stable_mosaic.version = 11 : i64} {
  func.func @_conv_stats_kernel(%arg0: i32, %arg1: memref<1x18x18x128xf32, #tpu.memory_space<vmem>>, %arg2: memref<3x3x128x128xf32, #tpu.memory_space<vmem>>, %arg3: memref<1x16x16x128xf32, #tpu.memory_space<vmem>>, %arg4: memref<1x2x128xf32, #tpu.memory_space<vmem>>) attributes {dimension_semantics = [#tpu.dimension_semantics<parallel>], iteration_bounds = array<i64: 2>, scalar_prefetch = 0 : i64, scratch_operands = 0 : i64, tpu.core_type = #tpu.core_type<tc>, window_params = [{transform_indices = @transform_0, window_bounds = array<i64: 1, 18, 18, 128>}, {pipeline_mode = #tpu.pipeline_mode<synchronous>, transform_indices = @transform_1, window_bounds = array<i64: 3, 3, 128, 128>}, {transform_indices = @transform_2, window_bounds = array<i64: 1, 16, 16, 128>}, {transform_indices = @transform_3, window_bounds = array<i64: 1, 2, 128>}]} {
    %c0 = arith.constant 0 : index
    %c0_0 = arith.constant 0 : index
    %c0_1 = arith.constant 0 : index
    %c0_2 = arith.constant 0 : index
    %0 = vector.load %arg1[%c0, %c0_0, %c0_1, %c0_2] : memref<1x18x18x128xf32, #tpu.memory_space<vmem>>, vector<1x16x16x128xf32>
    %1 = vector.shape_cast %0 : vector<1x16x16x128xf32> to vector<16x16x128xf32>
    %2 = vector.shape_cast %1 : vector<16x16x128xf32> to vector<256x128xf32>
    %c0_3 = arith.constant 0 : index
    %c0_4 = arith.constant 0 : index
    %c0_5 = arith.constant 0 : index
    %c0_6 = arith.constant 0 : index
    %3 = vector.load %arg2[%c0_3, %c0_4, %c0_5, %c0_6] : memref<3x3x128x128xf32, #tpu.memory_space<vmem>>, vector<1x1x128x128xf32>
    %4 = vector.shape_cast %3 : vector<1x1x128x128xf32> to vector<128x128xf32>
    %cst = arith.constant dense<0.000000e+00> : vector<256x128xf32>
    %5 = tpu.matmul %2, %4, %cst {dimension_numbers = #tpu.dot_dimension_numbers<[1], [0], [0], [1], [0, 0, 1, 1], [], []>} : vector<256x128xf32>, vector<128x128xf32>, vector<256x128xf32> -> vector<256x128xf32>
    %c0_7 = arith.constant 0 : index
    %c0_8 = arith.constant 0 : index
    %c1 = arith.constant 1 : index
    %c0_9 = arith.constant 0 : index
    %6 = vector.load %arg1[%c0_7, %c0_8, %c1, %c0_9] : memref<1x18x18x128xf32, #tpu.memory_space<vmem>>, vector<1x16x16x128xf32>
    %7 = vector.shape_cast %6 : vector<1x16x16x128xf32> to vector<16x16x128xf32>
    %8 = vector.shape_cast %7 : vector<16x16x128xf32> to vector<256x128xf32>
    %c0_10 = arith.constant 0 : index
    %c1_11 = arith.constant 1 : index
    %c0_12 = arith.constant 0 : index
    %c0_13 = arith.constant 0 : index
    %9 = vector.load %arg2[%c0_10, %c1_11, %c0_12, %c0_13] : memref<3x3x128x128xf32, #tpu.memory_space<vmem>>, vector<1x1x128x128xf32>
    %10 = vector.shape_cast %9 : vector<1x1x128x128xf32> to vector<128x128xf32>
    %cst_14 = arith.constant dense<0.000000e+00> : vector<256x128xf32>
    %11 = tpu.matmul %8, %10, %cst_14 {dimension_numbers = #tpu.dot_dimension_numbers<[1], [0], [0], [1], [0, 0, 1, 1], [], []>} : vector<256x128xf32>, vector<128x128xf32>, vector<256x128xf32> -> vector<256x128xf32>
    %12 = arith.addf %5, %11 : vector<256x128xf32>
    %c0_15 = arith.constant 0 : index
    %c0_16 = arith.constant 0 : index
    %c2 = arith.constant 2 : index
    %c0_17 = arith.constant 0 : index
    %13 = vector.load %arg1[%c0_15, %c0_16, %c2, %c0_17] : memref<1x18x18x128xf32, #tpu.memory_space<vmem>>, vector<1x16x16x128xf32>
    %14 = vector.shape_cast %13 : vector<1x16x16x128xf32> to vector<16x16x128xf32>
    %15 = vector.shape_cast %14 : vector<16x16x128xf32> to vector<256x128xf32>
    %c0_18 = arith.constant 0 : index
    %c2_19 = arith.constant 2 : index
    %c0_20 = arith.constant 0 : index
    %c0_21 = arith.constant 0 : index
    %16 = vector.load %arg2[%c0_18, %c2_19, %c0_20, %c0_21] : memref<3x3x128x128xf32, #tpu.memory_space<vmem>>, vector<1x1x128x128xf32>
    %17 = vector.shape_cast %16 : vector<1x1x128x128xf32> to vector<128x128xf32>
    %cst_22 = arith.constant dense<0.000000e+00> : vector<256x128xf32>
    %18 = tpu.matmul %15, %17, %cst_22 {dimension_numbers = #tpu.dot_dimension_numbers<[1], [0], [0], [1], [0, 0, 1, 1], [], []>} : vector<256x128xf32>, vector<128x128xf32>, vector<256x128xf32> -> vector<256x128xf32>
    %19 = arith.addf %12, %18 : vector<256x128xf32>
    %c0_23 = arith.constant 0 : index
    %c1_24 = arith.constant 1 : index
    %c0_25 = arith.constant 0 : index
    %c0_26 = arith.constant 0 : index
    %20 = vector.load %arg1[%c0_23, %c1_24, %c0_25, %c0_26] : memref<1x18x18x128xf32, #tpu.memory_space<vmem>>, vector<1x16x16x128xf32>
    %21 = vector.shape_cast %20 : vector<1x16x16x128xf32> to vector<16x16x128xf32>
    %22 = vector.shape_cast %21 : vector<16x16x128xf32> to vector<256x128xf32>
    %c1_27 = arith.constant 1 : index
    %c0_28 = arith.constant 0 : index
    %c0_29 = arith.constant 0 : index
    %c0_30 = arith.constant 0 : index
    %23 = vector.load %arg2[%c1_27, %c0_28, %c0_29, %c0_30] : memref<3x3x128x128xf32, #tpu.memory_space<vmem>>, vector<1x1x128x128xf32>
    %24 = vector.shape_cast %23 : vector<1x1x128x128xf32> to vector<128x128xf32>
    %cst_31 = arith.constant dense<0.000000e+00> : vector<256x128xf32>
    %25 = tpu.matmul %22, %24, %cst_31 {dimension_numbers = #tpu.dot_dimension_numbers<[1], [0], [0], [1], [0, 0, 1, 1], [], []>} : vector<256x128xf32>, vector<128x128xf32>, vector<256x128xf32> -> vector<256x128xf32>
    %26 = arith.addf %19, %25 : vector<256x128xf32>
    %c0_32 = arith.constant 0 : index
    %c1_33 = arith.constant 1 : index
    %c1_34 = arith.constant 1 : index
    %c0_35 = arith.constant 0 : index
    %27 = vector.load %arg1[%c0_32, %c1_33, %c1_34, %c0_35] : memref<1x18x18x128xf32, #tpu.memory_space<vmem>>, vector<1x16x16x128xf32>
    %28 = vector.shape_cast %27 : vector<1x16x16x128xf32> to vector<16x16x128xf32>
    %29 = vector.shape_cast %28 : vector<16x16x128xf32> to vector<256x128xf32>
    %c1_36 = arith.constant 1 : index
    %c1_37 = arith.constant 1 : index
    %c0_38 = arith.constant 0 : index
    %c0_39 = arith.constant 0 : index
    %30 = vector.load %arg2[%c1_36, %c1_37, %c0_38, %c0_39] : memref<3x3x128x128xf32, #tpu.memory_space<vmem>>, vector<1x1x128x128xf32>
    %31 = vector.shape_cast %30 : vector<1x1x128x128xf32> to vector<128x128xf32>
    %cst_40 = arith.constant dense<0.000000e+00> : vector<256x128xf32>
    %32 = tpu.matmul %29, %31, %cst_40 {dimension_numbers = #tpu.dot_dimension_numbers<[1], [0], [0], [1], [0, 0, 1, 1], [], []>} : vector<256x128xf32>, vector<128x128xf32>, vector<256x128xf32> -> vector<256x128xf32>
    %33 = arith.addf %26, %32 : vector<256x128xf32>
    %c0_41 = arith.constant 0 : index
    %c1_42 = arith.constant 1 : index
    %c2_43 = arith.constant 2 : index
    %c0_44 = arith.constant 0 : index
    %34 = vector.load %arg1[%c0_41, %c1_42, %c2_43, %c0_44] : memref<1x18x18x128xf32, #tpu.memory_space<vmem>>, vector<1x16x16x128xf32>
    %35 = vector.shape_cast %34 : vector<1x16x16x128xf32> to vector<16x16x128xf32>
    %36 = vector.shape_cast %35 : vector<16x16x128xf32> to vector<256x128xf32>
    %c1_45 = arith.constant 1 : index
    %c2_46 = arith.constant 2 : index
    %c0_47 = arith.constant 0 : index
    %c0_48 = arith.constant 0 : index
    %37 = vector.load %arg2[%c1_45, %c2_46, %c0_47, %c0_48] : memref<3x3x128x128xf32, #tpu.memory_space<vmem>>, vector<1x1x128x128xf32>
    %38 = vector.shape_cast %37 : vector<1x1x128x128xf32> to vector<128x128xf32>
    %cst_49 = arith.constant dense<0.000000e+00> : vector<256x128xf32>
    %39 = tpu.matmul %36, %38, %cst_49 {dimension_numbers = #tpu.dot_dimension_numbers<[1], [0], [0], [1], [0, 0, 1, 1], [], []>} : vector<256x128xf32>, vector<128x128xf32>, vector<256x128xf32> -> vector<256x128xf32>
    %40 = arith.addf %33, %39 : vector<256x128xf32>
    %c0_50 = arith.constant 0 : index
    %c2_51 = arith.constant 2 : index
    %c0_52 = arith.constant 0 : index
    %c0_53 = arith.constant 0 : index
    %41 = vector.load %arg1[%c0_50, %c2_51, %c0_52, %c0_53] : memref<1x18x18x128xf32, #tpu.memory_space<vmem>>, vector<1x16x16x128xf32>
    %42 = vector.shape_cast %41 : vector<1x16x16x128xf32> to vector<16x16x128xf32>
    %43 = vector.shape_cast %42 : vector<16x16x128xf32> to vector<256x128xf32>
    %c2_54 = arith.constant 2 : index
    %c0_55 = arith.constant 0 : index
    %c0_56 = arith.constant 0 : index
    %c0_57 = arith.constant 0 : index
    %44 = vector.load %arg2[%c2_54, %c0_55, %c0_56, %c0_57] : memref<3x3x128x128xf32, #tpu.memory_space<vmem>>, vector<1x1x128x128xf32>
    %45 = vector.shape_cast %44 : vector<1x1x128x128xf32> to vector<128x128xf32>
    %cst_58 = arith.constant dense<0.000000e+00> : vector<256x128xf32>
    %46 = tpu.matmul %43, %45, %cst_58 {dimension_numbers = #tpu.dot_dimension_numbers<[1], [0], [0], [1], [0, 0, 1, 1], [], []>} : vector<256x128xf32>, vector<128x128xf32>, vector<256x128xf32> -> vector<256x128xf32>
    %47 = arith.addf %40, %46 : vector<256x128xf32>
    %c0_59 = arith.constant 0 : index
    %c2_60 = arith.constant 2 : index
    %c1_61 = arith.constant 1 : index
    %c0_62 = arith.constant 0 : index
    %48 = vector.load %arg1[%c0_59, %c2_60, %c1_61, %c0_62] : memref<1x18x18x128xf32, #tpu.memory_space<vmem>>, vector<1x16x16x128xf32>
    %49 = vector.shape_cast %48 : vector<1x16x16x128xf32> to vector<16x16x128xf32>
    %50 = vector.shape_cast %49 : vector<16x16x128xf32> to vector<256x128xf32>
    %c2_63 = arith.constant 2 : index
    %c1_64 = arith.constant 1 : index
    %c0_65 = arith.constant 0 : index
    %c0_66 = arith.constant 0 : index
    %51 = vector.load %arg2[%c2_63, %c1_64, %c0_65, %c0_66] : memref<3x3x128x128xf32, #tpu.memory_space<vmem>>, vector<1x1x128x128xf32>
    %52 = vector.shape_cast %51 : vector<1x1x128x128xf32> to vector<128x128xf32>
    %cst_67 = arith.constant dense<0.000000e+00> : vector<256x128xf32>
    %53 = tpu.matmul %50, %52, %cst_67 {dimension_numbers = #tpu.dot_dimension_numbers<[1], [0], [0], [1], [0, 0, 1, 1], [], []>} : vector<256x128xf32>, vector<128x128xf32>, vector<256x128xf32> -> vector<256x128xf32>
    %54 = arith.addf %47, %53 : vector<256x128xf32>
    %c0_68 = arith.constant 0 : index
    %c2_69 = arith.constant 2 : index
    %c2_70 = arith.constant 2 : index
    %c0_71 = arith.constant 0 : index
    %55 = vector.load %arg1[%c0_68, %c2_69, %c2_70, %c0_71] : memref<1x18x18x128xf32, #tpu.memory_space<vmem>>, vector<1x16x16x128xf32>
    %56 = vector.shape_cast %55 : vector<1x16x16x128xf32> to vector<16x16x128xf32>
    %57 = vector.shape_cast %56 : vector<16x16x128xf32> to vector<256x128xf32>
    %c2_72 = arith.constant 2 : index
    %c2_73 = arith.constant 2 : index
    %c0_74 = arith.constant 0 : index
    %c0_75 = arith.constant 0 : index
    %58 = vector.load %arg2[%c2_72, %c2_73, %c0_74, %c0_75] : memref<3x3x128x128xf32, #tpu.memory_space<vmem>>, vector<1x1x128x128xf32>
    %59 = vector.shape_cast %58 : vector<1x1x128x128xf32> to vector<128x128xf32>
    %cst_76 = arith.constant dense<0.000000e+00> : vector<256x128xf32>
    %60 = tpu.matmul %57, %59, %cst_76 {dimension_numbers = #tpu.dot_dimension_numbers<[1], [0], [0], [1], [0, 0, 1, 1], [], []>} : vector<256x128xf32>, vector<128x128xf32>, vector<256x128xf32> -> vector<256x128xf32>
    %61 = arith.addf %54, %60 : vector<256x128xf32>
    %62 = vector.shape_cast %61 : vector<256x128xf32> to vector<16x16x128xf32>
    %c0_77 = arith.constant 0 : index
    %c0_78 = arith.constant 0 : index
    %c0_79 = arith.constant 0 : index
    %c0_80 = arith.constant 0 : index
    %63 = vector.load %arg3[%c0_77, %c0_78, %c0_79, %c0_80] : memref<1x16x16x128xf32, #tpu.memory_space<vmem>>, vector<1x16x16x128xf32>
    %64 = vector.shape_cast %63 : vector<1x16x16x128xf32> to vector<16x16x128xf32>
    %65 = vector.shape_cast %62 : vector<16x16x128xf32> to vector<1x16x16x128xf32>
    tpu.vector_store %arg3[%c0_77, %c0_78, %c0_79, %c0_80], %65 {strides = array<i32>} : memref<1x16x16x128xf32, #tpu.memory_space<vmem>>, vector<1x16x16x128xf32>,
    %cst_81 = arith.constant dense<0.000000e+00> : vector<128xf32>
    %66 = vector.multi_reduction <add>, %61, %cst_81 [0] : vector<256x128xf32> to vector<128xf32>
    %67 = vector.shape_cast %66 : vector<128xf32> to vector<1x128xf32>
    %c0_82 = arith.constant 0 : index
    %c0_83 = arith.constant 0 : index
    %c0_84 = arith.constant 0 : index
    %68 = vector.load %arg4[%c0_82, %c0_83, %c0_84] : memref<1x2x128xf32, #tpu.memory_space<vmem>>, vector<1x1x128xf32>
    %69 = vector.shape_cast %68 : vector<1x1x128xf32> to vector<1x128xf32>
    %70 = vector.shape_cast %67 : vector<1x128xf32> to vector<1x1x128xf32>
    tpu.vector_store %arg4[%c0_82, %c0_83, %c0_84], %70 {strides = array<i32>} : memref<1x2x128xf32, #tpu.memory_space<vmem>>, vector<1x1x128xf32>,
    %71 = arith.mulf %61, %61 : vector<256x128xf32>
    %cst_85 = arith.constant dense<0.000000e+00> : vector<128xf32>
    %72 = vector.multi_reduction <add>, %71, %cst_85 [0] : vector<256x128xf32> to vector<128xf32>
    %73 = vector.shape_cast %72 : vector<128xf32> to vector<1x128xf32>
    %c0_86 = arith.constant 0 : index
    %c1_87 = arith.constant 1 : index
    %c0_88 = arith.constant 0 : index
    %74 = vector.load %arg4[%c0_86, %c1_87, %c0_88] : memref<1x2x128xf32, #tpu.memory_space<vmem>>, vector<1x1x128xf32>
    %75 = vector.shape_cast %74 : vector<1x1x128xf32> to vector<1x128xf32>
    %76 = vector.shape_cast %73 : vector<1x128xf32> to vector<1x1x128xf32>
    tpu.vector_store %arg4[%c0_86, %c1_87, %c0_88], %76 {strides = array<i32>} : memref<1x2x128xf32, #tpu.memory_space<vmem>>, vector<1x1x128xf32>,
    return
  }
  func.func @transform_0(%arg0: i32) -> (i32, i32, i32, i32) {
    %c0_i32 = arith.constant 0 : i32
    %c0_i32_0 = arith.constant 0 : i32
    %c0_i32_1 = arith.constant 0 : i32
    %c0_i32_2 = arith.constant 0 : i32
    return %arg0, %c0_i32, %c0_i32_0, %c0_i32_1 : i32, i32, i32, i32
  }
  func.func @transform_1(%arg0: i32) -> (i32, i32, i32, i32) {
    %c0_i32 = arith.constant 0 : i32
    %c0_i32_0 = arith.constant 0 : i32
    %c0_i32_1 = arith.constant 0 : i32
    %c0_i32_2 = arith.constant 0 : i32
    %c0_i32_3 = arith.constant 0 : i32
    return %c0_i32, %c0_i32_0, %c0_i32_1, %c0_i32_2 : i32, i32, i32, i32
  }
  func.func @transform_2(%arg0: i32) -> (i32, i32, i32, i32) {
    %c0_i32 = arith.constant 0 : i32
    %c0_i32_0 = arith.constant 0 : i32
    %c0_i32_1 = arith.constant 0 : i32
    %c0_i32_2 = arith.constant 0 : i32
    return %arg0, %c0_i32, %c0_i32_0, %c0_i32_1 : i32, i32, i32, i32
  }
  func.func @transform_3(%arg0: i32) -> (i32, i32, i32) {
    %c0_i32 = arith.constant 0 : i32
    %c0_i32_0 = arith.constant 0 : i32
    %c0_i32_1 = arith.constant 0 : i32
    return %arg0, %c0_i32, %c0_i32_0 : i32, i32, i32
  }
}

module attributes {stable_mosaic.version = 11 : i64} {
  func.func @_residual_bn_silu_kernel(%arg0: i32, %arg1: memref<1x16x16x128xf32, #tpu.memory_space<vmem>>, %arg2: memref<1x16x16x128xf32, #tpu.memory_space<vmem>>, %arg3: memref<1x128xf32, #tpu.memory_space<vmem>>, %arg4: memref<1x128xf32, #tpu.memory_space<vmem>>, %arg5: memref<1x16x16x128xf32, #tpu.memory_space<vmem>>) attributes {dimension_semantics = [#tpu.dimension_semantics<parallel>], iteration_bounds = array<i64: 2>, scalar_prefetch = 0 : i64, scratch_operands = 0 : i64, tpu.core_type = #tpu.core_type<tc>, window_params = [{transform_indices = @transform_0, window_bounds = array<i64: 1, 16, 16, 128>}, {transform_indices = @transform_1, window_bounds = array<i64: 1, 16, 16, 128>}, {pipeline_mode = #tpu.pipeline_mode<synchronous>, transform_indices = @transform_2, window_bounds = array<i64: 1, 128>}, {pipeline_mode = #tpu.pipeline_mode<synchronous>, transform_indices = @transform_3, window_bounds = array<i64: 1, 128>}, {transform_indices = @transform_4, window_bounds = array<i64: 1, 16, 16, 128>}]} {
    %c0 = arith.constant 0 : index
    %c0_0 = arith.constant 0 : index
    %c0_1 = arith.constant 0 : index
    %c0_2 = arith.constant 0 : index
    %0 = vector.load %arg2[%c0, %c0_0, %c0_1, %c0_2] : memref<1x16x16x128xf32, #tpu.memory_space<vmem>>, vector<1x16x16x128xf32>
    %1 = vector.shape_cast %0 : vector<1x16x16x128xf32> to vector<16x16x128xf32>
    %c0_3 = arith.constant 0 : index
    %c0_4 = arith.constant 0 : index
    %2 = vector.load %arg3[%c0_3, %c0_4] : memref<1x128xf32, #tpu.memory_space<vmem>>, vector<1x128xf32>
    %3 = vector.shape_cast %2 : vector<1x128xf32> to vector<1x1x128xf32>
    %4 = vector.broadcast %3 : vector<1x1x128xf32> to vector<16x16x128xf32>
    %5 = arith.mulf %1, %4 : vector<16x16x128xf32>
    %c0_5 = arith.constant 0 : index
    %c0_6 = arith.constant 0 : index
    %6 = vector.load %arg4[%c0_5, %c0_6] : memref<1x128xf32, #tpu.memory_space<vmem>>, vector<1x128xf32>
    %7 = vector.shape_cast %6 : vector<1x128xf32> to vector<1x1x128xf32>
    %8 = vector.broadcast %7 : vector<1x1x128xf32> to vector<16x16x128xf32>
    %9 = arith.addf %5, %8 : vector<16x16x128xf32>
    %cst = arith.constant 5.000000e-01 : f32
    %10 = vector.broadcast %cst : f32 to vector<16x16x128xf32>
    %11 = arith.mulf %10, %9 : vector<16x16x128xf32>
    %12 = math.tanh %11 : vector<16x16x128xf32>
    %cst_7 = arith.constant 1.000000e+00 : f32
    %13 = vector.broadcast %cst_7 : f32 to vector<16x16x128xf32>
    %14 = arith.addf %12, %13 : vector<16x16x128xf32>
    %cst_8 = arith.constant 5.000000e-01 : f32
    %15 = vector.broadcast %cst_8 : f32 to vector<16x16x128xf32>
    %16 = arith.mulf %15, %14 : vector<16x16x128xf32>
    %17 = arith.mulf %9, %16 : vector<16x16x128xf32>
    %c0_9 = arith.constant 0 : index
    %c0_10 = arith.constant 0 : index
    %c0_11 = arith.constant 0 : index
    %c0_12 = arith.constant 0 : index
    %18 = vector.load %arg1[%c0_9, %c0_10, %c0_11, %c0_12] : memref<1x16x16x128xf32, #tpu.memory_space<vmem>>, vector<1x16x16x128xf32>
    %19 = vector.shape_cast %18 : vector<1x16x16x128xf32> to vector<16x16x128xf32>
    %20 = arith.addf %19, %17 : vector<16x16x128xf32>
    %c0_13 = arith.constant 0 : index
    %c0_14 = arith.constant 0 : index
    %c0_15 = arith.constant 0 : index
    %c0_16 = arith.constant 0 : index
    %21 = vector.load %arg5[%c0_13, %c0_14, %c0_15, %c0_16] : memref<1x16x16x128xf32, #tpu.memory_space<vmem>>, vector<1x16x16x128xf32>
    %22 = vector.shape_cast %21 : vector<1x16x16x128xf32> to vector<16x16x128xf32>
    %23 = vector.shape_cast %20 : vector<16x16x128xf32> to vector<1x16x16x128xf32>
    tpu.vector_store %arg5[%c0_13, %c0_14, %c0_15, %c0_16], %23 {strides = array<i32>} : memref<1x16x16x128xf32, #tpu.memory_space<vmem>>, vector<1x16x16x128xf32>,
    return
  }
  func.func @transform_0(%arg0: i32) -> (i32, i32, i32, i32) {
    %c0_i32 = arith.constant 0 : i32
    %c0_i32_0 = arith.constant 0 : i32
    %c0_i32_1 = arith.constant 0 : i32
    %c0_i32_2 = arith.constant 0 : i32
    return %arg0, %c0_i32, %c0_i32_0, %c0_i32_1 : i32, i32, i32, i32
  }
  func.func @transform_1(%arg0: i32) -> (i32, i32, i32, i32) {
    %c0_i32 = arith.constant 0 : i32
    %c0_i32_0 = arith.constant 0 : i32
    %c0_i32_1 = arith.constant 0 : i32
    %c0_i32_2 = arith.constant 0 : i32
    return %arg0, %c0_i32, %c0_i32_0, %c0_i32_1 : i32, i32, i32, i32
  }
  func.func @transform_2(%arg0: i32) -> (i32, i32) {
    %c0_i32 = arith.constant 0 : i32
    %c0_i32_0 = arith.constant 0 : i32
    %c0_i32_1 = arith.constant 0 : i32
    return %c0_i32, %c0_i32_0 : i32, i32
  }
  func.func @transform_3(%arg0: i32) -> (i32, i32) {
    %c0_i32 = arith.constant 0 : i32
    %c0_i32_0 = arith.constant 0 : i32
    %c0_i32_1 = arith.constant 0 : i32
    return %c0_i32, %c0_i32_0 : i32, i32
  }
  func.func @transform_4(%arg0: i32) -> (i32, i32, i32, i32) {
    %c0_i32 = arith.constant 0 : i32
    %c0_i32_0 = arith.constant 0 : i32
    %c0_i32_1 = arith.constant 0 : i32
    %c0_i32_2 = arith.constant 0 : i32
    return %arg0, %c0_i32, %c0_i32_0, %c0_i32_1 : i32, i32, i32, i32
  }
}

module attributes {stable_mosaic.version = 11 : i64} {
  func.func @_bn_silu_conv_stats_kernel(%arg0: i32, %arg1: memref<1x16x16x128xf32, #tpu.memory_space<vmem>>, %arg2: memref<1x128xf32, #tpu.memory_space<vmem>>, %arg3: memref<1x128xf32, #tpu.memory_space<vmem>>, %arg4: memref<3x3x128x128xf32, #tpu.memory_space<vmem>>, %arg5: memref<1x16x16x128xf32, #tpu.memory_space<vmem>>, %arg6: memref<1x2x128xf32, #tpu.memory_space<vmem>>, %arg7: memref<18x18x128xf32, #tpu.memory_space<vmem>>) attributes {dimension_semantics = [#tpu.dimension_semantics<parallel>], iteration_bounds = array<i64: 2>, scalar_prefetch = 0 : i64, scratch_operands = 1 : i64, tpu.core_type = #tpu.core_type<tc>, window_params = [{transform_indices = @transform_0, window_bounds = array<i64: 1, 16, 16, 128>}, {pipeline_mode = #tpu.pipeline_mode<synchronous>, transform_indices = @transform_1, window_bounds = array<i64: 1, 128>}, {pipeline_mode = #tpu.pipeline_mode<synchronous>, transform_indices = @transform_2, window_bounds = array<i64: 1, 128>}, {pipeline_mode = #tpu.pipeline_mode<synchronous>, transform_indices = @transform_3, window_bounds = array<i64: 3, 3, 128, 128>}, {transform_indices = @transform_4, window_bounds = array<i64: 1, 16, 16, 128>}, {transform_indices = @transform_5, window_bounds = array<i64: 1, 2, 128>}]} {
    %c0 = arith.constant 0 : index
    %c0_0 = arith.constant 0 : index
    %c0_1 = arith.constant 0 : index
    %c0_2 = arith.constant 0 : index
    %0 = vector.load %arg1[%c0, %c0_0, %c0_1, %c0_2] : memref<1x16x16x128xf32, #tpu.memory_space<vmem>>, vector<1x16x16x128xf32>
    %1 = vector.shape_cast %0 : vector<1x16x16x128xf32> to vector<16x16x128xf32>
    %c0_3 = arith.constant 0 : index
    %c0_4 = arith.constant 0 : index
    %2 = vector.load %arg2[%c0_3, %c0_4] : memref<1x128xf32, #tpu.memory_space<vmem>>, vector<1x128xf32>
    %3 = vector.shape_cast %2 : vector<1x128xf32> to vector<1x1x128xf32>
    %4 = vector.broadcast %3 : vector<1x1x128xf32> to vector<16x16x128xf32>
    %5 = arith.mulf %1, %4 : vector<16x16x128xf32>
    %c0_5 = arith.constant 0 : index
    %c0_6 = arith.constant 0 : index
    %6 = vector.load %arg3[%c0_5, %c0_6] : memref<1x128xf32, #tpu.memory_space<vmem>>, vector<1x128xf32>
    %7 = vector.shape_cast %6 : vector<1x128xf32> to vector<1x1x128xf32>
    %8 = vector.broadcast %7 : vector<1x1x128xf32> to vector<16x16x128xf32>
    %9 = arith.addf %5, %8 : vector<16x16x128xf32>
    %cst = arith.constant 5.000000e-01 : f32
    %10 = vector.broadcast %cst : f32 to vector<16x16x128xf32>
    %11 = arith.mulf %10, %9 : vector<16x16x128xf32>
    %12 = math.tanh %11 : vector<16x16x128xf32>
    %cst_7 = arith.constant 1.000000e+00 : f32
    %13 = vector.broadcast %cst_7 : f32 to vector<16x16x128xf32>
    %14 = arith.addf %12, %13 : vector<16x16x128xf32>
    %cst_8 = arith.constant 5.000000e-01 : f32
    %15 = vector.broadcast %cst_8 : f32 to vector<16x16x128xf32>
    %16 = arith.mulf %15, %14 : vector<16x16x128xf32>
    %17 = arith.mulf %9, %16 : vector<16x16x128xf32>
    %cst_9 = arith.constant 0.000000e+00 : f32
    %18 = vector.broadcast %cst_9 : f32 to vector<1x18x128xf32>
    %c0_10 = arith.constant 0 : index
    %c0_11 = arith.constant 0 : index
    %c0_12 = arith.constant 0 : index
    %19 = vector.load %arg7[%c0_10, %c0_11, %c0_12] : memref<18x18x128xf32, #tpu.memory_space<vmem>>, vector<1x18x128xf32>
    tpu.vector_store %arg7[%c0_10, %c0_11, %c0_12], %18 {strides = array<i32>} : memref<18x18x128xf32, #tpu.memory_space<vmem>>, vector<1x18x128xf32>,
    %cst_13 = arith.constant 0.000000e+00 : f32
    %20 = vector.broadcast %cst_13 : f32 to vector<1x18x128xf32>
    %c17 = arith.constant 17 : index
    %c0_14 = arith.constant 0 : index
    %c0_15 = arith.constant 0 : index
    %21 = vector.load %arg7[%c17, %c0_14, %c0_15] : memref<18x18x128xf32, #tpu.memory_space<vmem>>, vector<1x18x128xf32>
    tpu.vector_store %arg7[%c17, %c0_14, %c0_15], %20 {strides = array<i32>} : memref<18x18x128xf32, #tpu.memory_space<vmem>>, vector<1x18x128xf32>,
    %cst_16 = arith.constant 0.000000e+00 : f32
    %22 = vector.broadcast %cst_16 : f32 to vector<16x1x128xf32>
    %c1 = arith.constant 1 : index
    %c0_17 = arith.constant 0 : index
    %c0_18 = arith.constant 0 : index
    %23 = vector.load %arg7[%c1, %c0_17, %c0_18] : memref<18x18x128xf32, #tpu.memory_space<vmem>>, vector<16x1x128xf32>
    tpu.vector_store %arg7[%c1, %c0_17, %c0_18], %22 {strides = array<i32>} : memref<18x18x128xf32, #tpu.memory_space<vmem>>, vector<16x1x128xf32>,
    %cst_19 = arith.constant 0.000000e+00 : f32
    %24 = vector.broadcast %cst_19 : f32 to vector<16x1x128xf32>
    %c1_20 = arith.constant 1 : index
    %c17_21 = arith.constant 17 : index
    %c0_22 = arith.constant 0 : index
    %25 = vector.load %arg7[%c1_20, %c17_21, %c0_22] : memref<18x18x128xf32, #tpu.memory_space<vmem>>, vector<16x1x128xf32>
    tpu.vector_store %arg7[%c1_20, %c17_21, %c0_22], %24 {strides = array<i32>} : memref<18x18x128xf32, #tpu.memory_space<vmem>>, vector<16x1x128xf32>,
    %c1_23 = arith.constant 1 : index
    %c1_24 = arith.constant 1 : index
    %c0_25 = arith.constant 0 : index
    %26 = vector.load %arg7[%c1_23, %c1_24, %c0_25] : memref<18x18x128xf32, #tpu.memory_space<vmem>>, vector<16x16x128xf32>
    tpu.vector_store %arg7[%c1_23, %c1_24, %c0_25], %17 {strides = array<i32>} : memref<18x18x128xf32, #tpu.memory_space<vmem>>, vector<16x16x128xf32>,
    %c0_26 = arith.constant 0 : index
    %c0_27 = arith.constant 0 : index
    %c0_28 = arith.constant 0 : index
    %27 = vector.load %arg7[%c0_26, %c0_27, %c0_28] : memref<18x18x128xf32, #tpu.memory_space<vmem>>, vector<16x16x128xf32>
    %28 = vector.shape_cast %27 : vector<16x16x128xf32> to vector<256x128xf32>
    %c0_29 = arith.constant 0 : index
    %c0_30 = arith.constant 0 : index
    %c0_31 = arith.constant 0 : index
    %c0_32 = arith.constant 0 : index
    %29 = vector.load %arg4[%c0_29, %c0_30, %c0_31, %c0_32] : memref<3x3x128x128xf32, #tpu.memory_space<vmem>>, vector<1x1x128x128xf32>
    %30 = vector.shape_cast %29 : vector<1x1x128x128xf32> to vector<128x128xf32>
    %cst_33 = arith.constant dense<0.000000e+00> : vector<256x128xf32>
    %31 = tpu.matmul %28, %30, %cst_33 {dimension_numbers = #tpu.dot_dimension_numbers<[1], [0], [0], [1], [0, 0, 1, 1], [], []>} : vector<256x128xf32>, vector<128x128xf32>, vector<256x128xf32> -> vector<256x128xf32>
    %c0_34 = arith.constant 0 : index
    %c1_35 = arith.constant 1 : index
    %c0_36 = arith.constant 0 : index
    %32 = vector.load %arg7[%c0_34, %c1_35, %c0_36] : memref<18x18x128xf32, #tpu.memory_space<vmem>>, vector<16x16x128xf32>
    %33 = vector.shape_cast %32 : vector<16x16x128xf32> to vector<256x128xf32>
    %c0_37 = arith.constant 0 : index
    %c1_38 = arith.constant 1 : index
    %c0_39 = arith.constant 0 : index
    %c0_40 = arith.constant 0 : index
    %34 = vector.load %arg4[%c0_37, %c1_38, %c0_39, %c0_40] : memref<3x3x128x128xf32, #tpu.memory_space<vmem>>, vector<1x1x128x128xf32>
    %35 = vector.shape_cast %34 : vector<1x1x128x128xf32> to vector<128x128xf32>
    %cst_41 = arith.constant dense<0.000000e+00> : vector<256x128xf32>
    %36 = tpu.matmul %33, %35, %cst_41 {dimension_numbers = #tpu.dot_dimension_numbers<[1], [0], [0], [1], [0, 0, 1, 1], [], []>} : vector<256x128xf32>, vector<128x128xf32>, vector<256x128xf32> -> vector<256x128xf32>
    %37 = arith.addf %31, %36 : vector<256x128xf32>
    %c0_42 = arith.constant 0 : index
    %c2 = arith.constant 2 : index
    %c0_43 = arith.constant 0 : index
    %38 = vector.load %arg7[%c0_42, %c2, %c0_43] : memref<18x18x128xf32, #tpu.memory_space<vmem>>, vector<16x16x128xf32>
    %39 = vector.shape_cast %38 : vector<16x16x128xf32> to vector<256x128xf32>
    %c0_44 = arith.constant 0 : index
    %c2_45 = arith.constant 2 : index
    %c0_46 = arith.constant 0 : index
    %c0_47 = arith.constant 0 : index
    %40 = vector.load %arg4[%c0_44, %c2_45, %c0_46, %c0_47] : memref<3x3x128x128xf32, #tpu.memory_space<vmem>>, vector<1x1x128x128xf32>
    %41 = vector.shape_cast %40 : vector<1x1x128x128xf32> to vector<128x128xf32>
    %cst_48 = arith.constant dense<0.000000e+00> : vector<256x128xf32>
    %42 = tpu.matmul %39, %41, %cst_48 {dimension_numbers = #tpu.dot_dimension_numbers<[1], [0], [0], [1], [0, 0, 1, 1], [], []>} : vector<256x128xf32>, vector<128x128xf32>, vector<256x128xf32> -> vector<256x128xf32>
    %43 = arith.addf %37, %42 : vector<256x128xf32>
    %c1_49 = arith.constant 1 : index
    %c0_50 = arith.constant 0 : index
    %c0_51 = arith.constant 0 : index
    %44 = vector.load %arg7[%c1_49, %c0_50, %c0_51] : memref<18x18x128xf32, #tpu.memory_space<vmem>>, vector<16x16x128xf32>
    %45 = vector.shape_cast %44 : vector<16x16x128xf32> to vector<256x128xf32>
    %c1_52 = arith.constant 1 : index
    %c0_53 = arith.constant 0 : index
    %c0_54 = arith.constant 0 : index
    %c0_55 = arith.constant 0 : index
    %46 = vector.load %arg4[%c1_52, %c0_53, %c0_54, %c0_55] : memref<3x3x128x128xf32, #tpu.memory_space<vmem>>, vector<1x1x128x128xf32>
    %47 = vector.shape_cast %46 : vector<1x1x128x128xf32> to vector<128x128xf32>
    %cst_56 = arith.constant dense<0.000000e+00> : vector<256x128xf32>
    %48 = tpu.matmul %45, %47, %cst_56 {dimension_numbers = #tpu.dot_dimension_numbers<[1], [0], [0], [1], [0, 0, 1, 1], [], []>} : vector<256x128xf32>, vector<128x128xf32>, vector<256x128xf32> -> vector<256x128xf32>
    %49 = arith.addf %43, %48 : vector<256x128xf32>
    %c1_57 = arith.constant 1 : index
    %c1_58 = arith.constant 1 : index
    %c0_59 = arith.constant 0 : index
    %50 = vector.load %arg7[%c1_57, %c1_58, %c0_59] : memref<18x18x128xf32, #tpu.memory_space<vmem>>, vector<16x16x128xf32>
    %51 = vector.shape_cast %50 : vector<16x16x128xf32> to vector<256x128xf32>
    %c1_60 = arith.constant 1 : index
    %c1_61 = arith.constant 1 : index
    %c0_62 = arith.constant 0 : index
    %c0_63 = arith.constant 0 : index
    %52 = vector.load %arg4[%c1_60, %c1_61, %c0_62, %c0_63] : memref<3x3x128x128xf32, #tpu.memory_space<vmem>>, vector<1x1x128x128xf32>
    %53 = vector.shape_cast %52 : vector<1x1x128x128xf32> to vector<128x128xf32>
    %cst_64 = arith.constant dense<0.000000e+00> : vector<256x128xf32>
    %54 = tpu.matmul %51, %53, %cst_64 {dimension_numbers = #tpu.dot_dimension_numbers<[1], [0], [0], [1], [0, 0, 1, 1], [], []>} : vector<256x128xf32>, vector<128x128xf32>, vector<256x128xf32> -> vector<256x128xf32>
    %55 = arith.addf %49, %54 : vector<256x128xf32>
    %c1_65 = arith.constant 1 : index
    %c2_66 = arith.constant 2 : index
    %c0_67 = arith.constant 0 : index
    %56 = vector.load %arg7[%c1_65, %c2_66, %c0_67] : memref<18x18x128xf32, #tpu.memory_space<vmem>>, vector<16x16x128xf32>
    %57 = vector.shape_cast %56 : vector<16x16x128xf32> to vector<256x128xf32>
    %c1_68 = arith.constant 1 : index
    %c2_69 = arith.constant 2 : index
    %c0_70 = arith.constant 0 : index
    %c0_71 = arith.constant 0 : index
    %58 = vector.load %arg4[%c1_68, %c2_69, %c0_70, %c0_71] : memref<3x3x128x128xf32, #tpu.memory_space<vmem>>, vector<1x1x128x128xf32>
    %59 = vector.shape_cast %58 : vector<1x1x128x128xf32> to vector<128x128xf32>
    %cst_72 = arith.constant dense<0.000000e+00> : vector<256x128xf32>
    %60 = tpu.matmul %57, %59, %cst_72 {dimension_numbers = #tpu.dot_dimension_numbers<[1], [0], [0], [1], [0, 0, 1, 1], [], []>} : vector<256x128xf32>, vector<128x128xf32>, vector<256x128xf32> -> vector<256x128xf32>
    %61 = arith.addf %55, %60 : vector<256x128xf32>
    %c2_73 = arith.constant 2 : index
    %c0_74 = arith.constant 0 : index
    %c0_75 = arith.constant 0 : index
    %62 = vector.load %arg7[%c2_73, %c0_74, %c0_75] : memref<18x18x128xf32, #tpu.memory_space<vmem>>, vector<16x16x128xf32>
    %63 = vector.shape_cast %62 : vector<16x16x128xf32> to vector<256x128xf32>
    %c2_76 = arith.constant 2 : index
    %c0_77 = arith.constant 0 : index
    %c0_78 = arith.constant 0 : index
    %c0_79 = arith.constant 0 : index
    %64 = vector.load %arg4[%c2_76, %c0_77, %c0_78, %c0_79] : memref<3x3x128x128xf32, #tpu.memory_space<vmem>>, vector<1x1x128x128xf32>
    %65 = vector.shape_cast %64 : vector<1x1x128x128xf32> to vector<128x128xf32>
    %cst_80 = arith.constant dense<0.000000e+00> : vector<256x128xf32>
    %66 = tpu.matmul %63, %65, %cst_80 {dimension_numbers = #tpu.dot_dimension_numbers<[1], [0], [0], [1], [0, 0, 1, 1], [], []>} : vector<256x128xf32>, vector<128x128xf32>, vector<256x128xf32> -> vector<256x128xf32>
    %67 = arith.addf %61, %66 : vector<256x128xf32>
    %c2_81 = arith.constant 2 : index
    %c1_82 = arith.constant 1 : index
    %c0_83 = arith.constant 0 : index
    %68 = vector.load %arg7[%c2_81, %c1_82, %c0_83] : memref<18x18x128xf32, #tpu.memory_space<vmem>>, vector<16x16x128xf32>
    %69 = vector.shape_cast %68 : vector<16x16x128xf32> to vector<256x128xf32>
    %c2_84 = arith.constant 2 : index
    %c1_85 = arith.constant 1 : index
    %c0_86 = arith.constant 0 : index
    %c0_87 = arith.constant 0 : index
    %70 = vector.load %arg4[%c2_84, %c1_85, %c0_86, %c0_87] : memref<3x3x128x128xf32, #tpu.memory_space<vmem>>, vector<1x1x128x128xf32>
    %71 = vector.shape_cast %70 : vector<1x1x128x128xf32> to vector<128x128xf32>
    %cst_88 = arith.constant dense<0.000000e+00> : vector<256x128xf32>
    %72 = tpu.matmul %69, %71, %cst_88 {dimension_numbers = #tpu.dot_dimension_numbers<[1], [0], [0], [1], [0, 0, 1, 1], [], []>} : vector<256x128xf32>, vector<128x128xf32>, vector<256x128xf32> -> vector<256x128xf32>
    %73 = arith.addf %67, %72 : vector<256x128xf32>
    %c2_89 = arith.constant 2 : index
    %c2_90 = arith.constant 2 : index
    %c0_91 = arith.constant 0 : index
    %74 = vector.load %arg7[%c2_89, %c2_90, %c0_91] : memref<18x18x128xf32, #tpu.memory_space<vmem>>, vector<16x16x128xf32>
    %75 = vector.shape_cast %74 : vector<16x16x128xf32> to vector<256x128xf32>
    %c2_92 = arith.constant 2 : index
    %c2_93 = arith.constant 2 : index
    %c0_94 = arith.constant 0 : index
    %c0_95 = arith.constant 0 : index
    %76 = vector.load %arg4[%c2_92, %c2_93, %c0_94, %c0_95] : memref<3x3x128x128xf32, #tpu.memory_space<vmem>>, vector<1x1x128x128xf32>
    %77 = vector.shape_cast %76 : vector<1x1x128x128xf32> to vector<128x128xf32>
    %cst_96 = arith.constant dense<0.000000e+00> : vector<256x128xf32>
    %78 = tpu.matmul %75, %77, %cst_96 {dimension_numbers = #tpu.dot_dimension_numbers<[1], [0], [0], [1], [0, 0, 1, 1], [], []>} : vector<256x128xf32>, vector<128x128xf32>, vector<256x128xf32> -> vector<256x128xf32>
    %79 = arith.addf %73, %78 : vector<256x128xf32>
    %80 = vector.shape_cast %79 : vector<256x128xf32> to vector<16x16x128xf32>
    %c0_97 = arith.constant 0 : index
    %c0_98 = arith.constant 0 : index
    %c0_99 = arith.constant 0 : index
    %c0_100 = arith.constant 0 : index
    %81 = vector.load %arg5[%c0_97, %c0_98, %c0_99, %c0_100] : memref<1x16x16x128xf32, #tpu.memory_space<vmem>>, vector<1x16x16x128xf32>
    %82 = vector.shape_cast %81 : vector<1x16x16x128xf32> to vector<16x16x128xf32>
    %83 = vector.shape_cast %80 : vector<16x16x128xf32> to vector<1x16x16x128xf32>
    tpu.vector_store %arg5[%c0_97, %c0_98, %c0_99, %c0_100], %83 {strides = array<i32>} : memref<1x16x16x128xf32, #tpu.memory_space<vmem>>, vector<1x16x16x128xf32>,
    %cst_101 = arith.constant dense<0.000000e+00> : vector<128xf32>
    %84 = vector.multi_reduction <add>, %79, %cst_101 [0] : vector<256x128xf32> to vector<128xf32>
    %85 = vector.shape_cast %84 : vector<128xf32> to vector<1x128xf32>
    %c0_102 = arith.constant 0 : index
    %c0_103 = arith.constant 0 : index
    %c0_104 = arith.constant 0 : index
    %86 = vector.load %arg6[%c0_102, %c0_103, %c0_104] : memref<1x2x128xf32, #tpu.memory_space<vmem>>, vector<1x1x128xf32>
    %87 = vector.shape_cast %86 : vector<1x1x128xf32> to vector<1x128xf32>
    %88 = vector.shape_cast %85 : vector<1x128xf32> to vector<1x1x128xf32>
    tpu.vector_store %arg6[%c0_102, %c0_103, %c0_104], %88 {strides = array<i32>} : memref<1x2x128xf32, #tpu.memory_space<vmem>>, vector<1x1x128xf32>,
    %89 = arith.mulf %79, %79 : vector<256x128xf32>
    %cst_105 = arith.constant dense<0.000000e+00> : vector<128xf32>
    %90 = vector.multi_reduction <add>, %89, %cst_105 [0] : vector<256x128xf32> to vector<128xf32>
    %91 = vector.shape_cast %90 : vector<128xf32> to vector<1x128xf32>
    %c0_106 = arith.constant 0 : index
    %c1_107 = arith.constant 1 : index
    %c0_108 = arith.constant 0 : index
    %92 = vector.load %arg6[%c0_106, %c1_107, %c0_108] : memref<1x2x128xf32, #tpu.memory_space<vmem>>, vector<1x1x128xf32>
    %93 = vector.shape_cast %92 : vector<1x1x128xf32> to vector<1x128xf32>
    %94 = vector.shape_cast %91 : vector<1x128xf32> to vector<1x1x128xf32>
    tpu.vector_store %arg6[%c0_106, %c1_107, %c0_108], %94 {strides = array<i32>} : memref<1x2x128xf32, #tpu.memory_space<vmem>>, vector<1x1x128xf32>,
    return
  }
  func.func @transform_0(%arg0: i32) -> (i32, i32, i32, i32) {
    %c0_i32 = arith.constant 0 : i32
    %c0_i32_0 = arith.constant 0 : i32
    %c0_i32_1 = arith.constant 0 : i32
    %c0_i32_2 = arith.constant 0 : i32
    return %arg0, %c0_i32, %c0_i32_0, %c0_i32_1 : i32, i32, i32, i32
  }
  func.func @transform_1(%arg0: i32) -> (i32, i32) {
    %c0_i32 = arith.constant 0 : i32
    %c0_i32_0 = arith.constant 0 : i32
    %c0_i32_1 = arith.constant 0 : i32
    return %c0_i32, %c0_i32_0 : i32, i32
  }
  func.func @transform_2(%arg0: i32) -> (i32, i32) {
    %c0_i32 = arith.constant 0 : i32
    %c0_i32_0 = arith.constant 0 : i32
    %c0_i32_1 = arith.constant 0 : i32
    return %c0_i32, %c0_i32_0 : i32, i32
  }
  func.func @transform_3(%arg0: i32) -> (i32, i32, i32, i32) {
    %c0_i32 = arith.constant 0 : i32
    %c0_i32_0 = arith.constant 0 : i32
    %c0_i32_1 = arith.constant 0 : i32
    %c0_i32_2 = arith.constant 0 : i32
    %c0_i32_3 = arith.constant 0 : i32
    return %c0_i32, %c0_i32_0, %c0_i32_1, %c0_i32_2 : i32, i32, i32, i32
  }
  func.func @transform_4(%arg0: i32) -> (i32, i32, i32, i32) {
    %c0_i32 = arith.constant 0 : i32
    %c0_i32_0 = arith.constant 0 : i32
    %c0_i32_1 = arith.constant 0 : i32
    %c0_i32_2 = arith.constant 0 : i32
    return %arg0, %c0_i32, %c0_i32_0, %c0_i32_1 : i32, i32, i32, i32
  }
  func.func @transform_5(%arg0: i32) -> (i32, i32, i32) {
    %c0_i32 = arith.constant 0 : i32
    %c0_i32_0 = arith.constant 0 : i32
    %c0_i32_1 = arith.constant 0 : i32
    return %arg0, %c0_i32, %c0_i32_0 : i32, i32, i32
  }
}

</mosaic_0001>

<llo_original>
// kernel: bottleneck_pallas.5
$region0: #{bottleneck_pallas.5}
  #allocation0 [shape = 'u32[]', space=smem, size = 0x4, offset = 0x4, fixed_abs, tag = 'smem constant byte address 0x4 - core index']
  #allocation1 [shape = 'u32[72,128]{1,0:T(1,128)}', space=vmem, size = 0x9000, scoped, tag = 'internal scratch']
  %s0 = inlined_call_operand.vmem [shape: f32[2,16,16,128], index: 0, kind: input, shape index: {}]
  %s1 = inlined_call_operand.vmem [shape: f32[2,16,16,128], index: 1, kind: input, shape index: {}]
  %s2 = inlined_call_operand.vmem [shape: f32[1,128], index: 2, kind: input, shape index: {}]
  %s3 = inlined_call_operand.vmem [shape: f32[1,128], index: 3, kind: input, shape index: {}]
  %s4 = inlined_call_operand.vmem [shape: f32[2,16,16,128], index: 4, kind: output, shape index: {}]
  %s5 = sld [smem:[#allocation0]]
  $region49: #{bottleneck_pallas.5} parent=0
    _
  %s7 = ssub.s32 1, %s5
  %s8 = scalar_select 0, %s7, %s5
  loop: start=0, step=1, limit=4
  $region2: #{bottleneck_pallas.5} parent=0 // loop_pre_header
    _
  $region3: #{bottleneck_pallas.5} parent=0 // loop_header
    %s10 = sphi 0, %s14
    %p11 = scmp.ge.s32.totalorder %s10, 4
    %s20 = sphi 0, %s22
    %s23 = sphi 0, %s20
    %s24 = sphi 0, %s23
    %s40 = sphi 0, %s24
    %s46 = sphi 0, %s48
    %s49 = sphi 0, %s46
    %s50 = sphi 0, %s49
    %s66 = sphi 0, %s50
    %s70 = sphi 0, %s70
    %s72 = sphi 0, %s70
    %s73 = sphi 0, %s72
    %s87 = sphi 0, %s73
    %s91 = sphi 0, %s91
    %s93 = sphi 0, %s91
    %s94 = sphi 0, %s93
    %s108 = sphi 0, %s94
    %s114 = sphi 0, %s116
    %s117 = sphi 0, %s114
    %s118 = sphi 0, %s117
    %s134 = sphi 0, %s118
  $region4: #{bottleneck_pallas.5} parent=0 // loop_header_branch
    %13 = sbr.rel (%p11) target = $region8
  $region5: #{bottleneck_pallas.5} parent=0 // loop_body
    %s15 = ssub.s32 %s10, 1
    %s16 = ssub.s32 %s10, 2
    %s17 = sadd.s32 %s10, 1
    %s18 = ssub.s32 %s10, %s17
    %p19 = scmp.eq.s32.totalorder %s18, 0
    %s21 = sadd.s32 %s20, 1
    %s22 = scalar_select %p19, %s20, %s21
    %p25 = pneg %p19
    %p26 = scmp.eq.s32.totalorder %s10, 1
    %p27 = por %p25, %p26
    %p28 = scmp.ne.s32.totalorder %s20, %s23
    %p29 = scmp.eq.s32.totalorder %s10, 0
    %p30 = por %p28, %p29
    %p31 = scmp.ne.s32.totalorder %s20, %s23
    %p32 = scmp.eq.s32.totalorder %s15, 1
    %p33 = por %p31, %p32
    %p34 = scmp.ne.s32.totalorder %s23, %s24
    %p35 = scmp.eq.s32.totalorder %s15, 0
    %p36 = por %p34, %p35
    %p37 = scmp.ne.s32.totalorder %s23, %s24
    %p38 = scmp.eq.s32.totalorder %s16, 1
    %p39 = por %p37, %p38
    %p41 = scmp.ne.s32.totalorder %s24, %s40
    %p42 = scmp.eq.s32.totalorder %s16, 0
    %p43 = por %p41, %p42
    %s44 = ssub.s32 %s10, %s17
    %p45 = scmp.eq.s32.totalorder %s44, 0
    %s47 = sadd.s32 %s46, 1
    %s48 = scalar_select %p45, %s46, %s47
    %p51 = pneg %p45
    %p52 = scmp.eq.s32.totalorder %s10, 1
    %p53 = por %p51, %p52
    %p54 = scmp.ne.s32.totalorder %s46, %s49
    %p55 = scmp.eq.s32.totalorder %s10, 0
    %p56 = por %p54, %p55
    %p57 = scmp.ne.s32.totalorder %s46, %s49
    %p58 = scmp.eq.s32.totalorder %s15, 1
    %p59 = por %p57, %p58
    %p60 = scmp.ne.s32.totalorder %s49, %s50
    %p61 = scmp.eq.s32.totalorder %s15, 0
    %p62 = por %p60, %p61
    %p63 = scmp.ne.s32.totalorder %s49, %s50
    %p64 = scmp.eq.s32.totalorder %s16, 1
    %p65 = por %p63, %p64
    %p67 = scmp.ne.s32.totalorder %s50, %s66
    %p68 = scmp.eq.s32.totalorder %s16, 0
    %p69 = por %p67, %p68
    %s71 = sadd.s32 %s70, 1
    %p74 = scmp.eq.s32.totalorder %s10, 1
    %p75 = scmp.ne.s32.totalorder %s70, %s72
    %p76 = scmp.eq.s32.totalorder %s10, 0
    %p77 = por %p75, %p76
    %p78 = scmp.ne.s32.totalorder %s70, %s72
    %p79 = scmp.eq.s32.totalorder %s15, 1
    %p80 = por %p78, %p79
    %p81 = scmp.ne.s32.totalorder %s72, %s73
    %p82 = scmp.eq.s32.totalorder %s15, 0
    %p83 = por %p81, %p82
    %p84 = scmp.ne.s32.totalorder %s72, %s73
    %p85 = scmp.eq.s32.totalorder %s16, 1
    %p86 = por %p84, %p85
    %p88 = scmp.ne.s32.totalorder %s73, %s87
    %p89 = scmp.eq.s32.totalorder %s16, 0
    %p90 = por %p88, %p89
    %s92 = sadd.s32 %s91, 1
    %p95 = scmp.eq.s32.totalorder %s10, 1
    %p96 = scmp.ne.s32.totalorder %s91, %s93
    %p97 = scmp.eq.s32.totalorder %s10, 0
    %p98 = por %p96, %p97
    %p99 = scmp.ne.s32.totalorder %s91, %s93
    %p100 = scmp.eq.s32.totalorder %s15, 1
    %p101 = por %p99, %p100
    %p102 = scmp.ne.s32.totalorder %s93, %s94
    %p103 = scmp.eq.s32.totalorder %s15, 0
    %p104 = por %p102, %p103
    %p105 = scmp.ne.s32.totalorder %s93, %s94
    %p106 = scmp.eq.s32.totalorder %s16, 1
    %p107 = por %p105, %p106
    %p109 = scmp.ne.s32.totalorder %s94, %s108
    %p110 = scmp.eq.s32.totalorder %s16, 0
    %p111 = por %p109, %p110
    %s112 = ssub.s32 %s10, %s17
    %p113 = scmp.eq.s32.totalorder %s112, 0
    %s115 = sadd.s32 %s114, 1
    %s116 = scalar_select %p113, %s114, %s115
    %p119 = pneg %p113
    %p120 = scmp.eq.s32.totalorder %s10, 1
    %p121 = por %p119, %p120
    %p122 = scmp.ne.s32.totalorder %s114, %s117
    %p123 = scmp.eq.s32.totalorder %s10, 0
    %p124 = por %p122, %p123
    %p125 = scmp.ne.s32.totalorder %s114, %s117
    %p126 = scmp.eq.s32.totalorder %s15, 1
    %p127 = por %p125, %p126
    %p128 = scmp.ne.s32.totalorder %s117, %s118
    %p129 = scmp.eq.s32.totalorder %s15, 0
    %p130 = por %p128, %p129
    %p131 = scmp.ne.s32.totalorder %s117, %s118
    %p132 = scmp.eq.s32.totalorder %s16, 1
    %p133 = por %p131, %p132
    %p135 = scmp.ne.s32.totalorder %s118, %s134
    %p136 = scmp.eq.s32.totalorder %s16, 0
    %p137 = por %p135, %p136
    %p138 = scmp.le.s32.totalorder 1, %s10
    %p139 = scmp.lt.s32.totalorder %s10, 3
    %p140 = pnand %p138, %p139
    %p141 = pneg %p140
    // Predicated region
    $region9: #{bottleneck_pallas.5} parent=5 // pred_check
      _
    $region10: #{bottleneck_pallas.5} parent=5 // pred_check_branch
      %143 = sbr.rel (%p140) target = $region12
    $region11: #{bottleneck_pallas.5} parent=5 // pred_region
      %s144 = ssub.s32 %s10, 1
      // Predicated region
      $region13: #{bottleneck_pallas.5} parent=11 // pred_check
        %p145 = pneg %p83
      $region14: #{bottleneck_pallas.5} parent=11 // pred_check_branch
        %147 = sbr.rel (%p145) target = $region16
      $region15: #{bottleneck_pallas.5} parent=11 // pred_region
        _
      $region16: #{bottleneck_pallas.5} parent=11 // pred_fallthru
        _
      // Predicated region
      $region17: #{bottleneck_pallas.5} parent=11 // pred_check
        %p148 = pneg %p104
      $region18: #{bottleneck_pallas.5} parent=11 // pred_check_branch
        %150 = sbr.rel (%p148) target = $region20
      $region19: #{bottleneck_pallas.5} parent=11 // pred_region
        _
      $region20: #{bottleneck_pallas.5} parent=11 // pred_fallthru
        _
    $region12: #{bottleneck_pallas.5} parent=5 // pred_fallthru
      _
    %p151 = scmp.lt.s32.totalorder %s10, 2
    // Predicated region
    $region21: #{bottleneck_pallas.5} parent=5 // pred_check
      %p152 = pneg %p151
    $region22: #{bottleneck_pallas.5} parent=5 // pred_check_branch
      %154 = sbr.rel (%p152) target = $region24
    $region23: #{bottleneck_pallas.5} parent=5 // pred_region
      // Predicated region
      $region25: #{bottleneck_pallas.5} parent=23 // pred_check
        %p155 = pneg %p30
      $region26: #{bottleneck_pallas.5} parent=23 // pred_check_branch
        %157 = sbr.rel (%p155) target = $region28
      $region27: #{bottleneck_pallas.5} parent=23 // pred_region
        %p158 = scmp.lt.s32.totalorder %s10, 1
        %s159 = scalar_select %p158, %s10, 1
        %s160 = smul.addr %s159, 32
        %s161 = smul.addr %s160, 8
        %s162 = scalar_lea.vmem %s0, %s161
      $region28: #{bottleneck_pallas.5} parent=23 // pred_fallthru
        _
      // Predicated region
      $region29: #{bottleneck_pallas.5} parent=23 // pred_check
        %p163 = pneg %p56
      $region30: #{bottleneck_pallas.5} parent=23 // pred_check_branch
        %165 = sbr.rel (%p163) target = $region32
      $region31: #{bottleneck_pallas.5} parent=23 // pred_region
        %p166 = scmp.lt.s32.totalorder %s10, 1
        %s167 = scalar_select %p166, %s10, 1
        %s168 = smul.addr %s167, 32
        %s169 = smul.addr %s168, 8
        %s170 = scalar_lea.vmem %s1, %s169
      $region32: #{bottleneck_pallas.5} parent=23 // pred_fallthru
        _
    $region24: #{bottleneck_pallas.5} parent=5 // pred_fallthru
      _
    %p171 = scmp.le.s32.totalorder 1, %s10
    %p172 = scmp.lt.s32.totalorder %s10, 3
    %p173 = pnand %p171, %p172
    %p174 = pneg %p173
    // Predicated region
    $region33: #{bottleneck_pallas.5} parent=5 // pred_check
      _
    $region34: #{bottleneck_pallas.5} parent=5 // pred_check_branch
      %176 = sbr.rel (%p173) target = $region36
    $region35: #{bottleneck_pallas.5} parent=5 // pred_region
      %s177 = ssub.s32 %s10, 1
      %p178 = scmp.lt.s32.totalorder %s15, 1
      %s179 = scalar_select %p178, %s15, 1
      %s180 = smul.addr %s179, 32
      %s181 = smul.addr %s180, 8
      %s182 = scalar_lea.vmem %s0, %s181
      %p183 = pneg %p36
      %p184 = pneg %p33
      %p185 = scmp.lt.s32.totalorder %s15, 1
      %s186 = scalar_select %p185, %s15, 1
      %s187 = smul.addr %s186, 32
      %s188 = smul.addr %s187, 8
      %s189 = scalar_lea.vmem %s1, %s188
      %p190 = pneg %p62
      %p191 = pneg %p59
      %p192 = pneg %p83
      %p193 = pneg %p80
      %p194 = pneg %p104
      %p195 = pneg %p101
      %p196 = pneg %p130
      %p197 = pneg %p127
      %p198 = scmp.lt.s32.totalorder %s15, 1
      %s199 = scalar_select %p198, %s15, 1
      %s200 = smul.addr %s199, 32
      %s201 = smul.addr %s200, 8
      %s202 = scalar_lea.vmem %s4, %s201
      %p203 = scmp.lt.s32.totalorder %s15, 1
      %s204 = scalar_select %p203, %s15, 1
      %s205 = smul.addr %s204, 32
      %s206 = smul.addr %s205, 8
      %s207 = scalar_lea.vmem %s0, %s206
      %p208 = scmp.lt.s32.totalorder %s15, 1
      %s209 = scalar_select %p208, %s15, 1
      %s210 = smul.addr %s209, 32
      %s211 = smul.addr %s210, 8
      %s212 = scalar_lea.vmem %s1, %s211
      %p213 = scmp.lt.s32.totalorder %s15, 1
      %s214 = scalar_select %p213, %s15, 1
      %s215 = smul.addr %s214, 32
      %s216 = smul.addr %s215, 8
      %s217 = scalar_lea.vmem %s4, %s216
      %v218 = vld [vmem:[%s212] sm:$0xff]
      %v219 = vld [vmem:[%s212 + $0x8] sm:$0xff]
      %v220 = vld [vmem:[%s212 + $0x10] sm:$0xff]
      %v221 = vld [vmem:[%s212 + $0x18] sm:$0xff]
      %v222 = vld [vmem:[%s212 + $0x20] sm:$0xff]
      %v223 = vld [vmem:[%s212 + $0x28] sm:$0xff]
      %v224 = vld [vmem:[%s212 + $0x30] sm:$0xff]
      %v225 = vld [vmem:[%s212 + $0x38] sm:$0xff]
      %v226 = vld [vmem:[%s212 + $0x40] sm:$0xff]
      %v227 = vld [vmem:[%s212 + $0x48] sm:$0xff]
      %v228 = vld [vmem:[%s212 + $0x50] sm:$0xff]
      %v229 = vld [vmem:[%s212 + $0x58] sm:$0xff]
      %v230 = vld [vmem:[%s212 + $0x60] sm:$0xff]
      %v231 = vld [vmem:[%s212 + $0x68] sm:$0xff]
      %v232 = vld [vmem:[%s212 + $0x70] sm:$0xff]
      %v233 = vld [vmem:[%s212 + $0x78] sm:$0xff]
      %v234 = vld [vmem:[%s212 + $0x80] sm:$0xff]
      %v235 = vld [vmem:[%s212 + $0x88] sm:$0xff]
      %v236 = vld [vmem:[%s212 + $0x90] sm:$0xff]
      %v237 = vld [vmem:[%s212 + $0x98] sm:$0xff]
      %v238 = vld [vmem:[%s212 + $0xa0] sm:$0xff]
      %v239 = vld [vmem:[%s212 + $0xa8] sm:$0xff]
      %v240 = vld [vmem:[%s212 + $0xb0] sm:$0xff]
      %v241 = vld [vmem:[%s212 + $0xb8] sm:$0xff]
      %v242 = vld [vmem:[%s212 + $0xc0] sm:$0xff]
      %v243 = vld [vmem:[%s212 + $0xc8] sm:$0xff]
      %v244 = vld [vmem:[%s212 + $0xd0] sm:$0xff]
      %v245 = vld [vmem:[%s212 + $0xd8] sm:$0xff]
      %v246 = vld [vmem:[%s212 + $0xe0] sm:$0xff]
      %v247 = vld [vmem:[%s212 + $0xe8] sm:$0xff]
      %v248 = vld [vmem:[%s212 + $0xf0] sm:$0xff]
      %v249 = vld [vmem:[%s212 + $0xf8] sm:$0xff]
      %v250 = vld [vmem:[%s2] sm:$0x1]
      %v252 = vperm.slane %v250, 0
      %v254 = vmul.f32 %v218, %v252
      %v255 = vmul.f32 %v219, %v252
      %v256 = vmul.f32 %v220, %v252
      %v257 = vmul.f32 %v221, %v252
      %v258 = vmul.f32 %v222, %v252
      %v259 = vmul.f32 %v223, %v252
      %v260 = vmul.f32 %v224, %v252
      %v261 = vmul.f32 %v225, %v252
      %v262 = vmul.f32 %v226, %v252
      %v263 = vmul.f32 %v227, %v252
      %v264 = vmul.f32 %v228, %v252
      %v265 = vmul.f32 %v229, %v252
      %v266 = vmul.f32 %v230, %v252
      %v267 = vmul.f32 %v231, %v252
      %v268 = vmul.f32 %v232, %v252
      %v269 = vmul.f32 %v233, %v252
      %v270 = vmul.f32 %v234, %v252
      %v271 = vmul.f32 %v235, %v252
      %v272 = vmul.f32 %v236, %v252
      %v273 = vmul.f32 %v237, %v252
      %v274 = vmul.f32 %v238, %v252
      %v275 = vmul.f32 %v239, %v252
      %v276 = vmul.f32 %v240, %v252
      %v277 = vmul.f32 %v241, %v252
      %v278 = vmul.f32 %v242, %v252
      %v279 = vmul.f32 %v243, %v252
      %v280 = vmul.f32 %v244, %v252
      %v281 = vmul.f32 %v245, %v252
      %v282 = vmul.f32 %v246, %v252
      %v283 = vmul.f32 %v247, %v252
      %v284 = vmul.f32 %v248, %v252
      %v285 = vmul.f32 %v249, %v252
      %v286 = vld [vmem:[%s3] sm:$0x1]
      %v288 = vperm.slane %v286, 0
      %v290 = vadd.f32 %v254, %v288
      %v291 = vadd.f32 %v255, %v288
      %v292 = vadd.f32 %v256, %v288
      %v293 = vadd.f32 %v257, %v288
      %v294 = vadd.f32 %v258, %v288
      %v295 = vadd.f32 %v259, %v288
      %v296 = vadd.f32 %v260, %v288
      %v297 = vadd.f32 %v261, %v288
      %v298 = vadd.f32 %v262, %v288
      %v299 = vadd.f32 %v263, %v288
      %v300 = vadd.f32 %v264, %v288
      %v301 = vadd.f32 %v265, %v288
      %v302 = vadd.f32 %v266, %v288
      %v303 = vadd.f32 %v267, %v288
      %v304 = vadd.f32 %v268, %v288
      %v305 = vadd.f32 %v269, %v288
      %v306 = vadd.f32 %v270, %v288
      %v307 = vadd.f32 %v271, %v288
      %v308 = vadd.f32 %v272, %v288
      %v309 = vadd.f32 %v273, %v288
      %v310 = vadd.f32 %v274, %v288
      %v311 = vadd.f32 %v275, %v288
      %v312 = vadd.f32 %v276, %v288
      %v313 = vadd.f32 %v277, %v288
      %v314 = vadd.f32 %v278, %v288
      %v315 = vadd.f32 %v279, %v288
      %v316 = vadd.f32 %v280, %v288
      %v317 = vadd.f32 %v281, %v288
      %v318 = vadd.f32 %v282, %v288
      %v319 = vadd.f32 %v283, %v288
      %v320 = vadd.f32 %v284, %v288
      %v321 = vadd.f32 %v285, %v288
      %v322 = vmul.f32 %v290, 0.5
      %v323 = vmul.f32 %v291, 0.5
      %v324 = vmul.f32 %v292, 0.5
      %v325 = vmul.f32 %v293, 0.5
      %v326 = vmul.f32 %v294, 0.5
      %v327 = vmul.f32 %v295, 0.5
      %v328 = vmul.f32 %v296, 0.5
      %v329 = vmul.f32 %v297, 0.5
      %v330 = vmul.f32 %v298, 0.5
      %v331 = vmul.f32 %v299, 0.5
      %v332 = vmul.f32 %v300, 0.5
      %v333 = vmul.f32 %v301, 0.5
      %v334 = vmul.f32 %v302, 0.5
      %v335 = vmul.f32 %v303, 0.5
      %v336 = vmul.f32 %v304, 0.5
      %v337 = vmul.f32 %v305, 0.5
      %v338 = vmul.f32 %v306, 0.5
      %v339 = vmul.f32 %v307, 0.5
      %v340 = vmul.f32 %v308, 0.5
      %v341 = vmul.f32 %v309, 0.5
      %v342 = vmul.f32 %v310, 0.5
      %v343 = vmul.f32 %v311, 0.5
      %v344 = vmul.f32 %v312, 0.5
      %v345 = vmul.f32 %v313, 0.5
      %v346 = vmul.f32 %v314, 0.5
      %v347 = vmul.f32 %v315, 0.5
      %v348 = vmul.f32 %v316, 0.5
      %v349 = vmul.f32 %v317, 0.5
      %v350 = vmul.f32 %v318, 0.5
      %v351 = vmul.f32 %v319, 0.5
      %v352 = vmul.f32 %v320, 0.5
      %v353 = vmul.f32 %v321, 0.5
      %v354 = vtanh.pop %v322
      %v355 = vtanh.pop %v323
      %v356 = vtanh.pop %v324
      %v357 = vtanh.pop %v325
      %v358 = vtanh.pop %v326
      %v359 = vtanh.pop %v327
      %v360 = vtanh.pop %v328
      %v361 = vtanh.pop %v329
      %v362 = vtanh.pop %v330
      %v363 = vtanh.pop %v331
      %v364 = vtanh.pop %v332
      %v365 = vtanh.pop %v333
      %v366 = vtanh.pop %v334
      %v367 = vtanh.pop %v335
      %v368 = vtanh.pop %v336
      %v369 = vtanh.pop %v337
      %v370 = vtanh.pop %v338
      %v371 = vtanh.pop %v339
      %v372 = vtanh.pop %v340
      %v373 = vtanh.pop %v341
      %v374 = vtanh.pop %v342
      %v375 = vtanh.pop %v343
      %v376 = vtanh.pop %v344
      %v377 = vtanh.pop %v345
      %v378 = vtanh.pop %v346
      %v379 = vtanh.pop %v347
      %v380 = vtanh.pop %v348
      %v381 = vtanh.pop %v349
      %v382 = vtanh.pop %v350
      %v383 = vtanh.pop %v351
      %v384 = vtanh.pop %v352
      %v385 = vtanh.pop %v353
      %v386 = vadd.f32 %v354, 1.0
      %v387 = vadd.f32 %v355, 1.0
      %v388 = vadd.f32 %v356, 1.0
      %v389 = vadd.f32 %v357, 1.0
      %v390 = vadd.f32 %v358, 1.0
      %v391 = vadd.f32 %v359, 1.0
      %v392 = vadd.f32 %v360, 1.0
      %v393 = vadd.f32 %v361, 1.0
      %v394 = vadd.f32 %v362, 1.0
      %v395 = vadd.f32 %v363, 1.0
      %v396 = vadd.f32 %v364, 1.0
      %v397 = vadd.f32 %v365, 1.0
      %v398 = vadd.f32 %v366, 1.0
      %v399 = vadd.f32 %v367, 1.0
      %v400 = vadd.f32 %v368, 1.0
      %v401 = vadd.f32 %v369, 1.0
      %v402 = vadd.f32 %v370, 1.0
      %v403 = vadd.f32 %v371, 1.0
      %v404 = vadd.f32 %v372, 1.0
      %v405 = vadd.f32 %v373, 1.0
      %v406 = vadd.f32 %v374, 1.0
      %v407 = vadd.f32 %v375, 1.0
      %v408 = vadd.f32 %v376, 1.0
      %v409 = vadd.f32 %v377, 1.0
      %v410 = vadd.f32 %v378, 1.0
      %v411 = vadd.f32 %v379, 1.0
      %v412 = vadd.f32 %v380, 1.0
      %v413 = vadd.f32 %v381, 1.0
      %v414 = vadd.f32 %v382, 1.0
      %v415 = vadd.f32 %v383, 1.0
      %v416 = vadd.f32 %v384, 1.0
      %v417 = vadd.f32 %v385, 1.0
      %v418 = vmul.f32 %v386, 0.5
      %v419 = vmul.f32 %v387, 0.5
      %v420 = vmul.f32 %v388, 0.5
      %v421 = vmul.f32 %v389, 0.5
      %v422 = vmul.f32 %v390, 0.5
      %v423 = vmul.f32 %v391, 0.5
      %v424 = vmul.f32 %v392, 0.5
      %v425 = vmul.f32 %v393, 0.5
      %v426 = vmul.f32 %v394, 0.5
      %v427 = vmul.f32 %v395, 0.5
      %v428 = vmul.f32 %v396, 0.5
      %v429 = vmul.f32 %v397, 0.5
      %v430 = vmul.f32 %v398, 0.5
      %v431 = vmul.f32 %v399, 0.5
      %v432 = vmul.f32 %v400, 0.5
      %v433 = vmul.f32 %v401, 0.5
      %v434 = vmul.f32 %v402, 0.5
      %v435 = vmul.f32 %v403, 0.5
      %v436 = vmul.f32 %v404, 0.5
      %v437 = vmul.f32 %v405, 0.5
      %v438 = vmul.f32 %v406, 0.5
      %v439 = vmul.f32 %v407, 0.5
      %v440 = vmul.f32 %v408, 0.5
      %v441 = vmul.f32 %v409, 0.5
      %v442 = vmul.f32 %v410, 0.5
      %v443 = vmul.f32 %v411, 0.5
      %v444 = vmul.f32 %v412, 0.5
      %v445 = vmul.f32 %v413, 0.5
      %v446 = vmul.f32 %v414, 0.5
      %v447 = vmul.f32 %v415, 0.5
      %v448 = vmul.f32 %v416, 0.5
      %v449 = vmul.f32 %v417, 0.5
      %v450 = vmul.f32 %v290, %v418
      %v451 = vmul.f32 %v291, %v419
      %v452 = vmul.f32 %v292, %v420
      %v453 = vmul.f32 %v293, %v421
      %v454 = vmul.f32 %v294, %v422
      %v455 = vmul.f32 %v295, %v423
      %v456 = vmul.f32 %v296, %v424
      %v457 = vmul.f32 %v297, %v425
      %v458 = vmul.f32 %v298, %v426
      %v459 = vmul.f32 %v299, %v427
      %v460 = vmul.f32 %v300, %v428
      %v461 = vmul.f32 %v301, %v429
      %v462 = vmul.f32 %v302, %v430
      %v463 = vmul.f32 %v303, %v431
      %v464 = vmul.f32 %v304, %v432
      %v465 = vmul.f32 %v305, %v433
      %v466 = vmul.f32 %v306, %v434
      %v467 = vmul.f32 %v307, %v435
      %v468 = vmul.f32 %v308, %v436
      %v469 = vmul.f32 %v309, %v437
      %v470 = vmul.f32 %v310, %v438
      %v471 = vmul.f32 %v311, %v439
      %v472 = vmul.f32 %v312, %v440
      %v473 = vmul.f32 %v313, %v441
      %v474 = vmul.f32 %v314, %v442
      %v475 = vmul.f32 %v315, %v443
      %v476 = vmul.f32 %v316, %v444
      %v477 = vmul.f32 %v317, %v445
      %v478 = vmul.f32 %v318, %v446
      %v479 = vmul.f32 %v319, %v447
      %v480 = vmul.f32 %v320, %v448
      %v481 = vmul.f32 %v321, %v449
      %v482 = vld [vmem:[%s207] sm:$0xff]
      %v483 = vld [vmem:[%s207 + $0x8] sm:$0xff]
      %v484 = vld [vmem:[%s207 + $0x10] sm:$0xff]
      %v485 = vld [vmem:[%s207 + $0x18] sm:$0xff]
      %v486 = vld [vmem:[%s207 + $0x20] sm:$0xff]
      %v487 = vld [vmem:[%s207 + $0x28] sm:$0xff]
      %v488 = vld [vmem:[%s207 + $0x30] sm:$0xff]
      %v489 = vld [vmem:[%s207 + $0x38] sm:$0xff]
      %v490 = vld [vmem:[%s207 + $0x40] sm:$0xff]
      %v491 = vld [vmem:[%s207 + $0x48] sm:$0xff]
      %v492 = vld [vmem:[%s207 + $0x50] sm:$0xff]
      %v493 = vld [vmem:[%s207 + $0x58] sm:$0xff]
      %v494 = vld [vmem:[%s207 + $0x60] sm:$0xff]
      %v495 = vld [vmem:[%s207 + $0x68] sm:$0xff]
      %v496 = vld [vmem:[%s207 + $0x70] sm:$0xff]
      %v497 = vld [vmem:[%s207 + $0x78] sm:$0xff]
      %v498 = vld [vmem:[%s207 + $0x80] sm:$0xff]
      %v499 = vld [vmem:[%s207 + $0x88] sm:$0xff]
      %v500 = vld [vmem:[%s207 + $0x90] sm:$0xff]
      %v501 = vld [vmem:[%s207 + $0x98] sm:$0xff]
      %v502 = vld [vmem:[%s207 + $0xa0] sm:$0xff]
      %v503 = vld [vmem:[%s207 + $0xa8] sm:$0xff]
      %v504 = vld [vmem:[%s207 + $0xb0] sm:$0xff]
      %v505 = vld [vmem:[%s207 + $0xb8] sm:$0xff]
      %v506 = vld [vmem:[%s207 + $0xc0] sm:$0xff]
      %v507 = vld [vmem:[%s207 + $0xc8] sm:$0xff]
      %v508 = vld [vmem:[%s207 + $0xd0] sm:$0xff]
      %v509 = vld [vmem:[%s207 + $0xd8] sm:$0xff]
      %v510 = vld [vmem:[%s207 + $0xe0] sm:$0xff]
      %v511 = vld [vmem:[%s207 + $0xe8] sm:$0xff]
      %v512 = vld [vmem:[%s207 + $0xf0] sm:$0xff]
      %v513 = vld [vmem:[%s207 + $0xf8] sm:$0xff]
      %v514 = vadd.f32 %v482, %v450
      %v515 = vadd.f32 %v483, %v451
      %v516 = vadd.f32 %v484, %v452
      %v517 = vadd.f32 %v485, %v453
      %v518 = vadd.f32 %v486, %v454
      %v519 = vadd.f32 %v487, %v455
      %v520 = vadd.f32 %v488, %v456
      %v521 = vadd.f32 %v489, %v457
      %v522 = vadd.f32 %v490, %v458
      %v523 = vadd.f32 %v491, %v459
      %v524 = vadd.f32 %v492, %v460
      %v525 = vadd.f32 %v493, %v461
      %v526 = vadd.f32 %v494, %v462
      %v527 = vadd.f32 %v495, %v463
      %v528 = vadd.f32 %v496, %v464
      %v529 = vadd.f32 %v497, %v465
      %v530 = vadd.f32 %v498, %v466
      %v531 = vadd.f32 %v499, %v467
      %v532 = vadd.f32 %v500, %v468
      %v533 = vadd.f32 %v501, %v469
      %v534 = vadd.f32 %v502, %v470
      %v535 = vadd.f32 %v503, %v471
      %v536 = vadd.f32 %v504, %v472
      %v537 = vadd.f32 %v505, %v473
      %v538 = vadd.f32 %v506, %v474
      %v539 = vadd.f32 %v507, %v475
      %v540 = vadd.f32 %v508, %v476
      %v541 = vadd.f32 %v509, %v477
      %v542 = vadd.f32 %v510, %v478
      %v543 = vadd.f32 %v511, %v479
      %v544 = vadd.f32 %v512, %v480
      %v545 = vadd.f32 %v513, %v481
      %546 = vst [vmem:[%s217] sm:$0xff] %v514
      %547 = vst [vmem:[%s217 + $0x8] sm:$0xff] %v515
      %548 = vst [vmem:[%s217 + $0x10] sm:$0xff] %v516
      %549 = vst [vmem:[%s217 + $0x18] sm:$0xff] %v517
      %550 = vst [vmem:[%s217 + $0x20] sm:$0xff] %v518
      %551 = vst [vmem:[%s217 + $0x28] sm:$0xff] %v519
      %552 = vst [vmem:[%s217 + $0x30] sm:$0xff] %v520
      %553 = vst [vmem:[%s217 + $0x38] sm:$0xff] %v521
      %554 = vst [vmem:[%s217 + $0x40] sm:$0xff] %v522
      %555 = vst [vmem:[%s217 + $0x48] sm:$0xff] %v523
      %556 = vst [vmem:[%s217 + $0x50] sm:$0xff] %v524
      %557 = vst [vmem:[%s217 + $0x58] sm:$0xff] %v525
      %558 = vst [vmem:[%s217 + $0x60] sm:$0xff] %v526
      %559 = vst [vmem:[%s217 + $0x68] sm:$0xff] %v527
      %560 = vst [vmem:[%s217 + $0x70] sm:$0xff] %v528
      %561 = vst [vmem:[%s217 + $0x78] sm:$0xff] %v529
      %562 = vst [vmem:[%s217 + $0x80] sm:$0xff] %v530
      %563 = vst [vmem:[%s217 + $0x88] sm:$0xff] %v531
      %564 = vst [vmem:[%s217 + $0x90] sm:$0xff] %v532
      %565 = vst [vmem:[%s217 + $0x98] sm:$0xff] %v533
      %566 = vst [vmem:[%s217 + $0xa0] sm:$0xff] %v534
      %567 = vst [vmem:[%s217 + $0xa8] sm:$0xff] %v535
      %568 = vst [vmem:[%s217 + $0xb0] sm:$0xff] %v536
      %569 = vst [vmem:[%s217 + $0xb8] sm:$0xff] %v537
      %570 = vst [vmem:[%s217 + $0xc0] sm:$0xff] %v538
      %571 = vst [vmem:[%s217 + $0xc8] sm:$0xff] %v539
      %572 = vst [vmem:[%s217 + $0xd0] sm:$0xff] %v540
      %573 = vst [vmem:[%s217 + $0xd8] sm:$0xff] %v541
      %574 = vst [vmem:[%s217 + $0xe0] sm:$0xff] %v542
      %575 = vst [vmem:[%s217 + $0xe8] sm:$0xff] %v543
      %576 = vst [vmem:[%s217 + $0xf0] sm:$0xff] %v544
      %577 = vst [vmem:[%s217 + $0xf8] sm:$0xff] %v545
      %p578 = scmp.lt.s32.totalorder %s15, 1
      %s579 = scalar_select %p578, %s15, 1
      %s580 = smul.addr %s579, 32
      %s581 = smul.addr %s580, 8
      %s582 = scalar_lea.vmem %s4, %s581
      // Predicated region
      $region37: #{bottleneck_pallas.5} parent=35 // pred_check
        %p583 = pneg %p127
      $region38: #{bottleneck_pallas.5} parent=35 // pred_check_branch
        %585 = sbr.rel (%p583) target = $region40
      $region39: #{bottleneck_pallas.5} parent=35 // pred_region
        _
      $region40: #{bottleneck_pallas.5} parent=35 // pred_fallthru
        _
    $region36: #{bottleneck_pallas.5} parent=5 // pred_fallthru
      _
    %p586 = scmp.le.s32.totalorder 2, %s10
    // Predicated region
    $region41: #{bottleneck_pallas.5} parent=5 // pred_check
      %p587 = pneg %p586
    $region42: #{bottleneck_pallas.5} parent=5 // pred_check_branch
      %589 = sbr.rel (%p587) target = $region44
    $region43: #{bottleneck_pallas.5} parent=5 // pred_region
      %s590 = ssub.s32 %s10, 2
      // Predicated region
      $region45: #{bottleneck_pallas.5} parent=43 // pred_check
        %p591 = pneg %p133
      $region46: #{bottleneck_pallas.5} parent=43 // pred_check_branch
        %593 = sbr.rel (%p591) target = $region48
      $region47: #{bottleneck_pallas.5} parent=43 // pred_region
        %p594 = scmp.lt.s32.totalorder %s16, 1
        %s595 = scalar_select %p594, %s16, 1
        %s596 = smul.addr %s595, 32
        %s597 = smul.addr %s596, 8
        %s598 = scalar_lea.vmem %s4, %s597
      $region48: #{bottleneck_pallas.5} parent=43 // pred_fallthru
        _
    $region44: #{bottleneck_pallas.5} parent=5 // pred_fallthru
      _
  $region6: #{bottleneck_pallas.5} parent=0 // loop_footer
    %s14 = sadd.s32 1, %s10
  $region7: #{bottleneck_pallas.5} parent=0 // loop_footer_branch
    %9 = sbr.rel target = $region3
  $region8: #{bottleneck_pallas.5} parent=0 // loop_exit
    _

// kernel: bottleneck_pallas.3
$region0: #{bottleneck_pallas.3}
  #allocation0 [shape = 'u32[]', space=smem, size = 0x4, offset = 0x4, fixed_abs, tag = 'smem constant byte address 0x4 - core index']
  #allocation1 [shape = 'u32[72,128]{1,0:T(1,128)}', space=vmem, size = 0x9000, scoped, tag = 'internal scratch']
  %s0 = inlined_call_operand.vmem [shape: f32[2,18,18,128], index: 0, kind: input, shape index: {}]
  %s1 = inlined_call_operand.vmem [shape: f32[3,3,128,128], index: 1, kind: input, shape index: {}]
  %s2 = inlined_call_operand.vmem [shape: f32[2,16,16,128], index: 2, kind: output, shape index: {0}]
  %s3 = inlined_call_operand.vmem [shape: f32[2,2,128], index: 3, kind: output, shape index: {1}]
  %4 = xla_tuple %s2, %s3
  %s5 = sld [smem:[#allocation0]]
  $region49: #{bottleneck_pallas.3} parent=0
    _
  %s7 = ssub.s32 1, %s5
  %s8 = scalar_select 0, %s7, %s5
  loop: start=0, step=1, limit=4
  $region2: #{bottleneck_pallas.3} parent=0 // loop_pre_header
    _
  $region3: #{bottleneck_pallas.3} parent=0 // loop_header
    %s10 = sphi 0, %s14
    %p11 = scmp.ge.s32.totalorder %s10, 4
    %s20 = sphi 0, %s22
    %s23 = sphi 0, %s20
    %s24 = sphi 0, %s23
    %s40 = sphi 0, %s24
    %s44 = sphi 0, %s44
    %s46 = sphi 0, %s44
    %s47 = sphi 0, %s46
    %s61 = sphi 0, %s47
    %s67 = sphi 0, %s69
    %s70 = sphi 0, %s67
    %s71 = sphi 0, %s70
    %s87 = sphi 0, %s71
    %s93 = sphi 0, %s95
    %s96 = sphi 0, %s93
    %s97 = sphi 0, %s96
    %s113 = sphi 0, %s97
  $region4: #{bottleneck_pallas.3} parent=0 // loop_header_branch
    %13 = sbr.rel (%p11) target = $region8
  $region5: #{bottleneck_pallas.3} parent=0 // loop_body
    %s15 = ssub.s32 %s10, 1
    %s16 = ssub.s32 %s10, 2
    %s17 = sadd.s32 %s10, 1
    %s18 = ssub.s32 %s10, %s17
    %p19 = scmp.eq.s32.totalorder %s18, 0
    %s21 = sadd.s32 %s20, 1
    %s22 = scalar_select %p19, %s20, %s21
    %p25 = pneg %p19
    %p26 = scmp.eq.s32.totalorder %s10, 1
    %p27 = por %p25, %p26
    %p28 = scmp.ne.s32.totalorder %s20, %s23
    %p29 = scmp.eq.s32.totalorder %s10, 0
    %p30 = por %p28, %p29
    %p31 = scmp.ne.s32.totalorder %s20, %s23
    %p32 = scmp.eq.s32.totalorder %s15, 1
    %p33 = por %p31, %p32
    %p34 = scmp.ne.s32.totalorder %s23, %s24
    %p35 = scmp.eq.s32.totalorder %s15, 0
    %p36 = por %p34, %p35
    %p37 = scmp.ne.s32.totalorder %s23, %s24
    %p38 = scmp.eq.s32.totalorder %s16, 1
    %p39 = por %p37, %p38
    %p41 = scmp.ne.s32.totalorder %s24, %s40
    %p42 = scmp.eq.s32.totalorder %s16, 0
    %p43 = por %p41, %p42
    %s45 = sadd.s32 %s44, 1
    %p48 = scmp.eq.s32.totalorder %s10, 1
    %p49 = scmp.ne.s32.totalorder %s44, %s46
    %p50 = scmp.eq.s32.totalorder %s10, 0
    %p51 = por %p49, %p50
    %p52 = scmp.ne.s32.totalorder %s44, %s46
    %p53 = scmp.eq.s32.totalorder %s15, 1
    %p54 = por %p52, %p53
    %p55 = scmp.ne.s32.totalorder %s46, %s47
    %p56 = scmp.eq.s32.totalorder %s15, 0
    %p57 = por %p55, %p56
    %p58 = scmp.ne.s32.totalorder %s46, %s47
    %p59 = scmp.eq.s32.totalorder %s16, 1
    %p60 = por %p58, %p59
    %p62 = scmp.ne.s32.totalorder %s47, %s61
    %p63 = scmp.eq.s32.totalorder %s16, 0
    %p64 = por %p62, %p63
    %s65 = ssub.s32 %s10, %s17
    %p66 = scmp.eq.s32.totalorder %s65, 0
    %s68 = sadd.s32 %s67, 1
    %s69 = scalar_select %p66, %s67, %s68
    %p72 = pneg %p66
    %p73 = scmp.eq.s32.totalorder %s10, 1
    %p74 = por %p72, %p73
    %p75 = scmp.ne.s32.totalorder %s67, %s70
    %p76 = scmp.eq.s32.totalorder %s10, 0
    %p77 = por %p75, %p76
    %p78 = scmp.ne.s32.totalorder %s67, %s70
    %p79 = scmp.eq.s32.totalorder %s15, 1
    %p80 = por %p78, %p79
    %p81 = scmp.ne.s32.totalorder %s70, %s71
    %p82 = scmp.eq.s32.totalorder %s15, 0
    %p83 = por %p81, %p82
    %p84 = scmp.ne.s32.totalorder %s70, %s71
    %p85 = scmp.eq.s32.totalorder %s16, 1
    %p86 = por %p84, %p85
    %p88 = scmp.ne.s32.totalorder %s71, %s87
    %p89 = scmp.eq.s32.totalorder %s16, 0
    %p90 = por %p88, %p89
    %s91 = ssub.s32 %s10, %s17
    %p92 = scmp.eq.s32.totalorder %s91, 0
    %s94 = sadd.s32 %s93, 1
    %s95 = scalar_select %p92, %s93, %s94
    %p98 = pneg %p92
    %p99 = scmp.eq.s32.totalorder %s10, 1
    %p100 = por %p98, %p99
    %p101 = scmp.ne.s32.totalorder %s93, %s96
    %p102 = scmp.eq.s32.totalorder %s10, 0
    %p103 = por %p101, %p102
    %p104 = scmp.ne.s32.totalorder %s93, %s96
    %p105 = scmp.eq.s32.totalorder %s15, 1
    %p106 = por %p104, %p105
    %p107 = scmp.ne.s32.totalorder %s96, %s97
    %p108 = scmp.eq.s32.totalorder %s15, 0
    %p109 = por %p107, %p108
    %p110 = scmp.ne.s32.totalorder %s96, %s97
    %p111 = scmp.eq.s32.totalorder %s16, 1
    %p112 = por %p110, %p111
    %p114 = scmp.ne.s32.totalorder %s97, %s113
    %p115 = scmp.eq.s32.totalorder %s16, 0
    %p116 = por %p114, %p115
    %p117 = scmp.le.s32.totalorder 1, %s10
    %p118 = scmp.lt.s32.totalorder %s10, 3
    %p119 = pnand %p117, %p118
    %p120 = pneg %p119
    // Predicated region
    $region9: #{bottleneck_pallas.3} parent=5 // pred_check
      _
    $region10: #{bottleneck_pallas.3} parent=5 // pred_check_branch
      %122 = sbr.rel (%p119) target = $region12
    $region11: #{bottleneck_pallas.3} parent=5 // pred_region
      %s123 = ssub.s32 %s10, 1
      // Predicated region
      $region13: #{bottleneck_pallas.3} parent=11 // pred_check
        %p124 = pneg %p57
      $region14: #{bottleneck_pallas.3} parent=11 // pred_check_branch
        %126 = sbr.rel (%p124) target = $region16
      $region15: #{bottleneck_pallas.3} parent=11 // pred_region
        _
      $region16: #{bottleneck_pallas.3} parent=11 // pred_fallthru
        _
    $region12: #{bottleneck_pallas.3} parent=5 // pred_fallthru
      _
    %p127 = scmp.lt.s32.totalorder %s10, 2
    // Predicated region
    $region17: #{bottleneck_pallas.3} parent=5 // pred_check
      %p128 = pneg %p127
    $region18: #{bottleneck_pallas.3} parent=5 // pred_check_branch
      %130 = sbr.rel (%p128) target = $region20
    $region19: #{bottleneck_pallas.3} parent=5 // pred_region
      // Predicated region
      $region21: #{bottleneck_pallas.3} parent=19 // pred_check
        %p131 = pneg %p30
      $region22: #{bottleneck_pallas.3} parent=19 // pred_check_branch
        %133 = sbr.rel (%p131) target = $region24
      $region23: #{bottleneck_pallas.3} parent=19 // pred_region
        %p134 = scmp.lt.s32.totalorder %s10, 1
        %s135 = scalar_select %p134, %s10, 1
        %s136 = smul.addr %s135, 54
        %s137 = smul.addr %s136, 8
        %s138 = scalar_lea.vmem %s0, %s137
      $region24: #{bottleneck_pallas.3} parent=19 // pred_fallthru
        _
    $region20: #{bottleneck_pallas.3} parent=5 // pred_fallthru
      _
    %p139 = scmp.le.s32.totalorder 1, %s10
    %p140 = scmp.lt.s32.totalorder %s10, 3
    %p141 = pnand %p139, %p140
    %p142 = pneg %p141
    // Predicated region
    $region25: #{bottleneck_pallas.3} parent=5 // pred_check
      _
    $region26: #{bottleneck_pallas.3} parent=5 // pred_check_branch
      %144 = sbr.rel (%p141) target = $region28
    $region27: #{bottleneck_pallas.3} parent=5 // pred_region
      %s145 = ssub.s32 %s10, 1
      %p146 = scmp.lt.s32.totalorder %s15, 1
      %s147 = scalar_select %p146, %s15, 1
      %s148 = smul.addr %s147, 54
      %s149 = smul.addr %s148, 8
      %s150 = scalar_lea.vmem %s0, %s149
      %p151 = pneg %p36
      %p152 = pneg %p33
      %p153 = pneg %p57
      %p154 = pneg %p54
      %p155 = pneg %p83
      %p156 = pneg %p80
      %p157 = scmp.lt.s32.totalorder %s15, 1
      %s158 = scalar_select %p157, %s15, 1
      %s159 = smul.addr %s158, 32
      %s160 = smul.addr %s159, 8
      %s161 = scalar_lea.vmem %s2, %s160
      %p162 = pneg %p109
      %p163 = pneg %p106
      %p164 = scmp.lt.s32.totalorder %s15, 1
      %s165 = scalar_select %p164, %s15, 1
      %s166 = smul.addr %s165, 2
      %s167 = scalar_lea.vmem %s3, %s166
      %p168 = scmp.lt.s32.totalorder %s15, 1
      %s169 = scalar_select %p168, %s15, 1
      %s170 = smul.addr %s169, 54
      %s171 = smul.addr %s170, 8
      %s172 = scalar_lea.vmem %s0, %s171
      %p173 = scmp.lt.s32.totalorder %s15, 1
      %s174 = scalar_select %p173, %s15, 1
      %s175 = smul.addr %s174, 32
      %s176 = smul.addr %s175, 8
      %s177 = scalar_lea.vmem %s2, %s176
      %p178 = scmp.lt.s32.totalorder %s15, 1
      %s179 = scalar_select %p178, %s15, 1
      %s180 = smul.addr %s179, 2
      %s181 = scalar_lea.vmem %s3, %s180
      %v182 = vld [vmem:[%s172] sm:$0xff]
      %v183 = vld [vmem:[%s172 + $0x8] sm:$0xff]
      %v184 = vld [vmem:[%s172 + $0x18] sm:$0xff]
      %v185 = vld [vmem:[%s172 + $0x20] sm:$0xff]
      %v186 = vld [vmem:[%s172 + $0x30] sm:$0xff]
      %v187 = vld [vmem:[%s172 + $0x38] sm:$0xff]
      %v188 = vld [vmem:[%s172 + $0x48] sm:$0xff]
      %v189 = vld [vmem:[%s172 + $0x50] sm:$0xff]
      %v190 = vld [vmem:[%s172 + $0x60] sm:$0xff]
      %v191 = vld [vmem:[%s172 + $0x68] sm:$0xff]
      %v192 = vld [vmem:[%s172 + $0x78] sm:$0xff]
      %v193 = vld [vmem:[%s172 + $0x80] sm:$0xff]
      %v194 = vld [vmem:[%s172 + $0x90] sm:$0xff]
      %v195 = vld [vmem:[%s172 + $0x98] sm:$0xff]
      %v196 = vld [vmem:[%s172 + $0xa8] sm:$0xff]
      %v197 = vld [vmem:[%s172 + $0xb0] sm:$0xff]
      %v198 = vld [vmem:[%s172 + $0xc0] sm:$0xff]
      %v199 = vld [vmem:[%s172 + $0xc8] sm:$0xff]
      %v200 = vld [vmem:[%s172 + $0xd8] sm:$0xff]
      %v201 = vld [vmem:[%s172 + $0xe0] sm:$0xff]
      %v202 = vld [vmem:[%s172 + $0xf0] sm:$0xff]
      %v203 = vld [vmem:[%s172 + $0xf8] sm:$0xff]
      %v204 = vld [vmem:[%s172 + $0x108] sm:$0xff]
      %v205 = vld [vmem:[%s172 + $0x110] sm:$0xff]
      %v206 = vld [vmem:[%s172 + $0x120] sm:$0xff]
      %v207 = vld [vmem:[%s172 + $0x128] sm:$0xff]
      %v208 = vld [vmem:[%s172 + $0x138] sm:$0xff]
      %v209 = vld [vmem:[%s172 + $0x140] sm:$0xff]
      %v210 = vld [vmem:[%s172 + $0x150] sm:$0xff]
      %v211 = vld [vmem:[%s172 + $0x158] sm:$0xff]
      %v212 = vld [vmem:[%s172 + $0x168] sm:$0xff]
      %v213 = vld [vmem:[%s172 + $0x170] sm:$0xff]
      %v214 = vld [vmem:[%s1] sm:$0xff]
      %v215 = vld [vmem:[%s1 + $0x8] sm:$0xff]
      %v216 = vld [vmem:[%s1 + $0x10] sm:$0xff]
      %v217 = vld [vmem:[%s1 + $0x18] sm:$0xff]
      %v218 = vld [vmem:[%s1 + $0x20] sm:$0xff]
      %v219 = vld [vmem:[%s1 + $0x28] sm:$0xff]
      %v220 = vld [vmem:[%s1 + $0x30] sm:$0xff]
      %v221 = vld [vmem:[%s1 + $0x38] sm:$0xff]
      %v222 = vld [vmem:[%s1 + $0x40] sm:$0xff]
      %v223 = vld [vmem:[%s1 + $0x48] sm:$0xff]
      %v224 = vld [vmem:[%s1 + $0x50] sm:$0xff]
      %v225 = vld [vmem:[%s1 + $0x58] sm:$0xff]
      %v226 = vld [vmem:[%s1 + $0x60] sm:$0xff]
      %v227 = vld [vmem:[%s1 + $0x68] sm:$0xff]
      %v228 = vld [vmem:[%s1 + $0x70] sm:$0xff]
      %v229 = vld [vmem:[%s1 + $0x78] sm:$0xff]
      %v230 = vld [vmem:[%s172 + $0x1] sm:$0xff]
      %v231 = vld [vmem:[%s172 + $0x9] sm:$0xff]
      %v232 = vld [vmem:[%s172 + $0x19] sm:$0xff]
      %v233 = vld [vmem:[%s172 + $0x21] sm:$0xff]
      %v234 = vld [vmem:[%s172 + $0x31] sm:$0xff]
      %v235 = vld [vmem:[%s172 + $0x39] sm:$0xff]
      %v236 = vld [vmem:[%s172 + $0x49] sm:$0xff]
      %v237 = vld [vmem:[%s172 + $0x51] sm:$0xff]
      %v238 = vld [vmem:[%s172 + $0x61] sm:$0xff]
      %v239 = vld [vmem:[%s172 + $0x69] sm:$0xff]
      %v240 = vld [vmem:[%s172 + $0x79] sm:$0xff]
      %v241 = vld [vmem:[%s172 + $0x81] sm:$0xff]
      %v242 = vld [vmem:[%s172 + $0x91] sm:$0xff]
      %v243 = vld [vmem:[%s172 + $0x99] sm:$0xff]
      %v244 = vld [vmem:[%s172 + $0xa9] sm:$0xff]
      %v245 = vld [vmem:[%s172 + $0xb1] sm:$0xff]
      %v246 = vld [vmem:[%s172 + $0xc1] sm:$0xff]
      %v247 = vld [vmem:[%s172 + $0xc9] sm:$0xff]
      %v248 = vld [vmem:[%s172 + $0xd9] sm:$0xff]
      %v249 = vld [vmem:[%s172 + $0xe1] sm:$0xff]
      %v250 = vld [vmem:[%s172 + $0xf1] sm:$0xff]
      %v251 = vld [vmem:[%s172 + $0xf9] sm:$0xff]
      %v252 = vld [vmem:[%s172 + $0x109] sm:$0xff]
      %v253 = vld [vmem:[%s172 + $0x111] sm:$0xff]
      %v254 = vld [vmem:[%s172 + $0x121] sm:$0xff]
      %v255 = vld [vmem:[%s172 + $0x129] sm:$0xff]
      %v256 = vld [vmem:[%s172 + $0x139] sm:$0xff]
      %v257 = vld [vmem:[%s172 + $0x141] sm:$0xff]
      %v258 = vld [vmem:[%s172 + $0x151] sm:$0xff]
      %v259 = vld [vmem:[%s172 + $0x159] sm:$0xff]
      %v260 = vld [vmem:[%s172 + $0x169] sm:$0xff]
      %v261 = vld [vmem:[%s172 + $0x171] sm:$0xff]
      %s262 = scalar_lea.vmem %s1, 128
      %v263 = vld [vmem:[%s262] sm:$0xff]
      %v264 = vld [vmem:[%s262 + $0x8] sm:$0xff]
      %v265 = vld [vmem:[%s262 + $0x10] sm:$0xff]
      %v266 = vld [vmem:[%s262 + $0x18] sm:$0xff]
      %v267 = vld [vmem:[%s262 + $0x20] sm:$0xff]
      %v268 = vld [vmem:[%s262 + $0x28] sm:$0xff]
      %v269 = vld [vmem:[%s262 + $0x30] sm:$0xff]
      %v270 = vld [vmem:[%s262 + $0x38] sm:$0xff]
      %v271 = vld [vmem:[%s262 + $0x40] sm:$0xff]
      %v272 = vld [vmem:[%s262 + $0x48] sm:$0xff]
      %v273 = vld [vmem:[%s262 + $0x50] sm:$0xff]
      %v274 = vld [vmem:[%s262 + $0x58] sm:$0xff]
      %v275 = vld [vmem:[%s262 + $0x60] sm:$0xff]
      %v276 = vld [vmem:[%s262 + $0x68] sm:$0xff]
      %v277 = vld [vmem:[%s262 + $0x70] sm:$0xff]
      %v278 = vld [vmem:[%s262 + $0x78] sm:$0xff]
      %279 = vmatpush.msra.mxu0 %v278
      %280 = vmatpush.msra.mxu0 %v277
      %281 = vmatpush.msra.mxu0 %v276
      %282 = vmatpush.msra.mxu0 %v275
      %283 = vmatpush.msra.mxu0 %v274
      %284 = vmatpush.msra.mxu0 %v273
      %285 = vmatpush.msra.mxu0 %v272
      %286 = vmatpush.msra.mxu0 %v271
      %287 = vmatpush.msra.mxu0 %v270
      %288 = vmatpush.msra.mxu0 %v269
      %289 = vmatpush.msra.mxu0 %v268
      %290 = vmatpush.msra.mxu0 %v267
      %291 = vmatpush.msra.mxu0 %v266
      %292 = vmatpush.msra.mxu0 %v265
      %293 = vmatpush.msra.mxu0 %v264
      %294 = vmatpush.msra.mxu0 %v263
      %295 = vmatmul.f32.gmra.mxu0 %v230
      %v296 = vpop.f32.mrf.mxu0
      %v297 = vadd.f32 0.0, %v296
      %298 = vmatmul.f32.gmra.mxu0 %v231
      %v299 = vpop.f32.mrf.mxu0
      %v300 = vadd.f32 0.0, %v299
      %301 = vmatmul.f32.gmra.mxu0 %v232
      %v302 = vpop.f32.mrf.mxu0
      %v303 = vadd.f32 0.0, %v302
      %304 = vmatmul.f32.gmra.mxu0 %v233
      %v305 = vpop.f32.mrf.mxu0
      %v306 = vadd.f32 0.0, %v305
      %307 = vmatmul.f32.gmra.mxu0 %v234
      %v308 = vpop.f32.mrf.mxu0
      %v309 = vadd.f32 0.0, %v308
      %310 = vmatmul.f32.gmra.mxu0 %v235
      %v311 = vpop.f32.mrf.mxu0
      %v312 = vadd.f32 0.0, %v311
      %313 = vmatmul.f32.gmra.mxu0 %v236
      %v314 = vpop.f32.mrf.mxu0
      %v315 = vadd.f32 0.0, %v314
      %316 = vmatmul.f32.gmra.mxu0 %v237
      %v317 = vpop.f32.mrf.mxu0
      %v318 = vadd.f32 0.0, %v317
      %319 = vmatmul.f32.gmra.mxu0 %v238
      %v320 = vpop.f32.mrf.mxu0
      %v321 = vadd.f32 0.0, %v320
      %322 = vmatmul.f32.gmra.mxu0 %v239
      %v323 = vpop.f32.mrf.mxu0
      %v324 = vadd.f32 0.0, %v323
      %325 = vmatmul.f32.gmra.mxu0 %v240
      %v326 = vpop.f32.mrf.mxu0
      %v327 = vadd.f32 0.0, %v326
      %328 = vmatmul.f32.gmra.mxu0 %v241
      %v329 = vpop.f32.mrf.mxu0
      %v330 = vadd.f32 0.0, %v329
      %331 = vmatmul.f32.gmra.mxu0 %v242
      %v332 = vpop.f32.mrf.mxu0
      %v333 = vadd.f32 0.0, %v332
      %334 = vmatmul.f32.gmra.mxu0 %v243
      %v335 = vpop.f32.mrf.mxu0
      %v336 = vadd.f32 0.0, %v335
      %337 = vmatmul.f32.gmra.mxu0 %v244
      %v338 = vpop.f32.mrf.mxu0
      %v339 = vadd.f32 0.0, %v338
      %340 = vmatmul.f32.gmra.mxu0 %v245
      %v341 = vpop.f32.mrf.mxu0
      %v342 = vadd.f32 0.0, %v341
      %343 = vmatmul.f32.gmra.mxu0 %v246
      %v344 = vpop.f32.mrf.mxu0
      %v345 = vadd.f32 0.0, %v344
      %346 = vmatmul.f32.gmra.mxu0 %v247
      %v347 = vpop.f32.mrf.mxu0
      %v348 = vadd.f32 0.0, %v347
      %349 = vmatmul.f32.gmra.mxu0 %v248
      %v350 = vpop.f32.mrf.mxu0
      %v351 = vadd.f32 0.0, %v350
      %352 = vmatmul.f32.gmra.mxu0 %v249
      %v353 = vpop.f32.mrf.mxu0
      %v354 = vadd.f32 0.0, %v353
      %355 = vmatmul.f32.gmra.mxu0 %v250
      %v356 = vpop.f32.mrf.mxu0
      %v357 = vadd.f32 0.0, %v356
      %358 = vmatmul.f32.gmra.mxu0 %v251
      %v359 = vpop.f32.mrf.mxu0
      %v360 = vadd.f32 0.0, %v359
      %361 = vmatmul.f32.gmra.mxu0 %v252
      %v362 = vpop.f32.mrf.mxu0
      %v363 = vadd.f32 0.0, %v362
      %364 = vmatmul.f32.gmra.mxu0 %v253
      %v365 = vpop.f32.mrf.mxu0
      %v366 = vadd.f32 0.0, %v365
      %367 = vmatmul.f32.gmra.mxu0 %v254
      %v368 = vpop.f32.mrf.mxu0
      %v369 = vadd.f32 0.0, %v368
      %370 = vmatmul.f32.gmra.mxu0 %v255
      %v371 = vpop.f32.mrf.mxu0
      %v372 = vadd.f32 0.0, %v371
      %373 = vmatmul.f32.gmra.mxu0 %v256
      %v374 = vpop.f32.mrf.mxu0
      %v375 = vadd.f32 0.0, %v374
      %376 = vmatmul.f32.gmra.mxu0 %v257
      %v377 = vpop.f32.mrf.mxu0
      %v378 = vadd.f32 0.0, %v377
      %379 = vmatmul.f32.gmra.mxu0 %v258
      %v380 = vpop.f32.mrf.mxu0
      %v381 = vadd.f32 0.0, %v380
      %382 = vmatmul.f32.gmra.mxu0 %v259
      %v383 = vpop.f32.mrf.mxu0
      %v384 = vadd.f32 0.0, %v383
      %385 = vmatmul.f32.gmra.mxu0 %v260
      %v386 = vpop.f32.mrf.mxu0
      %v387 = vadd.f32 0.0, %v386
      %388 = vmatmul.f32.gmra.mxu0 %v261
      %v389 = vpop.f32.mrf.mxu0
      %v390 = vadd.f32 0.0, %v389
      %391 = vdwg.mxu0
      %392 = vmatpush.msra.mxu0 %v229
      %393 = vmatpush.msra.mxu0 %v228
      %394 = vmatpush.msra.mxu0 %v227
      %395 = vmatpush.msra.mxu0 %v226
      %396 = vmatpush.msra.mxu0 %v225
      %397 = vmatpush.msra.mxu0 %v224
      %398 = vmatpush.msra.mxu0 %v223
      %399 = vmatpush.msra.mxu0 %v222
      %400 = vmatpush.msra.mxu0 %v221
      %401 = vmatpush.msra.mxu0 %v220
      %402 = vmatpush.msra.mxu0 %v219
      %403 = vmatpush.msra.mxu0 %v218
      %404 = vmatpush.msra.mxu0 %v217
      %405 = vmatpush.msra.mxu0 %v216
      %406 = vmatpush.msra.mxu0 %v215
      %407 = vmatpush.msra.mxu0 %v214
      %408 = vmatmul.f32.gmra.mxu0 %v182
      %v409 = vpop.f32.mrf.mxu0
      %v410 = vadd.f32 %v297, %v409
      %411 = vmatmul.f32.gmra.mxu0 %v183
      %v412 = vpop.f32.mrf.mxu0
      %v413 = vadd.f32 %v300, %v412
      %414 = vmatmul.f32.gmra.mxu0 %v184
      %v415 = vpop.f32.mrf.mxu0
      %v416 = vadd.f32 %v303, %v415
      %417 = vmatmul.f32.gmra.mxu0 %v185
      %v418 = vpop.f32.mrf.mxu0
      %v419 = vadd.f32 %v306, %v418
      %420 = vmatmul.f32.gmra.mxu0 %v186
      %v421 = vpop.f32.mrf.mxu0
      %v422 = vadd.f32 %v309, %v421
      %423 = vmatmul.f32.gmra.mxu0 %v187
      %v424 = vpop.f32.mrf.mxu0
      %v425 = vadd.f32 %v312, %v424
      %426 = vmatmul.f32.gmra.mxu0 %v188
      %v427 = vpop.f32.mrf.mxu0
      %v428 = vadd.f32 %v315, %v427
      %429 = vmatmul.f32.gmra.mxu0 %v189
      %v430 = vpop.f32.mrf.mxu0
      %v431 = vadd.f32 %v318, %v430
      %432 = vmatmul.f32.gmra.mxu0 %v190
      %v433 = vpop.f32.mrf.mxu0
      %v434 = vadd.f32 %v321, %v433
      %435 = vmatmul.f32.gmra.mxu0 %v191
      %v436 = vpop.f32.mrf.mxu0
      %v437 = vadd.f32 %v324, %v436
      %438 = vmatmul.f32.gmra.mxu0 %v192
      %v439 = vpop.f32.mrf.mxu0
      %v440 = vadd.f32 %v327, %v439
      %441 = vmatmul.f32.gmra.mxu0 %v193
      %v442 = vpop.f32.mrf.mxu0
      %v443 = vadd.f32 %v330, %v442
      %444 = vmatmul.f32.gmra.mxu0 %v194
      %v445 = vpop.f32.mrf.mxu0
      %v446 = vadd.f32 %v333, %v445
      %447 = vmatmul.f32.gmra.mxu0 %v195
      %v448 = vpop.f32.mrf.mxu0
      %v449 = vadd.f32 %v336, %v448
      %450 = vmatmul.f32.gmra.mxu0 %v196
      %v451 = vpop.f32.mrf.mxu0
      %v452 = vadd.f32 %v339, %v451
      %453 = vmatmul.f32.gmra.mxu0 %v197
      %v454 = vpop.f32.mrf.mxu0
      %v455 = vadd.f32 %v342, %v454
      %456 = vmatmul.f32.gmra.mxu0 %v198
      %v457 = vpop.f32.mrf.mxu0
      %v458 = vadd.f32 %v345, %v457
      %459 = vmatmul.f32.gmra.mxu0 %v199
      %v460 = vpop.f32.mrf.mxu0
      %v461 = vadd.f32 %v348, %v460
      %462 = vmatmul.f32.gmra.mxu0 %v200
      %v463 = vpop.f32.mrf.mxu0
      %v464 = vadd.f32 %v351, %v463
      %465 = vmatmul.f32.gmra.mxu0 %v201
      %v466 = vpop.f32.mrf.mxu0
      %v467 = vadd.f32 %v354, %v466
      %468 = vmatmul.f32.gmra.mxu0 %v202
      %v469 = vpop.f32.mrf.mxu0
      %v470 = vadd.f32 %v357, %v469
      %471 = vmatmul.f32.gmra.mxu0 %v203
      %v472 = vpop.f32.mrf.mxu0
      %v473 = vadd.f32 %v360, %v472
      %474 = vmatmul.f32.gmra.mxu0 %v204
      %v475 = vpop.f32.mrf.mxu0
      %v476 = vadd.f32 %v363, %v475
      %477 = vmatmul.f32.gmra.mxu0 %v205
      %v478 = vpop.f32.mrf.mxu0
      %v479 = vadd.f32 %v366, %v478
      %480 = vmatmul.f32.gmra.mxu0 %v206
      %v481 = vpop.f32.mrf.mxu0
      %v482 = vadd.f32 %v369, %v481
      %483 = vmatmul.f32.gmra.mxu0 %v207
      %v484 = vpop.f32.mrf.mxu0
      %v485 = vadd.f32 %v372, %v484
      %486 = vmatmul.f32.gmra.mxu0 %v208
      %v487 = vpop.f32.mrf.mxu0
      %v488 = vadd.f32 %v375, %v487
      %489 = vmatmul.f32.gmra.mxu0 %v209
      %v490 = vpop.f32.mrf.mxu0
      %v491 = vadd.f32 %v378, %v490
      %492 = vmatmul.f32.gmra.mxu0 %v210
      %v493 = vpop.f32.mrf.mxu0
      %v494 = vadd.f32 %v381, %v493
      %495 = vmatmul.f32.gmra.mxu0 %v211
      %v496 = vpop.f32.mrf.mxu0
      %v497 = vadd.f32 %v384, %v496
      %498 = vmatmul.f32.gmra.mxu0 %v212
      %v499 = vpop.f32.mrf.mxu0
      %v500 = vadd.f32 %v387, %v499
      %501 = vmatmul.f32.gmra.mxu0 %v213
      %v502 = vpop.f32.mrf.mxu0
      %v503 = vadd.f32 %v390, %v502
      %504 = vdwg.mxu0
      %v505 = vld [vmem:[%s172 + $0x2] sm:$0xff]
      %v506 = vld [vmem:[%s172 + $0xa] sm:$0xff]
      %v507 = vld [vmem:[%s172 + $0x1a] sm:$0xff]
      %v508 = vld [vmem:[%s172 + $0x22] sm:$0xff]
      %v509 = vld [vmem:[%s172 + $0x32] sm:$0xff]
      %v510 = vld [vmem:[%s172 + $0x3a] sm:$0xff]
      %v511 = vld [vmem:[%s172 + $0x4a] sm:$0xff]
      %v512 = vld [vmem:[%s172 + $0x52] sm:$0xff]
      %v513 = vld [vmem:[%s172 + $0x62] sm:$0xff]
      %v514 = vld [vmem:[%s172 + $0x6a] sm:$0xff]
      %v515 = vld [vmem:[%s172 + $0x7a] sm:$0xff]
      %v516 = vld [vmem:[%s172 + $0x82] sm:$0xff]
      %v517 = vld [vmem:[%s172 + $0x92] sm:$0xff]
      %v518 = vld [vmem:[%s172 + $0x9a] sm:$0xff]
      %v519 = vld [vmem:[%s172 + $0xaa] sm:$0xff]
      %v520 = vld [vmem:[%s172 + $0xb2] sm:$0xff]
      %v521 = vld [vmem:[%s172 + $0xc2] sm:$0xff]
      %v522 = vld [vmem:[%s172 + $0xca] sm:$0xff]
      %v523 = vld [vmem:[%s172 + $0xda] sm:$0xff]
      %v524 = vld [vmem:[%s172 + $0xe2] sm:$0xff]
      %v525 = vld [vmem:[%s172 + $0xf2] sm:$0xff]
      %v526 = vld [vmem:[%s172 + $0xfa] sm:$0xff]
      %v527 = vld [vmem:[%s172 + $0x10a] sm:$0xff]
      %v528 = vld [vmem:[%s172 + $0x112] sm:$0xff]
      %v529 = vld [vmem:[%s172 + $0x122] sm:$0xff]
      %v530 = vld [vmem:[%s172 + $0x12a] sm:$0xff]
      %v531 = vld [vmem:[%s172 + $0x13a] sm:$0xff]
      %v532 = vld [vmem:[%s172 + $0x142] sm:$0xff]
      %v533 = vld [vmem:[%s172 + $0x152] sm:$0xff]
      %v534 = vld [vmem:[%s172 + $0x15a] sm:$0xff]
      %v535 = vld [vmem:[%s172 + $0x16a] sm:$0xff]
      %v536 = vld [vmem:[%s172 + $0x172] sm:$0xff]
      %s537 = scalar_lea.vmem %s1, 256
      %v538 = vld [vmem:[%s537] sm:$0xff]
      %v539 = vld [vmem:[%s537 + $0x8] sm:$0xff]
      %v540 = vld [vmem:[%s537 + $0x10] sm:$0xff]
      %v541 = vld [vmem:[%s537 + $0x18] sm:$0xff]
      %v542 = vld [vmem:[%s537 + $0x20] sm:$0xff]
      %v543 = vld [vmem:[%s537 + $0x28] sm:$0xff]
      %v544 = vld [vmem:[%s537 + $0x30] sm:$0xff]
      %v545 = vld [vmem:[%s537 + $0x38] sm:$0xff]
      %v546 = vld [vmem:[%s537 + $0x40] sm:$0xff]
      %v547 = vld [vmem:[%s537 + $0x48] sm:$0xff]
      %v548 = vld [vmem:[%s537 + $0x50] sm:$0xff]
      %v549 = vld [vmem:[%s537 + $0x58] sm:$0xff]
      %v550 = vld [vmem:[%s537 + $0x60] sm:$0xff]
      %v551 = vld [vmem:[%s537 + $0x68] sm:$0xff]
      %v552 = vld [vmem:[%s537 + $0x70] sm:$0xff]
      %v553 = vld [vmem:[%s537 + $0x78] sm:$0xff]
      %554 = vmatpush.msra.mxu0 %v553
      %555 = vmatpush.msra.mxu0 %v552
      %556 = vmatpush.msra.mxu0 %v551
      %557 = vmatpush.msra.mxu0 %v550
      %558 = vmatpush.msra.mxu0 %v549
      %559 = vmatpush.msra.mxu0 %v548
      %560 = vmatpush.msra.mxu0 %v547
      %561 = vmatpush.msra.mxu0 %v546
      %562 = vmatpush.msra.mxu0 %v545
      %563 = vmatpush.msra.mxu0 %v544
      %564 = vmatpush.msra.mxu0 %v543
      %565 = vmatpush.msra.mxu0 %v542
      %566 = vmatpush.msra.mxu0 %v541
      %567 = vmatpush.msra.mxu0 %v540
      %568 = vmatpush.msra.mxu0 %v539
      %569 = vmatpush.msra.mxu0 %v538
      %570 = vmatmul.f32.gmra.mxu0 %v505
      %v571 = vpop.f32.mrf.mxu0
      %v572 = vadd.f32 0.0, %v571
      %573 = vmatmul.f32.gmra.mxu0 %v506
      %v574 = vpop.f32.mrf.mxu0
      %v575 = vadd.f32 0.0, %v574
      %576 = vmatmul.f32.gmra.mxu0 %v507
      %v577 = vpop.f32.mrf.mxu0
      %v578 = vadd.f32 0.0, %v577
      %579 = vmatmul.f32.gmra.mxu0 %v508
      %v580 = vpop.f32.mrf.mxu0
      %v581 = vadd.f32 0.0, %v580
      %582 = vmatmul.f32.gmra.mxu0 %v509
      %v583 = vpop.f32.mrf.mxu0
      %v584 = vadd.f32 0.0, %v583
      %585 = vmatmul.f32.gmra.mxu0 %v510
      %v586 = vpop.f32.mrf.mxu0
      %v587 = vadd.f32 0.0, %v586
      %588 = vmatmul.f32.gmra.mxu0 %v511
      %v589 = vpop.f32.mrf.mxu0
      %v590 = vadd.f32 0.0, %v589
      %591 = vmatmul.f32.gmra.mxu0 %v512
      %v592 = vpop.f32.mrf.mxu0
      %v593 = vadd.f32 0.0, %v592
      %594 = vmatmul.f32.gmra.mxu0 %v513
      %v595 = vpop.f32.mrf.mxu0
      %v596 = vadd.f32 0.0, %v595
      %597 = vmatmul.f32.gmra.mxu0 %v514
      %v598 = vpop.f32.mrf.mxu0
      %v599 = vadd.f32 0.0, %v598
      %600 = vmatmul.f32.gmra.mxu0 %v515
      %v601 = vpop.f32.mrf.mxu0
      %v602 = vadd.f32 0.0, %v601
      %603 = vmatmul.f32.gmra.mxu0 %v516
      %v604 = vpop.f32.mrf.mxu0
      %v605 = vadd.f32 0.0, %v604
      %606 = vmatmul.f32.gmra.mxu0 %v517
      %v607 = vpop.f32.mrf.mxu0
      %v608 = vadd.f32 0.0, %v607
      %609 = vmatmul.f32.gmra.mxu0 %v518
      %v610 = vpop.f32.mrf.mxu0
      %v611 = vadd.f32 0.0, %v610
      %612 = vmatmul.f32.gmra.mxu0 %v519
      %v613 = vpop.f32.mrf.mxu0
      %v614 = vadd.f32 0.0, %v613
      %615 = vmatmul.f32.gmra.mxu0 %v520
      %v616 = vpop.f32.mrf.mxu0
      %v617 = vadd.f32 0.0, %v616
      %618 = vmatmul.f32.gmra.mxu0 %v521
      %v619 = vpop.f32.mrf.mxu0
      %v620 = vadd.f32 0.0, %v619
      %621 = vmatmul.f32.gmra.mxu0 %v522
      %v622 = vpop.f32.mrf.mxu0
      %v623 = vadd.f32 0.0, %v622
      %624 = vmatmul.f32.gmra.mxu0 %v523
      %v625 = vpop.f32.mrf.mxu0
      %v626 = vadd.f32 0.0, %v625
      %627 = vmatmul.f32.gmra.mxu0 %v524
      %v628 = vpop.f32.mrf.mxu0
      %v629 = vadd.f32 0.0, %v628
      %630 = vmatmul.f32.gmra.mxu0 %v525
      %v631 = vpop.f32.mrf.mxu0
      %v632 = vadd.f32 0.0, %v631
      %633 = vmatmul.f32.gmra.mxu0 %v526
      %v634 = vpop.f32.mrf.mxu0
      %v635 = vadd.f32 0.0, %v634
      %636 = vmatmul.f32.gmra.mxu0 %v527
      %v637 = vpop.f32.mrf.mxu0
      %v638 = vadd.f32 0.0, %v637
      %639 = vmatmul.f32.gmra.mxu0 %v528
      %v640 = vpop.f32.mrf.mxu0
      %v641 = vadd.f32 0.0, %v640
      %642 = vmatmul.f32.gmra.mxu0 %v529
      %v643 = vpop.f32.mrf.mxu0
      %v644 = vadd.f32 0.0, %v643
      %645 = vmatmul.f32.gmra.mxu0 %v530
      %v646 = vpop.f32.mrf.mxu0
      %v647 = vadd.f32 0.0, %v646
      %648 = vmatmul.f32.gmra.mxu0 %v531
      %v649 = vpop.f32.mrf.mxu0
      %v650 = vadd.f32 0.0, %v649
      %651 = vmatmul.f32.gmra.mxu0 %v532
      %v652 = vpop.f32.mrf.mxu0
      %v653 = vadd.f32 0.0, %v652
      %654 = vmatmul.f32.gmra.mxu0 %v533
      %v655 = vpop.f32.mrf.mxu0
      %v656 = vadd.f32 0.0, %v655
      %657 = vmatmul.f32.gmra.mxu0 %v534
      %v658 = vpop.f32.mrf.mxu0
      %v659 = vadd.f32 0.0, %v658
      %660 = vmatmul.f32.gmra.mxu0 %v535
      %v661 = vpop.f32.mrf.mxu0
      %v662 = vadd.f32 0.0, %v661
      %663 = vmatmul.f32.gmra.mxu0 %v536
      %v664 = vpop.f32.mrf.mxu0
      %v665 = vadd.f32 0.0, %v664
      %666 = vdwg.mxu0
      %v667 = vadd.f32 %v410, %v572
      %v668 = vadd.f32 %v413, %v575
      %v669 = vadd.f32 %v416, %v578
      %v670 = vadd.f32 %v419, %v581
      %v671 = vadd.f32 %v422, %v584
      %v672 = vadd.f32 %v425, %v587
      %v673 = vadd.f32 %v428, %v590
      %v674 = vadd.f32 %v431, %v593
      %v675 = vadd.f32 %v434, %v596
      %v676 = vadd.f32 %v437, %v599
      %v677 = vadd.f32 %v440, %v602
      %v678 = vadd.f32 %v443, %v605
      %v679 = vadd.f32 %v446, %v608
      %v680 = vadd.f32 %v449, %v611
      %v681 = vadd.f32 %v452, %v614
      %v682 = vadd.f32 %v455, %v617
      %v683 = vadd.f32 %v458, %v620
      %v684 = vadd.f32 %v461, %v623
      %v685 = vadd.f32 %v464, %v626
      %v686 = vadd.f32 %v467, %v629
      %v687 = vadd.f32 %v470, %v632
      %v688 = vadd.f32 %v473, %v635
      %v689 = vadd.f32 %v476, %v638
      %v690 = vadd.f32 %v479, %v641
      %v691 = vadd.f32 %v482, %v644
      %v692 = vadd.f32 %v485, %v647
      %v693 = vadd.f32 %v488, %v650
      %v694 = vadd.f32 %v491, %v653
      %v695 = vadd.f32 %v494, %v656
      %v696 = vadd.f32 %v497, %v659
      %v697 = vadd.f32 %v500, %v662
      %v698 = vadd.f32 %v503, %v665
      %s699 = scalar_lea.vmem %s172, 24
      %v700 = vld [vmem:[%s699] sm:$0xff]
      %v701 = vld [vmem:[%s699 + $0x8] sm:$0xff]
      %v702 = vld [vmem:[%s699 + $0x18] sm:$0xff]
      %v703 = vld [vmem:[%s699 + $0x20] sm:$0xff]
      %v704 = vld [vmem:[%s699 + $0x30] sm:$0xff]
      %v705 = vld [vmem:[%s699 + $0x38] sm:$0xff]
      %v706 = vld [vmem:[%s699 + $0x48] sm:$0xff]
      %v707 = vld [vmem:[%s699 + $0x50] sm:$0xff]
      %v708 = vld [vmem:[%s699 + $0x60] sm:$0xff]
      %v709 = vld [vmem:[%s699 + $0x68] sm:$0xff]
      %v710 = vld [vmem:[%s699 + $0x78] sm:$0xff]
      %v711 = vld [vmem:[%s699 + $0x80] sm:$0xff]
      %v712 = vld [vmem:[%s699 + $0x90] sm:$0xff]
      %v713 = vld [vmem:[%s699 + $0x98] sm:$0xff]
      %v714 = vld [vmem:[%s699 + $0xa8] sm:$0xff]
      %v715 = vld [vmem:[%s699 + $0xb0] sm:$0xff]
      %v716 = vld [vmem:[%s699 + $0xc0] sm:$0xff]
      %v717 = vld [vmem:[%s699 + $0xc8] sm:$0xff]
      %v718 = vld [vmem:[%s699 + $0xd8] sm:$0xff]
      %v719 = vld [vmem:[%s699 + $0xe0] sm:$0xff]
      %v720 = vld [vmem:[%s699 + $0xf0] sm:$0xff]
      %v721 = vld [vmem:[%s699 + $0xf8] sm:$0xff]
      %v722 = vld [vmem:[%s699 + $0x108] sm:$0xff]
      %v723 = vld [vmem:[%s699 + $0x110] sm:$0xff]
      %v724 = vld [vmem:[%s699 + $0x120] sm:$0xff]
      %v725 = vld [vmem:[%s699 + $0x128] sm:$0xff]
      %v726 = vld [vmem:[%s699 + $0x138] sm:$0xff]
      %v727 = vld [vmem:[%s699 + $0x140] sm:$0xff]
      %v728 = vld [vmem:[%s699 + $0x150] sm:$0xff]
      %v729 = vld [vmem:[%s699 + $0x158] sm:$0xff]
      %v730 = vld [vmem:[%s699 + $0x168] sm:$0xff]
      %v731 = vld [vmem:[%s699 + $0x170] sm:$0xff]
      %s732 = scalar_lea.vmem %s1, 384
      %v733 = vld [vmem:[%s732] sm:$0xff]
      %v734 = vld [vmem:[%s732 + $0x8] sm:$0xff]
      %v735 = vld [vmem:[%s732 + $0x10] sm:$0xff]
      %v736 = vld [vmem:[%s732 + $0x18] sm:$0xff]
      %v737 = vld [vmem:[%s732 + $0x20] sm:$0xff]
      %v738 = vld [vmem:[%s732 + $0x28] sm:$0xff]
      %v739 = vld [vmem:[%s732 + $0x30] sm:$0xff]
      %v740 = vld [vmem:[%s732 + $0x38] sm:$0xff]
      %v741 = vld [vmem:[%s732 + $0x40] sm:$0xff]
      %v742 = vld [vmem:[%s732 + $0x48] sm:$0xff]
      %v743 = vld [vmem:[%s732 + $0x50] sm:$0xff]
      %v744 = vld [vmem:[%s732 + $0x58] sm:$0xff]
      %v745 = vld [vmem:[%s732 + $0x60] sm:$0xff]
      %v746 = vld [vmem:[%s732 + $0x68] sm:$0xff]
      %v747 = vld [vmem:[%s732 + $0x70] sm:$0xff]
      %v748 = vld [vmem:[%s732 + $0x78] sm:$0xff]
      %749 = vmatpush.msra.mxu0 %v748
      %750 = vmatpush.msra.mxu0 %v747
      %751 = vmatpush.msra.mxu0 %v746
      %752 = vmatpush.msra.mxu0 %v745
      %753 = vmatpush.msra.mxu0 %v744
      %754 = vmatpush.msra.mxu0 %v743
      %755 = vmatpush.msra.mxu0 %v742
      %756 = vmatpush.msra.mxu0 %v741
      %757 = vmatpush.msra.mxu0 %v740
      %758 = vmatpush.msra.mxu0 %v739
      %759 = vmatpush.msra.mxu0 %v738
      %760 = vmatpush.msra.mxu0 %v737
      %761 = vmatpush.msra.mxu0 %v736
      %762 = vmatpush.msra.mxu0 %v735
      %763 = vmatpush.msra.mxu0 %v734
      %764 = vmatpush.msra.mxu0 %v733
      %765 = vmatmul.f32.gmra.mxu0 %v700
      %v766 = vpop.f32.mrf.mxu0
      %v767 = vadd.f32 0.0, %v766
      %768 = vmatmul.f32.gmra.mxu0 %v701
      %v769 = vpop.f32.mrf.mxu0
      %v770 = vadd.f32 0.0, %v769
      %771 = vmatmul.f32.gmra.mxu0 %v702
      %v772 = vpop.f32.mrf.mxu0
      %v773 = vadd.f32 0.0, %v772
      %774 = vmatmul.f32.gmra.mxu0 %v703
      %v775 = vpop.f32.mrf.mxu0
      %v776 = vadd.f32 0.0, %v775
      %777 = vmatmul.f32.gmra.mxu0 %v704
      %v778 = vpop.f32.mrf.mxu0
      %v779 = vadd.f32 0.0, %v778
      %780 = vmatmul.f32.gmra.mxu0 %v705
      %v781 = vpop.f32.mrf.mxu0
      %v782 = vadd.f32 0.0, %v781
      %783 = vmatmul.f32.gmra.mxu0 %v706
      %v784 = vpop.f32.mrf.mxu0
      %v785 = vadd.f32 0.0, %v784
      %786 = vmatmul.f32.gmra.mxu0 %v707
      %v787 = vpop.f32.mrf.mxu0
      %v788 = vadd.f32 0.0, %v787
      %789 = vmatmul.f32.gmra.mxu0 %v708
      %v790 = vpop.f32.mrf.mxu0
      %v791 = vadd.f32 0.0, %v790
      %792 = vmatmul.f32.gmra.mxu0 %v709
      %v793 = vpop.f32.mrf.mxu0
      %v794 = vadd.f32 0.0, %v793
      %795 = vmatmul.f32.gmra.mxu0 %v710
      %v796 = vpop.f32.mrf.mxu0
      %v797 = vadd.f32 0.0, %v796
      %798 = vmatmul.f32.gmra.mxu0 %v711
      %v799 = vpop.f32.mrf.mxu0
      %v800 = vadd.f32 0.0, %v799
      %801 = vmatmul.f32.gmra.mxu0 %v712
      %v802 = vpop.f32.mrf.mxu0
      %v803 = vadd.f32 0.0, %v802
      %804 = vmatmul.f32.gmra.mxu0 %v713
      %v805 = vpop.f32.mrf.mxu0
      %v806 = vadd.f32 0.0, %v805
      %807 = vmatmul.f32.gmra.mxu0 %v714
      %v808 = vpop.f32.mrf.mxu0
      %v809 = vadd.f32 0.0, %v808
      %810 = vmatmul.f32.gmra.mxu0 %v715
      %v811 = vpop.f32.mrf.mxu0
      %v812 = vadd.f32 0.0, %v811
      %813 = vmatmul.f32.gmra.mxu0 %v716
      %v814 = vpop.f32.mrf.mxu0
      %v815 = vadd.f32 0.0, %v814
      %816 = vmatmul.f32.gmra.mxu0 %v717
      %v817 = vpop.f32.mrf.mxu0
      %v818 = vadd.f32 0.0, %v817
      %819 = vmatmul.f32.gmra.mxu0 %v718
      %v820 = vpop.f32.mrf.mxu0
      %v821 = vadd.f32 0.0, %v820
      %822 = vmatmul.f32.gmra.mxu0 %v719
      %v823 = vpop.f32.mrf.mxu0
      %v824 = vadd.f32 0.0, %v823
      %825 = vmatmul.f32.gmra.mxu0 %v720
      %v826 = vpop.f32.mrf.mxu0
      %v827 = vadd.f32 0.0, %v826
      %828 = vmatmul.f32.gmra.mxu0 %v721
      %v829 = vpop.f32.mrf.mxu0
      %v830 = vadd.f32 0.0, %v829
      %831 = vmatmul.f32.gmra.mxu0 %v722
      %v832 = vpop.f32.mrf.mxu0
      %v833 = vadd.f32 0.0, %v832
      %834 = vmatmul.f32.gmra.mxu0 %v723
      %v835 = vpop.f32.mrf.mxu0
      %v836 = vadd.f32 0.0, %v835
      %837 = vmatmul.f32.gmra.mxu0 %v724
      %v838 = vpop.f32.mrf.mxu0
      %v839 = vadd.f32 0.0, %v838
      %840 = vmatmul.f32.gmra.mxu0 %v725
      %v841 = vpop.f32.mrf.mxu0
      %v842 = vadd.f32 0.0, %v841
      %843 = vmatmul.f32.gmra.mxu0 %v726
      %v844 = vpop.f32.mrf.mxu0
      %v845 = vadd.f32 0.0, %v844
      %846 = vmatmul.f32.gmra.mxu0 %v727
      %v847 = vpop.f32.mrf.mxu0
      %v848 = vadd.f32 0.0, %v847
      %849 = vmatmul.f32.gmra.mxu0 %v728
      %v850 = vpop.f32.mrf.mxu0
      %v851 = vadd.f32 0.0, %v850
      %852 = vmatmul.f32.gmra.mxu0 %v729
      %v853 = vpop.f32.mrf.mxu0
      %v854 = vadd.f32 0.0, %v853
      %855 = vmatmul.f32.gmra.mxu0 %v730
      %v856 = vpop.f32.mrf.mxu0
      %v857 = vadd.f32 0.0, %v856
      %858 = vmatmul.f32.gmra.mxu0 %v731
      %v859 = vpop.f32.mrf.mxu0
      %v860 = vadd.f32 0.0, %v859
      %861 = vdwg.mxu0
      %v862 = vadd.f32 %v667, %v767
      %v863 = vadd.f32 %v668, %v770
      %v864 = vadd.f32 %v669, %v773
      %v865 = vadd.f32 %v670, %v776
      %v866 = vadd.f32 %v671, %v779
      %v867 = vadd.f32 %v672, %v782
      %v868 = vadd.f32 %v673, %v785
      %v869 = vadd.f32 %v674, %v788
      %v870 = vadd.f32 %v675, %v791
      %v871 = vadd.f32 %v676, %v794
      %v872 = vadd.f32 %v677, %v797
      %v873 = vadd.f32 %v678, %v800
      %v874 = vadd.f32 %v679, %v803
      %v875 = vadd.f32 %v680, %v806
      %v876 = vadd.f32 %v681, %v809
      %v877 = vadd.f32 %v682, %v812
      %v878 = vadd.f32 %v683, %v815
      %v879 = vadd.f32 %v684, %v818
      %v880 = vadd.f32 %v685, %v821
      %v881 = vadd.f32 %v686, %v824
      %v882 = vadd.f32 %v687, %v827
      %v883 = vadd.f32 %v688, %v830
      %v884 = vadd.f32 %v689, %v833
      %v885 = vadd.f32 %v690, %v836
      %v886 = vadd.f32 %v691, %v839
      %v887 = vadd.f32 %v692, %v842
      %v888 = vadd.f32 %v693, %v845
      %v889 = vadd.f32 %v694, %v848
      %v890 = vadd.f32 %v695, %v851
      %v891 = vadd.f32 %v696, %v854
      %v892 = vadd.f32 %v697, %v857
      %v893 = vadd.f32 %v698, %v860
      %v894 = vld [vmem:[%s699 + $0x1] sm:$0xff]
      %v895 = vld [vmem:[%s699 + $0x9] sm:$0xff]
      %v896 = vld [vmem:[%s699 + $0x19] sm:$0xff]
      %v897 = vld [vmem:[%s699 + $0x21] sm:$0xff]
      %v898 = vld [vmem:[%s699 + $0x31] sm:$0xff]
      %v899 = vld [vmem:[%s699 + $0x39] sm:$0xff]
      %v900 = vld [vmem:[%s699 + $0x49] sm:$0xff]
      %v901 = vld [vmem:[%s699 + $0x51] sm:$0xff]
      %v902 = vld [vmem:[%s699 + $0x61] sm:$0xff]
      %v903 = vld [vmem:[%s699 + $0x69] sm:$0xff]
      %v904 = vld [vmem:[%s699 + $0x79] sm:$0xff]
      %v905 = vld [vmem:[%s699 + $0x81] sm:$0xff]
      %v906 = vld [vmem:[%s699 + $0x91] sm:$0xff]
      %v907 = vld [vmem:[%s699 + $0x99] sm:$0xff]
      %v908 = vld [vmem:[%s699 + $0xa9] sm:$0xff]
      %v909 = vld [vmem:[%s699 + $0xb1] sm:$0xff]
      %v910 = vld [vmem:[%s699 + $0xc1] sm:$0xff]
      %v911 = vld [vmem:[%s699 + $0xc9] sm:$0xff]
      %v912 = vld [vmem:[%s699 + $0xd9] sm:$0xff]
      %v913 = vld [vmem:[%s699 + $0xe1] sm:$0xff]
      %v914 = vld [vmem:[%s699 + $0xf1] sm:$0xff]
      %v915 = vld [vmem:[%s699 + $0xf9] sm:$0xff]
      %v916 = vld [vmem:[%s699 + $0x109] sm:$0xff]
      %v917 = vld [vmem:[%s699 + $0x111] sm:$0xff]
      %v918 = vld [vmem:[%s699 + $0x121] sm:$0xff]
      %v919 = vld [vmem:[%s699 + $0x129] sm:$0xff]
      %v920 = vld [vmem:[%s699 + $0x139] sm:$0xff]
      %v921 = vld [vmem:[%s699 + $0x141] sm:$0xff]
      %v922 = vld [vmem:[%s699 + $0x151] sm:$0xff]
      %v923 = vld [vmem:[%s699 + $0x159] sm:$0xff]
      %v924 = vld [vmem:[%s699 + $0x169] sm:$0xff]
      %v925 = vld [vmem:[%s699 + $0x171] sm:$0xff]
      %s926 = scalar_lea.vmem %s1, 512
      %v927 = vld [vmem:[%s926] sm:$0xff]
      %v928 = vld [vmem:[%s926 + $0x8] sm:$0xff]
      %v929 = vld [vmem:[%s926 + $0x10] sm:$0xff]
      %v930 = vld [vmem:[%s926 + $0x18] sm:$0xff]
      %v931 = vld [vmem:[%s926 + $0x20] sm:$0xff]
      %v932 = vld [vmem:[%s926 + $0x28] sm:$0xff]
      %v933 = vld [vmem:[%s926 + $0x30] sm:$0xff]
      %v934 = vld [vmem:[%s926 + $0x38] sm:$0xff]
      %v935 = vld [vmem:[%s926 + $0x40] sm:$0xff]
      %v936 = vld [vmem:[%s926 + $0x48] sm:$0xff]
      %v937 = vld [vmem:[%s926 + $0x50] sm:$0xff]
      %v938 = vld [vmem:[%s926 + $0x58] sm:$0xff]
      %v939 = vld [vmem:[%s926 + $0x60] sm:$0xff]
      %v940 = vld [vmem:[%s926 + $0x68] sm:$0xff]
      %v941 = vld [vmem:[%s926 + $0x70] sm:$0xff]
      %v942 = vld [vmem:[%s926 + $0x78] sm:$0xff]
      %943 = vmatpush.msra.mxu0 %v942
      %944 = vmatpush.msra.mxu0 %v941
      %945 = vmatpush.msra.mxu0 %v940
      %946 = vmatpush.msra.mxu0 %v939
      %947 = vmatpush.msra.mxu0 %v938
      %948 = vmatpush.msra.mxu0 %v937
      %949 = vmatpush.msra.mxu0 %v936
      %950 = vmatpush.msra.mxu0 %v935
      %951 = vmatpush.msra.mxu0 %v934
      %952 = vmatpush.msra.mxu0 %v933
      %953 = vmatpush.msra.mxu0 %v932
      %954 = vmatpush.msra.mxu0 %v931
      %955 = vmatpush.msra.mxu0 %v930
      %956 = vmatpush.msra.mxu0 %v929
      %957 = vmatpush.msra.mxu0 %v928
      %958 = vmatpush.msra.mxu0 %v927
      %959 = vmatmul.f32.gmra.mxu0 %v894
      %v960 = vpop.f32.mrf.mxu0
      %v961 = vadd.f32 0.0, %v960
      %962 = vmatmul.f32.gmra.mxu0 %v895
      %v963 = vpop.f32.mrf.mxu0
      %v964 = vadd.f32 0.0, %v963
      %965 = vmatmul.f32.gmra.mxu0 %v896
      %v966 = vpop.f32.mrf.mxu0
      %v967 = vadd.f32 0.0, %v966
      %968 = vmatmul.f32.gmra.mxu0 %v897
      %v969 = vpop.f32.mrf.mxu0
      %v970 = vadd.f32 0.0, %v969
      %971 = vmatmul.f32.gmra.mxu0 %v898
      %v972 = vpop.f32.mrf.mxu0
      %v973 = vadd.f32 0.0, %v972
      %974 = vmatmul.f32.gmra.mxu0 %v899
      %v975 = vpop.f32.mrf.mxu0
      %v976 = vadd.f32 0.0, %v975
      %977 = vmatmul.f32.gmra.mxu0 %v900
      %v978 = vpop.f32.mrf.mxu0
      %v979 = vadd.f32 0.0, %v978
      %980 = vmatmul.f32.gmra.mxu0 %v901
      %v981 = vpop.f32.mrf.mxu0
      %v982 = vadd.f32 0.0, %v981
      %983 = vmatmul.f32.gmra.mxu0 %v902
      %v984 = vpop.f32.mrf.mxu0
      %v985 = vadd.f32 0.0, %v984
      %986 = vmatmul.f32.gmra.mxu0 %v903
      %v987 = vpop.f32.mrf.mxu0
      %v988 = vadd.f32 0.0, %v987
      %989 = vmatmul.f32.gmra.mxu0 %v904
      %v990 = vpop.f32.mrf.mxu0
      %v991 = vadd.f32 0.0, %v990
      %992 = vmatmul.f32.gmra.mxu0 %v905
      %v993 = vpop.f32.mrf.mxu0
      %v994 = vadd.f32 0.0, %v993
      %995 = vmatmul.f32.gmra.mxu0 %v906
      %v996 = vpop.f32.mrf.mxu0
      %v997 = vadd.f32 0.0, %v996
      %998 = vmatmul.f32.gmra.mxu0 %v907
      %v999 = vpop.f32.mrf.mxu0
      %v1000 = vadd.f32 0.0, %v999
      %1001 = vmatmul.f32.gmra.mxu0 %v908
      %v1002 = vpop.f32.mrf.mxu0
      %v1003 = vadd.f32 0.0, %v1002
      %1004 = vmatmul.f32.gmra.mxu0 %v909
      %v1005 = vpop.f32.mrf.mxu0
      %v1006 = vadd.f32 0.0, %v1005
      %1007 = vmatmul.f32.gmra.mxu0 %v910
      %v1008 = vpop.f32.mrf.mxu0
      %v1009 = vadd.f32 0.0, %v1008
      %1010 = vmatmul.f32.gmra.mxu0 %v911
      %v1011 = vpop.f32.mrf.mxu0
      %v1012 = vadd.f32 0.0, %v1011
      %1013 = vmatmul.f32.gmra.mxu0 %v912
      %v1014 = vpop.f32.mrf.mxu0
      %v1015 = vadd.f32 0.0, %v1014
      %1016 = vmatmul.f32.gmra.mxu0 %v913
      %v1017 = vpop.f32.mrf.mxu0
      %v1018 = vadd.f32 0.0, %v1017
      %1019 = vmatmul.f32.gmra.mxu0 %v914
      %v1020 = vpop.f32.mrf.mxu0
      %v1021 = vadd.f32 0.0, %v1020
      %1022 = vmatmul.f32.gmra.mxu0 %v915
      %v1023 = vpop.f32.mrf.mxu0
      %v1024 = vadd.f32 0.0, %v1023
      %1025 = vmatmul.f32.gmra.mxu0 %v916
      %v1026 = vpop.f32.mrf.mxu0
      %v1027 = vadd.f32 0.0, %v1026
      %1028 = vmatmul.f32.gmra.mxu0 %v917
      %v1029 = vpop.f32.mrf.mxu0
      %v1030 = vadd.f32 0.0, %v1029
      %1031 = vmatmul.f32.gmra.mxu0 %v918
      %v1032 = vpop.f32.mrf.mxu0
      %v1033 = vadd.f32 0.0, %v1032
      %1034 = vmatmul.f32.gmra.mxu0 %v919
      %v1035 = vpop.f32.mrf.mxu0
      %v1036 = vadd.f32 0.0, %v1035
      %1037 = vmatmul.f32.gmra.mxu0 %v920
      %v1038 = vpop.f32.mrf.mxu0
      %v1039 = vadd.f32 0.0, %v1038
      %1040 = vmatmul.f32.gmra.mxu0 %v921
      %v1041 = vpop.f32.mrf.mxu0
      %v1042 = vadd.f32 0.0, %v1041
      %1043 = vmatmul.f32.gmra.mxu0 %v922
      %v1044 = vpop.f32.mrf.mxu0
      %v1045 = vadd.f32 0.0, %v1044
      %1046 = vmatmul.f32.gmra.mxu0 %v923
      %v1047 = vpop.f32.mrf.mxu0
      %v1048 = vadd.f32 0.0, %v1047
      %1049 = vmatmul.f32.gmra.mxu0 %v924
      %v1050 = vpop.f32.mrf.mxu0
      %v1051 = vadd.f32 0.0, %v1050
      %1052 = vmatmul.f32.gmra.mxu0 %v925
      %v1053 = vpop.f32.mrf.mxu0
      %v1054 = vadd.f32 0.0, %v1053
      %1055 = vdwg.mxu0
      %v1056 = vadd.f32 %v862, %v961
      %v1057 = vadd.f32 %v863, %v964
      %v1058 = vadd.f32 %v864, %v967
      %v1059 = vadd.f32 %v865, %v970
      %v1060 = vadd.f32 %v866, %v973
      %v1061 = vadd.f32 %v867, %v976
      %v1062 = vadd.f32 %v868, %v979
      %v1063 = vadd.f32 %v869, %v982
      %v1064 = vadd.f32 %v870, %v985
      %v1065 = vadd.f32 %v871, %v988
      %v1066 = vadd.f32 %v872, %v991
      %v1067 = vadd.f32 %v873, %v994
      %v1068 = vadd.f32 %v874, %v997
      %v1069 = vadd.f32 %v875, %v1000
      %v1070 = vadd.f32 %v876, %v1003
      %v1071 = vadd.f32 %v877, %v1006
      %v1072 = vadd.f32 %v878, %v1009
      %v1073 = vadd.f32 %v879, %v1012
      %v1074 = vadd.f32 %v880, %v1015
      %v1075 = vadd.f32 %v881, %v1018
      %v1076 = vadd.f32 %v882, %v1021
      %v1077 = vadd.f32 %v883, %v1024
      %v1078 = vadd.f32 %v884, %v1027
      %v1079 = vadd.f32 %v885, %v1030
      %v1080 = vadd.f32 %v886, %v1033
      %v1081 = vadd.f32 %v887, %v1036
      %v1082 = vadd.f32 %v888, %v1039
      %v1083 = vadd.f32 %v889, %v1042
      %v1084 = vadd.f32 %v890, %v1045
      %v1085 = vadd.f32 %v891, %v1048
      %v1086 = vadd.f32 %v892, %v1051
      %v1087 = vadd.f32 %v893, %v1054
      %v1088 = vld [vmem:[%s699 + $0x2] sm:$0xff]
      %v1089 = vld [vmem:[%s699 + $0xa] sm:$0xff]
      %v1090 = vld [vmem:[%s699 + $0x1a] sm:$0xff]
      %v1091 = vld [vmem:[%s699 + $0x22] sm:$0xff]
      %v1092 = vld [vmem:[%s699 + $0x32] sm:$0xff]
      %v1093 = vld [vmem:[%s699 + $0x3a] sm:$0xff]
      %v1094 = vld [vmem:[%s699 + $0x4a] sm:$0xff]
      %v1095 = vld [vmem:[%s699 + $0x52] sm:$0xff]
      %v1096 = vld [vmem:[%s699 + $0x62] sm:$0xff]
      %v1097 = vld [vmem:[%s699 + $0x6a] sm:$0xff]
      %v1098 = vld [vmem:[%s699 + $0x7a] sm:$0xff]
      %v1099 = vld [vmem:[%s699 + $0x82] sm:$0xff]
      %v1100 = vld [vmem:[%s699 + $0x92] sm:$0xff]
      %v1101 = vld [vmem:[%s699 + $0x9a] sm:$0xff]
      %v1102 = vld [vmem:[%s699 + $0xaa] sm:$0xff]
      %v1103 = vld [vmem:[%s699 + $0xb2] sm:$0xff]
      %v1104 = vld [vmem:[%s699 + $0xc2] sm:$0xff]
      %v1105 = vld [vmem:[%s699 + $0xca] sm:$0xff]
      %v1106 = vld [vmem:[%s699 + $0xda] sm:$0xff]
      %v1107 = vld [vmem:[%s699 + $0xe2] sm:$0xff]
      %v1108 = vld [vmem:[%s699 + $0xf2] sm:$0xff]
      %v1109 = vld [vmem:[%s699 + $0xfa] sm:$0xff]
      %v1110 = vld [vmem:[%s699 + $0x10a] sm:$0xff]
      %v1111 = vld [vmem:[%s699 + $0x112] sm:$0xff]
      %v1112 = vld [vmem:[%s699 + $0x122] sm:$0xff]
      %v1113 = vld [vmem:[%s699 + $0x12a] sm:$0xff]
      %v1114 = vld [vmem:[%s699 + $0x13a] sm:$0xff]
      %v1115 = vld [vmem:[%s699 + $0x142] sm:$0xff]
      %v1116 = vld [vmem:[%s699 + $0x152] sm:$0xff]
      %v1117 = vld [vmem:[%s699 + $0x15a] sm:$0xff]
      %v1118 = vld [vmem:[%s699 + $0x16a] sm:$0xff]
      %v1119 = vld [vmem:[%s699 + $0x172] sm:$0xff]
      %s1120 = scalar_lea.vmem %s1, 640
      %v1121 = vld [vmem:[%s1120] sm:$0xff]
      %v1122 = vld [vmem:[%s1120 + $0x8] sm:$0xff]
      %v1123 = vld [vmem:[%s1120 + $0x10] sm:$0xff]
      %v1124 = vld [vmem:[%s1120 + $0x18] sm:$0xff]
      %v1125 = vld [vmem:[%s1120 + $0x20] sm:$0xff]
      %v1126 = vld [vmem:[%s1120 + $0x28] sm:$0xff]
      %v1127 = vld [vmem:[%s1120 + $0x30] sm:$0xff]
      %v1128 = vld [vmem:[%s1120 + $0x38] sm:$0xff]
      %v1129 = vld [vmem:[%s1120 + $0x40] sm:$0xff]
      %v1130 = vld [vmem:[%s1120 + $0x48] sm:$0xff]
      %v1131 = vld [vmem:[%s1120 + $0x50] sm:$0xff]
      %v1132 = vld [vmem:[%s1120 + $0x58] sm:$0xff]
      %v1133 = vld [vmem:[%s1120 + $0x60] sm:$0xff]
      %v1134 = vld [vmem:[%s1120 + $0x68] sm:$0xff]
      %v1135 = vld [vmem:[%s1120 + $0x70] sm:$0xff]
      %v1136 = vld [vmem:[%s1120 + $0x78] sm:$0xff]
      %1137 = vmatpush.msra.mxu0 %v1136
      %1138 = vmatpush.msra.mxu0 %v1135
      %1139 = vmatpush.msra.mxu0 %v1134
      %1140 = vmatpush.msra.mxu0 %v1133
      %1141 = vmatpush.msra.mxu0 %v1132
      %1142 = vmatpush.msra.mxu0 %v1131
      %1143 = vmatpush.msra.mxu0 %v1130
      %1144 = vmatpush.msra.mxu0 %v1129
      %1145 = vmatpush.msra.mxu0 %v1128
      %1146 = vmatpush.msra.mxu0 %v1127
      %1147 = vmatpush.msra.mxu0 %v1126
      %1148 = vmatpush.msra.mxu0 %v1125
      %1149 = vmatpush.msra.mxu0 %v1124
      %1150 = vmatpush.msra.mxu0 %v1123
      %1151 = vmatpush.msra.mxu0 %v1122
      %1152 = vmatpush.msra.mxu0 %v1121
      %1153 = vmatmul.f32.gmra.mxu0 %v1088
      %v1154 = vpop.f32.mrf.mxu0
      %v1155 = vadd.f32 0.0, %v1154
      %1156 = vmatmul.f32.gmra.mxu0 %v1089
      %v1157 = vpop.f32.mrf.mxu0
      %v1158 = vadd.f32 0.0, %v1157
      %1159 = vmatmul.f32.gmra.mxu0 %v1090
      %v1160 = vpop.f32.mrf.mxu0
      %v1161 = vadd.f32 0.0, %v1160
      %1162 = vmatmul.f32.gmra.mxu0 %v1091
      %v1163 = vpop.f32.mrf.mxu0
      %v1164 = vadd.f32 0.0, %v1163
      %1165 = vmatmul.f32.gmra.mxu0 %v1092
      %v1166 = vpop.f32.mrf.mxu0
      %v1167 = vadd.f32 0.0, %v1166
      %1168 = vmatmul.f32.gmra.mxu0 %v1093
      %v1169 = vpop.f32.mrf.mxu0
      %v1170 = vadd.f32 0.0, %v1169
      %1171 = vmatmul.f32.gmra.mxu0 %v1094
      %v1172 = vpop.f32.mrf.mxu0
      %v1173 = vadd.f32 0.0, %v1172
      %1174 = vmatmul.f32.gmra.mxu0 %v1095
      %v1175 = vpop.f32.mrf.mxu0
      %v1176 = vadd.f32 0.0, %v1175
      %1177 = vmatmul.f32.gmra.mxu0 %v1096
      %v1178 = vpop.f32.mrf.mxu0
      %v1179 = vadd.f32 0.0, %v1178
      %1180 = vmatmul.f32.gmra.mxu0 %v1097
      %v1181 = vpop.f32.mrf.mxu0
      %v1182 = vadd.f32 0.0, %v1181
      %1183 = vmatmul.f32.gmra.mxu0 %v1098
      %v1184 = vpop.f32.mrf.mxu0
      %v1185 = vadd.f32 0.0, %v1184
      %1186 = vmatmul.f32.gmra.mxu0 %v1099
      %v1187 = vpop.f32.mrf.mxu0
      %v1188 = vadd.f32 0.0, %v1187
      %1189 = vmatmul.f32.gmra.mxu0 %v1100
      %v1190 = vpop.f32.mrf.mxu0
      %v1191 = vadd.f32 0.0, %v1190
      %1192 = vmatmul.f32.gmra.mxu0 %v1101
      %v1193 = vpop.f32.mrf.mxu0
      %v1194 = vadd.f32 0.0, %v1193
      %1195 = vmatmul.f32.gmra.mxu0 %v1102
      %v1196 = vpop.f32.mrf.mxu0
      %v1197 = vadd.f32 0.0, %v1196
      %1198 = vmatmul.f32.gmra.mxu0 %v1103
      %v1199 = vpop.f32.mrf.mxu0
      %v1200 = vadd.f32 0.0, %v1199
      %1201 = vmatmul.f32.gmra.mxu0 %v1104
      %v1202 = vpop.f32.mrf.mxu0
      %v1203 = vadd.f32 0.0, %v1202
      %1204 = vmatmul.f32.gmra.mxu0 %v1105
      %v1205 = vpop.f32.mrf.mxu0
      %v1206 = vadd.f32 0.0, %v1205
      %1207 = vmatmul.f32.gmra.mxu0 %v1106
      %v1208 = vpop.f32.mrf.mxu0
      %v1209 = vadd.f32 0.0, %v1208
      %1210 = vmatmul.f32.gmra.mxu0 %v1107
      %v1211 = vpop.f32.mrf.mxu0
      %v1212 = vadd.f32 0.0, %v1211
      %1213 = vmatmul.f32.gmra.mxu0 %v1108
      %v1214 = vpop.f32.mrf.mxu0
      %v1215 = vadd.f32 0.0, %v1214
      %1216 = vmatmul.f32.gmra.mxu0 %v1109
      %v1217 = vpop.f32.mrf.mxu0
      %v1218 = vadd.f32 0.0, %v1217
      %1219 = vmatmul.f32.gmra.mxu0 %v1110
      %v1220 = vpop.f32.mrf.mxu0
      %v1221 = vadd.f32 0.0, %v1220
      %1222 = vmatmul.f32.gmra.mxu0 %v1111
      %v1223 = vpop.f32.mrf.mxu0
      %v1224 = vadd.f32 0.0, %v1223
      %1225 = vmatmul.f32.gmra.mxu0 %v1112
      %v1226 = vpop.f32.mrf.mxu0
      %v1227 = vadd.f32 0.0, %v1226
      %1228 = vmatmul.f32.gmra.mxu0 %v1113
      %v1229 = vpop.f32.mrf.mxu0
      %v1230 = vadd.f32 0.0, %v1229
      %1231 = vmatmul.f32.gmra.mxu0 %v1114
      %v1232 = vpop.f32.mrf.mxu0
      %v1233 = vadd.f32 0.0, %v1232
      %1234 = vmatmul.f32.gmra.mxu0 %v1115
      %v1235 = vpop.f32.mrf.mxu0
      %v1236 = vadd.f32 0.0, %v1235
      %1237 = vmatmul.f32.gmra.mxu0 %v1116
      %v1238 = vpop.f32.mrf.mxu0
      %v1239 = vadd.f32 0.0, %v1238
      %1240 = vmatmul.f32.gmra.mxu0 %v1117
      %v1241 = vpop.f32.mrf.mxu0
      %v1242 = vadd.f32 0.0, %v1241
      %1243 = vmatmul.f32.gmra.mxu0 %v1118
      %v1244 = vpop.f32.mrf.mxu0
      %v1245 = vadd.f32 0.0, %v1244
      %1246 = vmatmul.f32.gmra.mxu0 %v1119
      %v1247 = vpop.f32.mrf.mxu0
      %v1248 = vadd.f32 0.0, %v1247
      %1249 = vdwg.mxu0
      %v1250 = vadd.f32 %v1056, %v1155
      %v1251 = vadd.f32 %v1057, %v1158
      %v1252 = vadd.f32 %v1058, %v1161
      %v1253 = vadd.f32 %v1059, %v1164
      %v1254 = vadd.f32 %v1060, %v1167
      %v1255 = vadd.f32 %v1061, %v1170
      %v1256 = vadd.f32 %v1062, %v1173
      %v1257 = vadd.f32 %v1063, %v1176
      %v1258 = vadd.f32 %v1064, %v1179
      %v1259 = vadd.f32 %v1065, %v1182
      %v1260 = vadd.f32 %v1066, %v1185
      %v1261 = vadd.f32 %v1067, %v1188
      %v1262 = vadd.f32 %v1068, %v1191
      %v1263 = vadd.f32 %v1069, %v1194
      %v1264 = vadd.f32 %v1070, %v1197
      %v1265 = vadd.f32 %v1071, %v1200
      %v1266 = vadd.f32 %v1072, %v1203
      %v1267 = vadd.f32 %v1073, %v1206
      %v1268 = vadd.f32 %v1074, %v1209
      %v1269 = vadd.f32 %v1075, %v1212
      %v1270 = vadd.f32 %v1076, %v1215
      %v1271 = vadd.f32 %v1077, %v1218
      %v1272 = vadd.f32 %v1078, %v1221
      %v1273 = vadd.f32 %v1079, %v1224
      %v1274 = vadd.f32 %v1080, %v1227
      %v1275 = vadd.f32 %v1081, %v1230
      %v1276 = vadd.f32 %v1082, %v1233
      %v1277 = vadd.f32 %v1083, %v1236
      %v1278 = vadd.f32 %v1084, %v1239
      %v1279 = vadd.f32 %v1085, %v1242
      %v1280 = vadd.f32 %v1086, %v1245
      %v1281 = vadd.f32 %v1087, %v1248
      %s1282 = scalar_lea.vmem %s172, 48
      %v1283 = vld [vmem:[%s1282] sm:$0xff]
      %v1284 = vld [vmem:[%s1282 + $0x8] sm:$0xff]
      %v1285 = vld [vmem:[%s1282 + $0x18] sm:$0xff]
      %v1286 = vld [vmem:[%s1282 + $0x20] sm:$0xff]
      %v1287 = vld [vmem:[%s1282 + $0x30] sm:$0xff]
      %v1288 = vld [vmem:[%s1282 + $0x38] sm:$0xff]
      %v1289 = vld [vmem:[%s1282 + $0x48] sm:$0xff]
      %v1290 = vld [vmem:[%s1282 + $0x50] sm:$0xff]
      %v1291 = vld [vmem:[%s1282 + $0x60] sm:$0xff]
      %v1292 = vld [vmem:[%s1282 + $0x68] sm:$0xff]
      %v1293 = vld [vmem:[%s1282 + $0x78] sm:$0xff]
      %v1294 = vld [vmem:[%s1282 + $0x80] sm:$0xff]
      %v1295 = vld [vmem:[%s1282 + $0x90] sm:$0xff]
      %v1296 = vld [vmem:[%s1282 + $0x98] sm:$0xff]
      %v1297 = vld [vmem:[%s1282 + $0xa8] sm:$0xff]
      %v1298 = vld [vmem:[%s1282 + $0xb0] sm:$0xff]
      %v1299 = vld [vmem:[%s1282 + $0xc0] sm:$0xff]
      %v1300 = vld [vmem:[%s1282 + $0xc8] sm:$0xff]
      %v1301 = vld [vmem:[%s1282 + $0xd8] sm:$0xff]
      %v1302 = vld [vmem:[%s1282 + $0xe0] sm:$0xff]
      %v1303 = vld [vmem:[%s1282 + $0xf0] sm:$0xff]
      %v1304 = vld [vmem:[%s1282 + $0xf8] sm:$0xff]
      %v1305 = vld [vmem:[%s1282 + $0x108] sm:$0xff]
      %v1306 = vld [vmem:[%s1282 + $0x110] sm:$0xff]
      %v1307 = vld [vmem:[%s1282 + $0x120] sm:$0xff]
      %v1308 = vld [vmem:[%s1282 + $0x128] sm:$0xff]
      %v1309 = vld [vmem:[%s1282 + $0x138] sm:$0xff]
      %v1310 = vld [vmem:[%s1282 + $0x140] sm:$0xff]
      %v1311 = vld [vmem:[%s1282 + $0x150] sm:$0xff]
      %v1312 = vld [vmem:[%s1282 + $0x158] sm:$0xff]
      %v1313 = vld [vmem:[%s1282 + $0x168] sm:$0xff]
      %v1314 = vld [vmem:[%s1282 + $0x170] sm:$0xff]
      %s1315 = scalar_lea.vmem %s1, 768
      %v1316 = vld [vmem:[%s1315] sm:$0xff]
      %v1317 = vld [vmem:[%s1315 + $0x8] sm:$0xff]
      %v1318 = vld [vmem:[%s1315 + $0x10] sm:$0xff]
      %v1319 = vld [vmem:[%s1315 + $0x18] sm:$0xff]
      %v1320 = vld [vmem:[%s1315 + $0x20] sm:$0xff]
      %v1321 = vld [vmem:[%s1315 + $0x28] sm:$0xff]
      %v1322 = vld [vmem:[%s1315 + $0x30] sm:$0xff]
      %v1323 = vld [vmem:[%s1315 + $0x38] sm:$0xff]
      %v1324 = vld [vmem:[%s1315 + $0x40] sm:$0xff]
      %v1325 = vld [vmem:[%s1315 + $0x48] sm:$0xff]
      %v1326 = vld [vmem:[%s1315 + $0x50] sm:$0xff]
      %v1327 = vld [vmem:[%s1315 + $0x58] sm:$0xff]
      %v1328 = vld [vmem:[%s1315 + $0x60] sm:$0xff]
      %v1329 = vld [vmem:[%s1315 + $0x68] sm:$0xff]
      %v1330 = vld [vmem:[%s1315 + $0x70] sm:$0xff]
      %v1331 = vld [vmem:[%s1315 + $0x78] sm:$0xff]
      %1332 = vmatpush.msra.mxu0 %v1331
      %1333 = vmatpush.msra.mxu0 %v1330
      %1334 = vmatpush.msra.mxu0 %v1329
      %1335 = vmatpush.msra.mxu0 %v1328
      %1336 = vmatpush.msra.mxu0 %v1327
      %1337 = vmatpush.msra.mxu0 %v1326
      %1338 = vmatpush.msra.mxu0 %v1325
      %1339 = vmatpush.msra.mxu0 %v1324
      %1340 = vmatpush.msra.mxu0 %v1323
      %1341 = vmatpush.msra.mxu0 %v1322
      %1342 = vmatpush.msra.mxu0 %v1321
      %1343 = vmatpush.msra.mxu0 %v1320
      %1344 = vmatpush.msra.mxu0 %v1319
      %1345 = vmatpush.msra.mxu0 %v1318
      %1346 = vmatpush.msra.mxu0 %v1317
      %1347 = vmatpush.msra.mxu0 %v1316
      %1348 = vmatmul.f32.gmra.mxu0 %v1283
      %v1349 = vpop.f32.mrf.mxu0
      %v1350 = vadd.f32 0.0, %v1349
      %1351 = vmatmul.f32.gmra.mxu0 %v1284
      %v1352 = vpop.f32.mrf.mxu0
      %v1353 = vadd.f32 0.0, %v1352
      %1354 = vmatmul.f32.gmra.mxu0 %v1285
      %v1355 = vpop.f32.mrf.mxu0
      %v1356 = vadd.f32 0.0, %v1355
      %1357 = vmatmul.f32.gmra.mxu0 %v1286
      %v1358 = vpop.f32.mrf.mxu0
      %v1359 = vadd.f32 0.0, %v1358
      %1360 = vmatmul.f32.gmra.mxu0 %v1287
      %v1361 = vpop.f32.mrf.mxu0
      %v1362 = vadd.f32 0.0, %v1361
      %1363 = vmatmul.f32.gmra.mxu0 %v1288
      %v1364 = vpop.f32.mrf.mxu0
      %v1365 = vadd.f32 0.0, %v1364
      %1366 = vmatmul.f32.gmra.mxu0 %v1289
      %v1367 = vpop.f32.mrf.mxu0
      %v1368 = vadd.f32 0.0, %v1367
      %1369 = vmatmul.f32.gmra.mxu0 %v1290
      %v1370 = vpop.f32.mrf.mxu0
      %v1371 = vadd.f32 0.0, %v1370
      %1372 = vmatmul.f32.gmra.mxu0 %v1291
      %v1373 = vpop.f32.mrf.mxu0
      %v1374 = vadd.f32 0.0, %v1373
      %1375 = vmatmul.f32.gmra.mxu0 %v1292
      %v1376 = vpop.f32.mrf.mxu0
      %v1377 = vadd.f32 0.0, %v1376
      %1378 = vmatmul.f32.gmra.mxu0 %v1293
      %v1379 = vpop.f32.mrf.mxu0
      %v1380 = vadd.f32 0.0, %v1379
      %1381 = vmatmul.f32.gmra.mxu0 %v1294
      %v1382 = vpop.f32.mrf.mxu0
      %v1383 = vadd.f32 0.0, %v1382
      %1384 = vmatmul.f32.gmra.mxu0 %v1295
      %v1385 = vpop.f32.mrf.mxu0
      %v1386 = vadd.f32 0.0, %v1385
      %1387 = vmatmul.f32.gmra.mxu0 %v1296
      %v1388 = vpop.f32.mrf.mxu0
      %v1389 = vadd.f32 0.0, %v1388
      %1390 = vmatmul.f32.gmra.mxu0 %v1297
      %v1391 = vpop.f32.mrf.mxu0
      %v1392 = vadd.f32 0.0, %v1391
      %1393 = vmatmul.f32.gmra.mxu0 %v1298
      %v1394 = vpop.f32.mrf.mxu0
      %v1395 = vadd.f32 0.0, %v1394
      %1396 = vmatmul.f32.gmra.mxu0 %v1299
      %v1397 = vpop.f32.mrf.mxu0
      %v1398 = vadd.f32 0.0, %v1397
      %1399 = vmatmul.f32.gmra.mxu0 %v1300
      %v1400 = vpop.f32.mrf.mxu0
      %v1401 = vadd.f32 0.0, %v1400
      %1402 = vmatmul.f32.gmra.mxu0 %v1301
      %v1403 = vpop.f32.mrf.mxu0
      %v1404 = vadd.f32 0.0, %v1403
      %1405 = vmatmul.f32.gmra.mxu0 %v1302
      %v1406 = vpop.f32.mrf.mxu0
      %v1407 = vadd.f32 0.0, %v1406
      %1408 = vmatmul.f32.gmra.mxu0 %v1303
      %v1409 = vpop.f32.mrf.mxu0
      %v1410 = vadd.f32 0.0, %v1409
      %1411 = vmatmul.f32.gmra.mxu0 %v1304
      %v1412 = vpop.f32.mrf.mxu0
      %v1413 = vadd.f32 0.0, %v1412
      %1414 = vmatmul.f32.gmra.mxu0 %v1305
      %v1415 = vpop.f32.mrf.mxu0
      %v1416 = vadd.f32 0.0, %v1415
      %1417 = vmatmul.f32.gmra.mxu0 %v1306
      %v1418 = vpop.f32.mrf.mxu0
      %v1419 = vadd.f32 0.0, %v1418
      %1420 = vmatmul.f32.gmra.mxu0 %v1307
      %v1421 = vpop.f32.mrf.mxu0
      %v1422 = vadd.f32 0.0, %v1421
      %1423 = vmatmul.f32.gmra.mxu0 %v1308
      %v1424 = vpop.f32.mrf.mxu0
      %v1425 = vadd.f32 0.0, %v1424
      %1426 = vmatmul.f32.gmra.mxu0 %v1309
      %v1427 = vpop.f32.mrf.mxu0
      %v1428 = vadd.f32 0.0, %v1427
      %1429 = vmatmul.f32.gmra.mxu0 %v1310
      %v1430 = vpop.f32.mrf.mxu0
      %v1431 = vadd.f32 0.0, %v1430
      %1432 = vmatmul.f32.gmra.mxu0 %v1311
      %v1433 = vpop.f32.mrf.mxu0
      %v1434 = vadd.f32 0.0, %v1433
      %1435 = vmatmul.f32.gmra.mxu0 %v1312
      %v1436 = vpop.f32.mrf.mxu0
      %v1437 = vadd.f32 0.0, %v1436
      %1438 = vmatmul.f32.gmra.mxu0 %v1313
      %v1439 = vpop.f32.mrf.mxu0
      %v1440 = vadd.f32 0.0, %v1439
      %1441 = vmatmul.f32.gmra.mxu0 %v1314
      %v1442 = vpop.f32.mrf.mxu0
      %v1443 = vadd.f32 0.0, %v1442
      %1444 = vdwg.mxu0
      %v1445 = vadd.f32 %v1250, %v1350
      %v1446 = vadd.f32 %v1251, %v1353
      %v1447 = vadd.f32 %v1252, %v1356
      %v1448 = vadd.f32 %v1253, %v1359
      %v1449 = vadd.f32 %v1254, %v1362
      %v1450 = vadd.f32 %v1255, %v1365
      %v1451 = vadd.f32 %v1256, %v1368
      %v1452 = vadd.f32 %v1257, %v1371
      %v1453 = vadd.f32 %v1258, %v1374
      %v1454 = vadd.f32 %v1259, %v1377
      %v1455 = vadd.f32 %v1260, %v1380
      %v1456 = vadd.f32 %v1261, %v1383
      %v1457 = vadd.f32 %v1262, %v1386
      %v1458 = vadd.f32 %v1263, %v1389
      %v1459 = vadd.f32 %v1264, %v1392
      %v1460 = vadd.f32 %v1265, %v1395
      %v1461 = vadd.f32 %v1266, %v1398
      %v1462 = vadd.f32 %v1267, %v1401
      %v1463 = vadd.f32 %v1268, %v1404
      %v1464 = vadd.f32 %v1269, %v1407
      %v1465 = vadd.f32 %v1270, %v1410
      %v1466 = vadd.f32 %v1271, %v1413
      %v1467 = vadd.f32 %v1272, %v1416
      %v1468 = vadd.f32 %v1273, %v1419
      %v1469 = vadd.f32 %v1274, %v1422
      %v1470 = vadd.f32 %v1275, %v1425
      %v1471 = vadd.f32 %v1276, %v1428
      %v1472 = vadd.f32 %v1277, %v1431
      %v1473 = vadd.f32 %v1278, %v1434
      %v1474 = vadd.f32 %v1279, %v1437
      %v1475 = vadd.f32 %v1280, %v1440
      %v1476 = vadd.f32 %v1281, %v1443
      %v1477 = vld [vmem:[%s1282 + $0x1] sm:$0xff]
      %v1478 = vld [vmem:[%s1282 + $0x9] sm:$0xff]
      %v1479 = vld [vmem:[%s1282 + $0x19] sm:$0xff]
      %v1480 = vld [vmem:[%s1282 + $0x21] sm:$0xff]
      %v1481 = vld [vmem:[%s1282 + $0x31] sm:$0xff]
      %v1482 = vld [vmem:[%s1282 + $0x39] sm:$0xff]
      %v1483 = vld [vmem:[%s1282 + $0x49] sm:$0xff]
      %v1484 = vld [vmem:[%s1282 + $0x51] sm:$0xff]
      %v1485 = vld [vmem:[%s1282 + $0x61] sm:$0xff]
      %v1486 = vld [vmem:[%s1282 + $0x69] sm:$0xff]
      %v1487 = vld [vmem:[%s1282 + $0x79] sm:$0xff]
      %v1488 = vld [vmem:[%s1282 + $0x81] sm:$0xff]
      %v1489 = vld [vmem:[%s1282 + $0x91] sm:$0xff]
      %v1490 = vld [vmem:[%s1282 + $0x99] sm:$0xff]
      %v1491 = vld [vmem:[%s1282 + $0xa9] sm:$0xff]
      %v1492 = vld [vmem:[%s1282 + $0xb1] sm:$0xff]
      %v1493 = vld [vmem:[%s1282 + $0xc1] sm:$0xff]
      %v1494 = vld [vmem:[%s1282 + $0xc9] sm:$0xff]
      %v1495 = vld [vmem:[%s1282 + $0xd9] sm:$0xff]
      %v1496 = vld [vmem:[%s1282 + $0xe1] sm:$0xff]
      %v1497 = vld [vmem:[%s1282 + $0xf1] sm:$0xff]
      %v1498 = vld [vmem:[%s1282 + $0xf9] sm:$0xff]
      %v1499 = vld [vmem:[%s1282 + $0x109] sm:$0xff]
      %v1500 = vld [vmem:[%s1282 + $0x111] sm:$0xff]
      %v1501 = vld [vmem:[%s1282 + $0x121] sm:$0xff]
      %v1502 = vld [vmem:[%s1282 + $0x129] sm:$0xff]
      %v1503 = vld [vmem:[%s1282 + $0x139] sm:$0xff]
      %v1504 = vld [vmem:[%s1282 + $0x141] sm:$0xff]
      %v1505 = vld [vmem:[%s1282 + $0x151] sm:$0xff]
      %v1506 = vld [vmem:[%s1282 + $0x159] sm:$0xff]
      %v1507 = vld [vmem:[%s1282 + $0x169] sm:$0xff]
      %v1508 = vld [vmem:[%s1282 + $0x171] sm:$0xff]
      %s1509 = scalar_lea.vmem %s1, 896
      %v1510 = vld [vmem:[%s1509] sm:$0xff]
      %v1511 = vld [vmem:[%s1509 + $0x8] sm:$0xff]
      %v1512 = vld [vmem:[%s1509 + $0x10] sm:$0xff]
      %v1513 = vld [vmem:[%s1509 + $0x18] sm:$0xff]
      %v1514 = vld [vmem:[%s1509 + $0x20] sm:$0xff]
      %v1515 = vld [vmem:[%s1509 + $0x28] sm:$0xff]
      %v1516 = vld [vmem:[%s1509 + $0x30] sm:$0xff]
      %v1517 = vld [vmem:[%s1509 + $0x38] sm:$0xff]
      %v1518 = vld [vmem:[%s1509 + $0x40] sm:$0xff]
      %v1519 = vld [vmem:[%s1509 + $0x48] sm:$0xff]
      %v1520 = vld [vmem:[%s1509 + $0x50] sm:$0xff]
      %v1521 = vld [vmem:[%s1509 + $0x58] sm:$0xff]
      %v1522 = vld [vmem:[%s1509 + $0x60] sm:$0xff]
      %v1523 = vld [vmem:[%s1509 + $0x68] sm:$0xff]
      %v1524 = vld [vmem:[%s1509 + $0x70] sm:$0xff]
      %v1525 = vld [vmem:[%s1509 + $0x78] sm:$0xff]
      %1526 = vmatpush.msra.mxu0 %v1525
      %1527 = vmatpush.msra.mxu0 %v1524
      %1528 = vmatpush.msra.mxu0 %v1523
      %1529 = vmatpush.msra.mxu0 %v1522
      %1530 = vmatpush.msra.mxu0 %v1521
      %1531 = vmatpush.msra.mxu0 %v1520
      %1532 = vmatpush.msra.mxu0 %v1519
      %1533 = vmatpush.msra.mxu0 %v1518
      %1534 = vmatpush.msra.mxu0 %v1517
      %1535 = vmatpush.msra.mxu0 %v1516
      %1536 = vmatpush.msra.mxu0 %v1515
      %1537 = vmatpush.msra.mxu0 %v1514
      %1538 = vmatpush.msra.mxu0 %v1513
      %1539 = vmatpush.msra.mxu0 %v1512
      %1540 = vmatpush.msra.mxu0 %v1511
      %1541 = vmatpush.msra.mxu0 %v1510
      %1542 = vmatmul.f32.gmra.mxu0 %v1477
      %v1543 = vpop.f32.mrf.mxu0
      %v1544 = vadd.f32 0.0, %v1543
      %1545 = vmatmul.f32.gmra.mxu0 %v1478
      %v1546 = vpop.f32.mrf.mxu0
      %v1547 = vadd.f32 0.0, %v1546
      %1548 = vmatmul.f32.gmra.mxu0 %v1479
      %v1549 = vpop.f32.mrf.mxu0
      %v1550 = vadd.f32 0.0, %v1549
      %1551 = vmatmul.f32.gmra.mxu0 %v1480
      %v1552 = vpop.f32.mrf.mxu0
      %v1553 = vadd.f32 0.0, %v1552
      %1554 = vmatmul.f32.gmra.mxu0 %v1481
      %v1555 = vpop.f32.mrf.mxu0
      %v1556 = vadd.f32 0.0, %v1555
      %1557 = vmatmul.f32.gmra.mxu0 %v1482
      %v1558 = vpop.f32.mrf.mxu0
      %v1559 = vadd.f32 0.0, %v1558
      %1560 = vmatmul.f32.gmra.mxu0 %v1483
      %v1561 = vpop.f32.mrf.mxu0
      %v1562 = vadd.f32 0.0, %v1561
      %1563 = vmatmul.f32.gmra.mxu0 %v1484
      %v1564 = vpop.f32.mrf.mxu0
      %v1565 = vadd.f32 0.0, %v1564
      %1566 = vmatmul.f32.gmra.mxu0 %v1485
      %v1567 = vpop.f32.mrf.mxu0
      %v1568 = vadd.f32 0.0, %v1567
      %1569 = vmatmul.f32.gmra.mxu0 %v1486
      %v1570 = vpop.f32.mrf.mxu0
      %v1571 = vadd.f32 0.0, %v1570
      %1572 = vmatmul.f32.gmra.mxu0 %v1487
      %v1573 = vpop.f32.mrf.mxu0
      %v1574 = vadd.f32 0.0, %v1573
      %1575 = vmatmul.f32.gmra.mxu0 %v1488
      %v1576 = vpop.f32.mrf.mxu0
      %v1577 = vadd.f32 0.0, %v1576
      %1578 = vmatmul.f32.gmra.mxu0 %v1489
      %v1579 = vpop.f32.mrf.mxu0
      %v1580 = vadd.f32 0.0, %v1579
      %1581 = vmatmul.f32.gmra.mxu0 %v1490
      %v1582 = vpop.f32.mrf.mxu0
      %v1583 = vadd.f32 0.0, %v1582
      %1584 = vmatmul.f32.gmra.mxu0 %v1491
      %v1585 = vpop.f32.mrf.mxu0
      %v1586 = vadd.f32 0.0, %v1585
      %1587 = vmatmul.f32.gmra.mxu0 %v1492
      %v1588 = vpop.f32.mrf.mxu0
      %v1589 = vadd.f32 0.0, %v1588
      %1590 = vmatmul.f32.gmra.mxu0 %v1493
      %v1591 = vpop.f32.mrf.mxu0
      %v1592 = vadd.f32 0.0, %v1591
      %1593 = vmatmul.f32.gmra.mxu0 %v1494
      %v1594 = vpop.f32.mrf.mxu0
      %v1595 = vadd.f32 0.0, %v1594
      %1596 = vmatmul.f32.gmra.mxu0 %v1495
      %v1597 = vpop.f32.mrf.mxu0
      %v1598 = vadd.f32 0.0, %v1597
      %1599 = vmatmul.f32.gmra.mxu0 %v1496
      %v1600 = vpop.f32.mrf.mxu0
      %v1601 = vadd.f32 0.0, %v1600
      %1602 = vmatmul.f32.gmra.mxu0 %v1497
      %v1603 = vpop.f32.mrf.mxu0
      %v1604 = vadd.f32 0.0, %v1603
      %1605 = vmatmul.f32.gmra.mxu0 %v1498
      %v1606 = vpop.f32.mrf.mxu0
      %v1607 = vadd.f32 0.0, %v1606
      %1608 = vmatmul.f32.gmra.mxu0 %v1499
      %v1609 = vpop.f32.mrf.mxu0
      %v1610 = vadd.f32 0.0, %v1609
      %1611 = vmatmul.f32.gmra.mxu0 %v1500
      %v1612 = vpop.f32.mrf.mxu0
      %v1613 = vadd.f32 0.0, %v1612
      %1614 = vmatmul.f32.gmra.mxu0 %v1501
      %v1615 = vpop.f32.mrf.mxu0
      %v1616 = vadd.f32 0.0, %v1615
      %1617 = vmatmul.f32.gmra.mxu0 %v1502
      %v1618 = vpop.f32.mrf.mxu0
      %v1619 = vadd.f32 0.0, %v1618
      %1620 = vmatmul.f32.gmra.mxu0 %v1503
      %v1621 = vpop.f32.mrf.mxu0
      %v1622 = vadd.f32 0.0, %v1621
      %1623 = vmatmul.f32.gmra.mxu0 %v1504
      %v1624 = vpop.f32.mrf.mxu0
      %v1625 = vadd.f32 0.0, %v1624
      %1626 = vmatmul.f32.gmra.mxu0 %v1505
      %v1627 = vpop.f32.mrf.mxu0
      %v1628 = vadd.f32 0.0, %v1627
      %1629 = vmatmul.f32.gmra.mxu0 %v1506
      %v1630 = vpop.f32.mrf.mxu0
      %v1631 = vadd.f32 0.0, %v1630
      %1632 = vmatmul.f32.gmra.mxu0 %v1507
      %v1633 = vpop.f32.mrf.mxu0
      %v1634 = vadd.f32 0.0, %v1633
      %1635 = vmatmul.f32.gmra.mxu0 %v1508
      %v1636 = vpop.f32.mrf.mxu0
      %v1637 = vadd.f32 0.0, %v1636
      %1638 = vdwg.mxu0
      %v1639 = vadd.f32 %v1445, %v1544
      %v1640 = vadd.f32 %v1446, %v1547
      %v1641 = vadd.f32 %v1447, %v1550
      %v1642 = vadd.f32 %v1448, %v1553
      %v1643 = vadd.f32 %v1449, %v1556
      %v1644 = vadd.f32 %v1450, %v1559
      %v1645 = vadd.f32 %v1451, %v1562
      %v1646 = vadd.f32 %v1452, %v1565
      %v1647 = vadd.f32 %v1453, %v1568
      %v1648 = vadd.f32 %v1454, %v1571
      %v1649 = vadd.f32 %v1455, %v1574
      %v1650 = vadd.f32 %v1456, %v1577
      %v1651 = vadd.f32 %v1457, %v1580
      %v1652 = vadd.f32 %v1458, %v1583
      %v1653 = vadd.f32 %v1459, %v1586
      %v1654 = vadd.f32 %v1460, %v1589
      %v1655 = vadd.f32 %v1461, %v1592
      %v1656 = vadd.f32 %v1462, %v1595
      %v1657 = vadd.f32 %v1463, %v1598
      %v1658 = vadd.f32 %v1464, %v1601
      %v1659 = vadd.f32 %v1465, %v1604
      %v1660 = vadd.f32 %v1466, %v1607
      %v1661 = vadd.f32 %v1467, %v1610
      %v1662 = vadd.f32 %v1468, %v1613
      %v1663 = vadd.f32 %v1469, %v1616
      %v1664 = vadd.f32 %v1470, %v1619
      %v1665 = vadd.f32 %v1471, %v1622
      %v1666 = vadd.f32 %v1472, %v1625
      %v1667 = vadd.f32 %v1473, %v1628
      %v1668 = vadd.f32 %v1474, %v1631
      %v1669 = vadd.f32 %v1475, %v1634
      %v1670 = vadd.f32 %v1476, %v1637
      %v1671 = vld [vmem:[%s1282 + $0x2] sm:$0xff]
      %v1672 = vld [vmem:[%s1282 + $0xa] sm:$0xff]
      %v1673 = vld [vmem:[%s1282 + $0x1a] sm:$0xff]
      %v1674 = vld [vmem:[%s1282 + $0x22] sm:$0xff]
      %v1675 = vld [vmem:[%s1282 + $0x32] sm:$0xff]
      %v1676 = vld [vmem:[%s1282 + $0x3a] sm:$0xff]
      %v1677 = vld [vmem:[%s1282 + $0x4a] sm:$0xff]
      %v1678 = vld [vmem:[%s1282 + $0x52] sm:$0xff]
      %v1679 = vld [vmem:[%s1282 + $0x62] sm:$0xff]
      %v1680 = vld [vmem:[%s1282 + $0x6a] sm:$0xff]
      %v1681 = vld [vmem:[%s1282 + $0x7a] sm:$0xff]
      %v1682 = vld [vmem:[%s1282 + $0x82] sm:$0xff]
      %v1683 = vld [vmem:[%s1282 + $0x92] sm:$0xff]
      %v1684 = vld [vmem:[%s1282 + $0x9a] sm:$0xff]
      %v1685 = vld [vmem:[%s1282 + $0xaa] sm:$0xff]
      %v1686 = vld [vmem:[%s1282 + $0xb2] sm:$0xff]
      %v1687 = vld [vmem:[%s1282 + $0xc2] sm:$0xff]
      %v1688 = vld [vmem:[%s1282 + $0xca] sm:$0xff]
      %v1689 = vld [vmem:[%s1282 + $0xda] sm:$0xff]
      %v1690 = vld [vmem:[%s1282 + $0xe2] sm:$0xff]
      %v1691 = vld [vmem:[%s1282 + $0xf2] sm:$0xff]
      %v1692 = vld [vmem:[%s1282 + $0xfa] sm:$0xff]
      %v1693 = vld [vmem:[%s1282 + $0x10a] sm:$0xff]
      %v1694 = vld [vmem:[%s1282 + $0x112] sm:$0xff]
      %v1695 = vld [vmem:[%s1282 + $0x122] sm:$0xff]
      %v1696 = vld [vmem:[%s1282 + $0x12a] sm:$0xff]
      %v1697 = vld [vmem:[%s1282 + $0x13a] sm:$0xff]
      %v1698 = vld [vmem:[%s1282 + $0x142] sm:$0xff]
      %v1699 = vld [vmem:[%s1282 + $0x152] sm:$0xff]
      %v1700 = vld [vmem:[%s1282 + $0x15a] sm:$0xff]
      %v1701 = vld [vmem:[%s1282 + $0x16a] sm:$0xff]
      %v1702 = vld [vmem:[%s1282 + $0x172] sm:$0xff]
      %s1703 = scalar_lea.vmem %s1, 1024
      %v1704 = vld [vmem:[%s1703] sm:$0xff]
      %v1705 = vld [vmem:[%s1703 + $0x8] sm:$0xff]
      %v1706 = vld [vmem:[%s1703 + $0x10] sm:$0xff]
      %v1707 = vld [vmem:[%s1703 + $0x18] sm:$0xff]
      %v1708 = vld [vmem:[%s1703 + $0x20] sm:$0xff]
      %v1709 = vld [vmem:[%s1703 + $0x28] sm:$0xff]
      %v1710 = vld [vmem:[%s1703 + $0x30] sm:$0xff]
      %v1711 = vld [vmem:[%s1703 + $0x38] sm:$0xff]
      %v1712 = vld [vmem:[%s1703 + $0x40] sm:$0xff]
      %v1713 = vld [vmem:[%s1703 + $0x48] sm:$0xff]
      %v1714 = vld [vmem:[%s1703 + $0x50] sm:$0xff]
      %v1715 = vld [vmem:[%s1703 + $0x58] sm:$0xff]
      %v1716 = vld [vmem:[%s1703 + $0x60] sm:$0xff]
      %v1717 = vld [vmem:[%s1703 + $0x68] sm:$0xff]
      %v1718 = vld [vmem:[%s1703 + $0x70] sm:$0xff]
      %v1719 = vld [vmem:[%s1703 + $0x78] sm:$0xff]
      %1720 = vmatpush.msra.mxu0 %v1719
      %1721 = vmatpush.msra.mxu0 %v1718
      %1722 = vmatpush.msra.mxu0 %v1717
      %1723 = vmatpush.msra.mxu0 %v1716
      %1724 = vmatpush.msra.mxu0 %v1715
      %1725 = vmatpush.msra.mxu0 %v1714
      %1726 = vmatpush.msra.mxu0 %v1713
      %1727 = vmatpush.msra.mxu0 %v1712
      %1728 = vmatpush.msra.mxu0 %v1711
      %1729 = vmatpush.msra.mxu0 %v1710
      %1730 = vmatpush.msra.mxu0 %v1709
      %1731 = vmatpush.msra.mxu0 %v1708
      %1732 = vmatpush.msra.mxu0 %v1707
      %1733 = vmatpush.msra.mxu0 %v1706
      %1734 = vmatpush.msra.mxu0 %v1705
      %1735 = vmatpush.msra.mxu0 %v1704
      %1736 = vmatmul.f32.gmra.mxu0 %v1671
      %v1737 = vpop.f32.mrf.mxu0
      %v1738 = vadd.f32 0.0, %v1737
      %1739 = vmatmul.f32.gmra.mxu0 %v1672
      %v1740 = vpop.f32.mrf.mxu0
      %v1741 = vadd.f32 0.0, %v1740
      %1742 = vmatmul.f32.gmra.mxu0 %v1673
      %v1743 = vpop.f32.mrf.mxu0
      %v1744 = vadd.f32 0.0, %v1743
      %1745 = vmatmul.f32.gmra.mxu0 %v1674
      %v1746 = vpop.f32.mrf.mxu0
      %v1747 = vadd.f32 0.0, %v1746
      %1748 = vmatmul.f32.gmra.mxu0 %v1675
      %v1749 = vpop.f32.mrf.mxu0
      %v1750 = vadd.f32 0.0, %v1749
      %1751 = vmatmul.f32.gmra.mxu0 %v1676
      %v1752 = vpop.f32.mrf.mxu0
      %v1753 = vadd.f32 0.0, %v1752
      %1754 = vmatmul.f32.gmra.mxu0 %v1677
      %v1755 = vpop.f32.mrf.mxu0
      %v1756 = vadd.f32 0.0, %v1755
      %1757 = vmatmul.f32.gmra.mxu0 %v1678
      %v1758 = vpop.f32.mrf.mxu0
      %v1759 = vadd.f32 0.0, %v1758
      %1760 = vmatmul.f32.gmra.mxu0 %v1679
      %v1761 = vpop.f32.mrf.mxu0
      %v1762 = vadd.f32 0.0, %v1761
      %1763 = vmatmul.f32.gmra.mxu0 %v1680
      %v1764 = vpop.f32.mrf.mxu0
      %v1765 = vadd.f32 0.0, %v1764
      %1766 = vmatmul.f32.gmra.mxu0 %v1681
      %v1767 = vpop.f32.mrf.mxu0
      %v1768 = vadd.f32 0.0, %v1767
      %1769 = vmatmul.f32.gmra.mxu0 %v1682
      %v1770 = vpop.f32.mrf.mxu0
      %v1771 = vadd.f32 0.0, %v1770
      %1772 = vmatmul.f32.gmra.mxu0 %v1683
      %v1773 = vpop.f32.mrf.mxu0
      %v1774 = vadd.f32 0.0, %v1773
      %1775 = vmatmul.f32.gmra.mxu0 %v1684
      %v1776 = vpop.f32.mrf.mxu0
      %v1777 = vadd.f32 0.0, %v1776
      %1778 = vmatmul.f32.gmra.mxu0 %v1685
      %v1779 = vpop.f32.mrf.mxu0
      %v1780 = vadd.f32 0.0, %v1779
      %1781 = vmatmul.f32.gmra.mxu0 %v1686
      %v1782 = vpop.f32.mrf.mxu0
      %v1783 = vadd.f32 0.0, %v1782
      %1784 = vmatmul.f32.gmra.mxu0 %v1687
      %v1785 = vpop.f32.mrf.mxu0
      %v1786 = vadd.f32 0.0, %v1785
      %1787 = vmatmul.f32.gmra.mxu0 %v1688
      %v1788 = vpop.f32.mrf.mxu0
      %v1789 = vadd.f32 0.0, %v1788
      %1790 = vmatmul.f32.gmra.mxu0 %v1689
      %v1791 = vpop.f32.mrf.mxu0
      %v1792 = vadd.f32 0.0, %v1791
      %1793 = vmatmul.f32.gmra.mxu0 %v1690
      %v1794 = vpop.f32.mrf.mxu0
      %v1795 = vadd.f32 0.0, %v1794
      %1796 = vmatmul.f32.gmra.mxu0 %v1691
      %v1797 = vpop.f32.mrf.mxu0
      %v1798 = vadd.f32 0.0, %v1797
      %1799 = vmatmul.f32.gmra.mxu0 %v1692
      %v1800 = vpop.f32.mrf.mxu0
      %v1801 = vadd.f32 0.0, %v1800
      %1802 = vmatmul.f32.gmra.mxu0 %v1693
      %v1803 = vpop.f32.mrf.mxu0
      %v1804 = vadd.f32 0.0, %v1803
      %1805 = vmatmul.f32.gmra.mxu0 %v1694
      %v1806 = vpop.f32.mrf.mxu0
      %v1807 = vadd.f32 0.0, %v1806
      %1808 = vmatmul.f32.gmra.mxu0 %v1695
      %v1809 = vpop.f32.mrf.mxu0
      %v1810 = vadd.f32 0.0, %v1809
      %1811 = vmatmul.f32.gmra.mxu0 %v1696
      %v1812 = vpop.f32.mrf.mxu0
      %v1813 = vadd.f32 0.0, %v1812
      %1814 = vmatmul.f32.gmra.mxu0 %v1697
      %v1815 = vpop.f32.mrf.mxu0
      %v1816 = vadd.f32 0.0, %v1815
      %1817 = vmatmul.f32.gmra.mxu0 %v1698
      %v1818 = vpop.f32.mrf.mxu0
      %v1819 = vadd.f32 0.0, %v1818
      %1820 = vmatmul.f32.gmra.mxu0 %v1699
      %v1821 = vpop.f32.mrf.mxu0
      %v1822 = vadd.f32 0.0, %v1821
      %1823 = vmatmul.f32.gmra.mxu0 %v1700
      %v1824 = vpop.f32.mrf.mxu0
      %v1825 = vadd.f32 0.0, %v1824
      %1826 = vmatmul.f32.gmra.mxu0 %v1701
      %v1827 = vpop.f32.mrf.mxu0
      %v1828 = vadd.f32 0.0, %v1827
      %1829 = vmatmul.f32.gmra.mxu0 %v1702
      %v1830 = vpop.f32.mrf.mxu0
      %v1831 = vadd.f32 0.0, %v1830
      %1832 = vdwg.mxu0
      %v1833 = vadd.f32 %v1639, %v1738
      %v1834 = vadd.f32 %v1640, %v1741
      %v1835 = vadd.f32 %v1641, %v1744
      %v1836 = vadd.f32 %v1642, %v1747
      %v1837 = vadd.f32 %v1643, %v1750
      %v1838 = vadd.f32 %v1644, %v1753
      %v1839 = vadd.f32 %v1645, %v1756
      %v1840 = vadd.f32 %v1646, %v1759
      %v1841 = vadd.f32 %v1647, %v1762
      %v1842 = vadd.f32 %v1648, %v1765
      %v1843 = vadd.f32 %v1649, %v1768
      %v1844 = vadd.f32 %v1650, %v1771
      %v1845 = vadd.f32 %v1651, %v1774
      %v1846 = vadd.f32 %v1652, %v1777
      %v1847 = vadd.f32 %v1653, %v1780
      %v1848 = vadd.f32 %v1654, %v1783
      %v1849 = vadd.f32 %v1655, %v1786
      %v1850 = vadd.f32 %v1656, %v1789
      %v1851 = vadd.f32 %v1657, %v1792
      %v1852 = vadd.f32 %v1658, %v1795
      %v1853 = vadd.f32 %v1659, %v1798
      %v1854 = vadd.f32 %v1660, %v1801
      %v1855 = vadd.f32 %v1661, %v1804
      %v1856 = vadd.f32 %v1662, %v1807
      %v1857 = vadd.f32 %v1663, %v1810
      %v1858 = vadd.f32 %v1664, %v1813
      %v1859 = vadd.f32 %v1665, %v1816
      %v1860 = vadd.f32 %v1666, %v1819
      %v1861 = vadd.f32 %v1667, %v1822
      %v1862 = vadd.f32 %v1668, %v1825
      %v1863 = vadd.f32 %v1669, %v1828
      %v1864 = vadd.f32 %v1670, %v1831
      %1865 = vst [vmem:[%s177] sm:$0xff] %v1833
      %1866 = vst [vmem:[%s177 + $0x8] sm:$0xff] %v1834
      %1867 = vst [vmem:[%s177 + $0x10] sm:$0xff] %v1835
      %1868 = vst [vmem:[%s177 + $0x18] sm:$0xff] %v1836
      %1869 = vst [vmem:[%s177 + $0x20] sm:$0xff] %v1837
      %1870 = vst [vmem:[%s177 + $0x28] sm:$0xff] %v1838
      %1871 = vst [vmem:[%s177 + $0x30] sm:$0xff] %v1839
      %1872 = vst [vmem:[%s177 + $0x38] sm:$0xff] %v1840
      %1873 = vst [vmem:[%s177 + $0x40] sm:$0xff] %v1841
      %1874 = vst [vmem:[%s177 + $0x48] sm:$0xff] %v1842
      %1875 = vst [vmem:[%s177 + $0x50] sm:$0xff] %v1843
      %1876 = vst [vmem:[%s177 + $0x58] sm:$0xff] %v1844
      %1877 = vst [vmem:[%s177 + $0x60] sm:$0xff] %v1845
      %1878 = vst [vmem:[%s177 + $0x68] sm:$0xff] %v1846
      %1879 = vst [vmem:[%s177 + $0x70] sm:$0xff] %v1847
      %1880 = vst [vmem:[%s177 + $0x78] sm:$0xff] %v1848
      %1881 = vst [vmem:[%s177 + $0x80] sm:$0xff] %v1849
      %1882 = vst [vmem:[%s177 + $0x88] sm:$0xff] %v1850
      %1883 = vst [vmem:[%s177 + $0x90] sm:$0xff] %v1851
      %1884 = vst [vmem:[%s177 + $0x98] sm:$0xff] %v1852
      %1885 = vst [vmem:[%s177 + $0xa0] sm:$0xff] %v1853
      %1886 = vst [vmem:[%s177 + $0xa8] sm:$0xff] %v1854
      %1887 = vst [vmem:[%s177 + $0xb0] sm:$0xff] %v1855
      %1888 = vst [vmem:[%s177 + $0xb8] sm:$0xff] %v1856
      %1889 = vst [vmem:[%s177 + $0xc0] sm:$0xff] %v1857
      %1890 = vst [vmem:[%s177 + $0xc8] sm:$0xff] %v1858
      %1891 = vst [vmem:[%s177 + $0xd0] sm:$0xff] %v1859
      %1892 = vst [vmem:[%s177 + $0xd8] sm:$0xff] %v1860
      %1893 = vst [vmem:[%s177 + $0xe0] sm:$0xff] %v1861
      %1894 = vst [vmem:[%s177 + $0xe8] sm:$0xff] %v1862
      %1895 = vst [vmem:[%s177 + $0xf0] sm:$0xff] %v1863
      %1896 = vst [vmem:[%s177 + $0xf8] sm:$0xff] %v1864
      %v1897 = vadd.f32 %v1833, %v1834
      %v1898 = vadd.f32 %v1897, %v1835
      %v1899 = vadd.f32 %v1898, %v1836
      %v1900 = vadd.f32 %v1899, %v1837
      %v1901 = vadd.f32 %v1900, %v1838
      %v1902 = vadd.f32 %v1901, %v1839
      %v1903 = vadd.f32 %v1902, %v1840
      %v1904 = vadd.f32 %v1903, %v1841
      %v1905 = vadd.f32 %v1904, %v1842
      %v1906 = vadd.f32 %v1905, %v1843
      %v1907 = vadd.f32 %v1906, %v1844
      %v1908 = vadd.f32 %v1907, %v1845
      %v1909 = vadd.f32 %v1908, %v1846
      %v1910 = vadd.f32 %v1909, %v1847
      %v1911 = vadd.f32 %v1910, %v1848
      %v1912 = vadd.f32 %v1911, %v1849
      %v1913 = vadd.f32 %v1912, %v1850
      %v1914 = vadd.f32 %v1913, %v1851
      %v1915 = vadd.f32 %v1914, %v1852
      %v1916 = vadd.f32 %v1915, %v1853
      %v1917 = vadd.f32 %v1916, %v1854
      %v1918 = vadd.f32 %v1917, %v1855
      %v1919 = vadd.f32 %v1918, %v1856
      %v1920 = vadd.f32 %v1919, %v1857
      %v1921 = vadd.f32 %v1920, %v1858
      %v1922 = vadd.f32 %v1921, %v1859
      %v1923 = vadd.f32 %v1922, %v1860
      %v1924 = vadd.f32 %v1923, %v1861
      %v1925 = vadd.f32 %v1924, %v1862
      %v1926 = vadd.f32 %v1925, %v1863
      %v1927 = vadd.f32 %v1926, %v1864
      %v1928 = vrot.slane %v1927, 4
      %v1929 = vadd.f32 %v1927, %v1928
      %v1930 = vrot.slane %v1929, 2
      %v1931 = vadd.f32 %v1929, %v1930
      %v1932 = vrot.slane %v1931, 1
      %v1933 = vadd.f32 %v1931, %v1932
      %1934 = vst [vmem:[%s181] sm:$0x1] %v1933
      %v1935 = vmul.f32 %v1833, %v1833
      %v1936 = vmul.f32 %v1834, %v1834
      %v1937 = vmul.f32 %v1835, %v1835
      %v1938 = vmul.f32 %v1836, %v1836
      %v1939 = vmul.f32 %v1837, %v1837
      %v1940 = vmul.f32 %v1838, %v1838
      %v1941 = vmul.f32 %v1839, %v1839
      %v1942 = vmul.f32 %v1840, %v1840
      %v1943 = vmul.f32 %v1841, %v1841
      %v1944 = vmul.f32 %v1842, %v1842
      %v1945 = vmul.f32 %v1843, %v1843
      %v1946 = vmul.f32 %v1844, %v1844
      %v1947 = vmul.f32 %v1845, %v1845
      %v1948 = vmul.f32 %v1846, %v1846
      %v1949 = vmul.f32 %v1847, %v1847
      %v1950 = vmul.f32 %v1848, %v1848
      %v1951 = vmul.f32 %v1849, %v1849
      %v1952 = vmul.f32 %v1850, %v1850
      %v1953 = vmul.f32 %v1851, %v1851
      %v1954 = vmul.f32 %v1852, %v1852
      %v1955 = vmul.f32 %v1853, %v1853
      %v1956 = vmul.f32 %v1854, %v1854
      %v1957 = vmul.f32 %v1855, %v1855
      %v1958 = vmul.f32 %v1856, %v1856
      %v1959 = vmul.f32 %v1857, %v1857
      %v1960 = vmul.f32 %v1858, %v1858
      %v1961 = vmul.f32 %v1859, %v1859
      %v1962 = vmul.f32 %v1860, %v1860
      %v1963 = vmul.f32 %v1861, %v1861
      %v1964 = vmul.f32 %v1862, %v1862
      %v1965 = vmul.f32 %v1863, %v1863
      %v1966 = vmul.f32 %v1864, %v1864
      %v1967 = vadd.f32 %v1935, %v1936
      %v1968 = vadd.f32 %v1967, %v1937
      %v1969 = vadd.f32 %v1968, %v1938
      %v1970 = vadd.f32 %v1969, %v1939
      %v1971 = vadd.f32 %v1970, %v1940
      %v1972 = vadd.f32 %v1971, %v1941
      %v1973 = vadd.f32 %v1972, %v1942
      %v1974 = vadd.f32 %v1973, %v1943
      %v1975 = vadd.f32 %v1974, %v1944
      %v1976 = vadd.f32 %v1975, %v1945
      %v1977 = vadd.f32 %v1976, %v1946
      %v1978 = vadd.f32 %v1977, %v1947
      %v1979 = vadd.f32 %v1978, %v1948
      %v1980 = vadd.f32 %v1979, %v1949
      %v1981 = vadd.f32 %v1980, %v1950
      %v1982 = vadd.f32 %v1981, %v1951
      %v1983 = vadd.f32 %v1982, %v1952
      %v1984 = vadd.f32 %v1983, %v1953
      %v1985 = vadd.f32 %v1984, %v1954
      %v1986 = vadd.f32 %v1985, %v1955
      %v1987 = vadd.f32 %v1986, %v1956
      %v1988 = vadd.f32 %v1987, %v1957
      %v1989 = vadd.f32 %v1988, %v1958
      %v1990 = vadd.f32 %v1989, %v1959
      %v1991 = vadd.f32 %v1990, %v1960
      %v1992 = vadd.f32 %v1991, %v1961
      %v1993 = vadd.f32 %v1992, %v1962
      %v1994 = vadd.f32 %v1993, %v1963
      %v1995 = vadd.f32 %v1994, %v1964
      %v1996 = vadd.f32 %v1995, %v1965
      %v1997 = vadd.f32 %v1996, %v1966
      %v1998 = vrot.slane %v1997, 4
      %v1999 = vadd.f32 %v1997, %v1998
      %v2000 = vrot.slane %v1999, 2
      %v2001 = vadd.f32 %v1999, %v2000
      %v2002 = vrot.slane %v2001, 1
      %v2003 = vadd.f32 %v2001, %v2002
      %2004 = vst [vmem:[%s181 + $0x1] sm:$0x1] %v2003
      %p2005 = scmp.lt.s32.totalorder %s15, 1
      %s2006 = scalar_select %p2005, %s15, 1
      %s2007 = smul.addr %s2006, 32
      %s2008 = smul.addr %s2007, 8
      %s2009 = scalar_lea.vmem %s2, %s2008
      %p2010 = scmp.lt.s32.totalorder %s15, 1
      %s2011 = scalar_select %p2010, %s15, 1
      %s2012 = smul.addr %s2011, 2
      %s2013 = scalar_lea.vmem %s3, %s2012
      // Predicated region
      $region29: #{bottleneck_pallas.3} parent=27 // pred_check
        %p2014 = pneg %p80
      $region30: #{bottleneck_pallas.3} parent=27 // pred_check_branch
        %2016 = sbr.rel (%p2014) target = $region32
      $region31: #{bottleneck_pallas.3} parent=27 // pred_region
        _
      $region32: #{bottleneck_pallas.3} parent=27 // pred_fallthru
        _
      // Predicated region
      $region33: #{bottleneck_pallas.3} parent=27 // pred_check
        %p2017 = pneg %p106
      $region34: #{bottleneck_pallas.3} parent=27 // pred_check_branch
        %2019 = sbr.rel (%p2017) target = $region36
      $region35: #{bottleneck_pallas.3} parent=27 // pred_region
        _
      $region36: #{bottleneck_pallas.3} parent=27 // pred_fallthru
        _
    $region28: #{bottleneck_pallas.3} parent=5 // pred_fallthru
      _
    %p2020 = scmp.le.s32.totalorder 2, %s10
    // Predicated region
    $region37: #{bottleneck_pallas.3} parent=5 // pred_check
      %p2021 = pneg %p2020
    $region38: #{bottleneck_pallas.3} parent=5 // pred_check_branch
      %2023 = sbr.rel (%p2021) target = $region40
    $region39: #{bottleneck_pallas.3} parent=5 // pred_region
      %s2024 = ssub.s32 %s10, 2
      // Predicated region
      $region41: #{bottleneck_pallas.3} parent=39 // pred_check
        %p2025 = pneg %p86
      $region42: #{bottleneck_pallas.3} parent=39 // pred_check_branch
        %2027 = sbr.rel (%p2025) target = $region44
      $region43: #{bottleneck_pallas.3} parent=39 // pred_region
        %p2028 = scmp.lt.s32.totalorder %s16, 1
        %s2029 = scalar_select %p2028, %s16, 1
        %s2030 = smul.addr %s2029, 32
        %s2031 = smul.addr %s2030, 8
        %s2032 = scalar_lea.vmem %s2, %s2031
      $region44: #{bottleneck_pallas.3} parent=39 // pred_fallthru
        _
      // Predicated region
      $region45: #{bottleneck_pallas.3} parent=39 // pred_check
        %p2033 = pneg %p112
      $region46: #{bottleneck_pallas.3} parent=39 // pred_check_branch
        %2035 = sbr.rel (%p2033) target = $region48
      $region47: #{bottleneck_pallas.3} parent=39 // pred_region
        %p2036 = scmp.lt.s32.totalorder %s16, 1
        %s2037 = scalar_select %p2036, %s16, 1
        %s2038 = smul.addr %s2037, 2
        %s2039 = scalar_lea.vmem %s3, %s2038
      $region48: #{bottleneck_pallas.3} parent=39 // pred_fallthru
        _
    $region40: #{bottleneck_pallas.3} parent=5 // pred_fallthru
      _
  $region6: #{bottleneck_pallas.3} parent=0 // loop_footer
    %s14 = sadd.s32 1, %s10
  $region7: #{bottleneck_pallas.3} parent=0 // loop_footer_branch
    %9 = sbr.rel target = $region3
  $region8: #{bottleneck_pallas.3} parent=0 // loop_exit
    _

// kernel: bottleneck_pallas.4
$region0: #{bottleneck_pallas.4}
  #allocation0 [shape = 'u32[]', space=smem, size = 0x4, offset = 0x4, fixed_abs, tag = 'smem constant byte address 0x4 - core index']
  #allocation1 [shape = 'u32[72,128]{1,0:T(1,128)}', space=vmem, size = 0x9000, scoped, tag = 'internal scratch']
  #allocation2 [shape = 'f32[18,18,128]{2,1,0:T(8,128)}', space=vmem, size = 0x36000, scoped, tag = 'scratch operand']
  %s0 = inlined_call_operand.vmem [shape: f32[2,16,16,128], index: 0, kind: input, shape index: {}]
  %s1 = inlined_call_operand.vmem [shape: f32[1,128], index: 1, kind: input, shape index: {}]
  %s2 = inlined_call_operand.vmem [shape: f32[1,128], index: 2, kind: input, shape index: {}]
  %s3 = inlined_call_operand.vmem [shape: f32[3,3,128,128], index: 3, kind: input, shape index: {}]
  %s4 = inlined_call_operand.vmem [shape: f32[2,16,16,128], index: 4, kind: output, shape index: {0}]
  %s5 = inlined_call_operand.vmem [shape: f32[2,2,128], index: 5, kind: output, shape index: {1}]
  %6 = xla_tuple %s4, %s5
  %s7 = sld [smem:[#allocation0]]
  $region57: #{bottleneck_pallas.4} parent=0
    _
  %s9 = ssub.s32 1, %s7
  %s10 = scalar_select 0, %s9, %s7
  loop: start=0, step=1, limit=4
  $region2: #{bottleneck_pallas.4} parent=0 // loop_pre_header
    _
  $region3: #{bottleneck_pallas.4} parent=0 // loop_header
    %s12 = sphi 0, %s16
    %p13 = scmp.ge.s32.totalorder %s12, 4
    %s22 = sphi 0, %s24
    %s25 = sphi 0, %s22
    %s26 = sphi 0, %s25
    %s42 = sphi 0, %s26
    %s46 = sphi 0, %s46
    %s48 = sphi 0, %s46
    %s49 = sphi 0, %s48
    %s63 = sphi 0, %s49
    %s67 = sphi 0, %s67
    %s69 = sphi 0, %s67
    %s70 = sphi 0, %s69
    %s84 = sphi 0, %s70
    %s88 = sphi 0, %s88
    %s90 = sphi 0, %s88
    %s91 = sphi 0, %s90
    %s105 = sphi 0, %s91
    %s111 = sphi 0, %s113
    %s114 = sphi 0, %s111
    %s115 = sphi 0, %s114
    %s131 = sphi 0, %s115
    %s137 = sphi 0, %s139
    %s140 = sphi 0, %s137
    %s141 = sphi 0, %s140
    %s157 = sphi 0, %s141
  $region4: #{bottleneck_pallas.4} parent=0 // loop_header_branch
    %15 = sbr.rel (%p13) target = $region8
  $region5: #{bottleneck_pallas.4} parent=0 // loop_body
    %s17 = ssub.s32 %s12, 1
    %s18 = ssub.s32 %s12, 2
    %s19 = sadd.s32 %s12, 1
    %s20 = ssub.s32 %s12, %s19
    %p21 = scmp.eq.s32.totalorder %s20, 0
    %s23 = sadd.s32 %s22, 1
    %s24 = scalar_select %p21, %s22, %s23
    %p27 = pneg %p21
    %p28 = scmp.eq.s32.totalorder %s12, 1
    %p29 = por %p27, %p28
    %p30 = scmp.ne.s32.totalorder %s22, %s25
    %p31 = scmp.eq.s32.totalorder %s12, 0
    %p32 = por %p30, %p31
    %p33 = scmp.ne.s32.totalorder %s22, %s25
    %p34 = scmp.eq.s32.totalorder %s17, 1
    %p35 = por %p33, %p34
    %p36 = scmp.ne.s32.totalorder %s25, %s26
    %p37 = scmp.eq.s32.totalorder %s17, 0
    %p38 = por %p36, %p37
    %p39 = scmp.ne.s32.totalorder %s25, %s26
    %p40 = scmp.eq.s32.totalorder %s18, 1
    %p41 = por %p39, %p40
    %p43 = scmp.ne.s32.totalorder %s26, %s42
    %p44 = scmp.eq.s32.totalorder %s18, 0
    %p45 = por %p43, %p44
    %s47 = sadd.s32 %s46, 1
    %p50 = scmp.eq.s32.totalorder %s12, 1
    %p51 = scmp.ne.s32.totalorder %s46, %s48
    %p52 = scmp.eq.s32.totalorder %s12, 0
    %p53 = por %p51, %p52
    %p54 = scmp.ne.s32.totalorder %s46, %s48
    %p55 = scmp.eq.s32.totalorder %s17, 1
    %p56 = por %p54, %p55
    %p57 = scmp.ne.s32.totalorder %s48, %s49
    %p58 = scmp.eq.s32.totalorder %s17, 0
    %p59 = por %p57, %p58
    %p60 = scmp.ne.s32.totalorder %s48, %s49
    %p61 = scmp.eq.s32.totalorder %s18, 1
    %p62 = por %p60, %p61
    %p64 = scmp.ne.s32.totalorder %s49, %s63
    %p65 = scmp.eq.s32.totalorder %s18, 0
    %p66 = por %p64, %p65
    %s68 = sadd.s32 %s67, 1
    %p71 = scmp.eq.s32.totalorder %s12, 1
    %p72 = scmp.ne.s32.totalorder %s67, %s69
    %p73 = scmp.eq.s32.totalorder %s12, 0
    %p74 = por %p72, %p73
    %p75 = scmp.ne.s32.totalorder %s67, %s69
    %p76 = scmp.eq.s32.totalorder %s17, 1
    %p77 = por %p75, %p76
    %p78 = scmp.ne.s32.totalorder %s69, %s70
    %p79 = scmp.eq.s32.totalorder %s17, 0
    %p80 = por %p78, %p79
    %p81 = scmp.ne.s32.totalorder %s69, %s70
    %p82 = scmp.eq.s32.totalorder %s18, 1
    %p83 = por %p81, %p82
    %p85 = scmp.ne.s32.totalorder %s70, %s84
    %p86 = scmp.eq.s32.totalorder %s18, 0
    %p87 = por %p85, %p86
    %s89 = sadd.s32 %s88, 1
    %p92 = scmp.eq.s32.totalorder %s12, 1
    %p93 = scmp.ne.s32.totalorder %s88, %s90
    %p94 = scmp.eq.s32.totalorder %s12, 0
    %p95 = por %p93, %p94
    %p96 = scmp.ne.s32.totalorder %s88, %s90
    %p97 = scmp.eq.s32.totalorder %s17, 1
    %p98 = por %p96, %p97
    %p99 = scmp.ne.s32.totalorder %s90, %s91
    %p100 = scmp.eq.s32.totalorder %s17, 0
    %p101 = por %p99, %p100
    %p102 = scmp.ne.s32.totalorder %s90, %s91
    %p103 = scmp.eq.s32.totalorder %s18, 1
    %p104 = por %p102, %p103
    %p106 = scmp.ne.s32.totalorder %s91, %s105
    %p107 = scmp.eq.s32.totalorder %s18, 0
    %p108 = por %p106, %p107
    %s109 = ssub.s32 %s12, %s19
    %p110 = scmp.eq.s32.totalorder %s109, 0
    %s112 = sadd.s32 %s111, 1
    %s113 = scalar_select %p110, %s111, %s112
    %p116 = pneg %p110
    %p117 = scmp.eq.s32.totalorder %s12, 1
    %p118 = por %p116, %p117
    %p119 = scmp.ne.s32.totalorder %s111, %s114
    %p120 = scmp.eq.s32.totalorder %s12, 0
    %p121 = por %p119, %p120
    %p122 = scmp.ne.s32.totalorder %s111, %s114
    %p123 = scmp.eq.s32.totalorder %s17, 1
    %p124 = por %p122, %p123
    %p125 = scmp.ne.s32.totalorder %s114, %s115
    %p126 = scmp.eq.s32.totalorder %s17, 0
    %p127 = por %p125, %p126
    %p128 = scmp.ne.s32.totalorder %s114, %s115
    %p129 = scmp.eq.s32.totalorder %s18, 1
    %p130 = por %p128, %p129
    %p132 = scmp.ne.s32.totalorder %s115, %s131
    %p133 = scmp.eq.s32.totalorder %s18, 0
    %p134 = por %p132, %p133
    %s135 = ssub.s32 %s12, %s19
    %p136 = scmp.eq.s32.totalorder %s135, 0
    %s138 = sadd.s32 %s137, 1
    %s139 = scalar_select %p136, %s137, %s138
    %p142 = pneg %p136
    %p143 = scmp.eq.s32.totalorder %s12, 1
    %p144 = por %p142, %p143
    %p145 = scmp.ne.s32.totalorder %s137, %s140
    %p146 = scmp.eq.s32.totalorder %s12, 0
    %p147 = por %p145, %p146
    %p148 = scmp.ne.s32.totalorder %s137, %s140
    %p149 = scmp.eq.s32.totalorder %s17, 1
    %p150 = por %p148, %p149
    %p151 = scmp.ne.s32.totalorder %s140, %s141
    %p152 = scmp.eq.s32.totalorder %s17, 0
    %p153 = por %p151, %p152
    %p154 = scmp.ne.s32.totalorder %s140, %s141
    %p155 = scmp.eq.s32.totalorder %s18, 1
    %p156 = por %p154, %p155
    %p158 = scmp.ne.s32.totalorder %s141, %s157
    %p159 = scmp.eq.s32.totalorder %s18, 0
    %p160 = por %p158, %p159
    %p161 = scmp.le.s32.totalorder 1, %s12
    %p162 = scmp.lt.s32.totalorder %s12, 3
    %p163 = pnand %p161, %p162
    %p164 = pneg %p163
    // Predicated region
    $region9: #{bottleneck_pallas.4} parent=5 // pred_check
      _
    $region10: #{bottleneck_pallas.4} parent=5 // pred_check_branch
      %166 = sbr.rel (%p163) target = $region12
    $region11: #{bottleneck_pallas.4} parent=5 // pred_region
      %s167 = ssub.s32 %s12, 1
      // Predicated region
      $region13: #{bottleneck_pallas.4} parent=11 // pred_check
        %p168 = pneg %p59
      $region14: #{bottleneck_pallas.4} parent=11 // pred_check_branch
        %170 = sbr.rel (%p168) target = $region16
      $region15: #{bottleneck_pallas.4} parent=11 // pred_region
        _
      $region16: #{bottleneck_pallas.4} parent=11 // pred_fallthru
        _
      // Predicated region
      $region17: #{bottleneck_pallas.4} parent=11 // pred_check
        %p171 = pneg %p80
      $region18: #{bottleneck_pallas.4} parent=11 // pred_check_branch
        %173 = sbr.rel (%p171) target = $region20
      $region19: #{bottleneck_pallas.4} parent=11 // pred_region
        _
      $region20: #{bottleneck_pallas.4} parent=11 // pred_fallthru
        _
      // Predicated region
      $region21: #{bottleneck_pallas.4} parent=11 // pred_check
        %p174 = pneg %p101
      $region22: #{bottleneck_pallas.4} parent=11 // pred_check_branch
        %176 = sbr.rel (%p174) target = $region24
      $region23: #{bottleneck_pallas.4} parent=11 // pred_region
        _
      $region24: #{bottleneck_pallas.4} parent=11 // pred_fallthru
        _
    $region12: #{bottleneck_pallas.4} parent=5 // pred_fallthru
      _
    %p177 = scmp.lt.s32.totalorder %s12, 2
    // Predicated region
    $region25: #{bottleneck_pallas.4} parent=5 // pred_check
      %p178 = pneg %p177
    $region26: #{bottleneck_pallas.4} parent=5 // pred_check_branch
      %180 = sbr.rel (%p178) target = $region28
    $region27: #{bottleneck_pallas.4} parent=5 // pred_region
      // Predicated region
      $region29: #{bottleneck_pallas.4} parent=27 // pred_check
        %p181 = pneg %p32
      $region30: #{bottleneck_pallas.4} parent=27 // pred_check_branch
        %183 = sbr.rel (%p181) target = $region32
      $region31: #{bottleneck_pallas.4} parent=27 // pred_region
        %p184 = scmp.lt.s32.totalorder %s12, 1
        %s185 = scalar_select %p184, %s12, 1
        %s186 = smul.addr %s185, 32
        %s187 = smul.addr %s186, 8
        %s188 = scalar_lea.vmem %s0, %s187
      $region32: #{bottleneck_pallas.4} parent=27 // pred_fallthru
        _
    $region28: #{bottleneck_pallas.4} parent=5 // pred_fallthru
      _
    %p189 = scmp.le.s32.totalorder 1, %s12
    %p190 = scmp.lt.s32.totalorder %s12, 3
    %p191 = pnand %p189, %p190
    %p192 = pneg %p191
    // Predicated region
    $region33: #{bottleneck_pallas.4} parent=5 // pred_check
      _
    $region34: #{bottleneck_pallas.4} parent=5 // pred_check_branch
      %194 = sbr.rel (%p191) target = $region36
    $region35: #{bottleneck_pallas.4} parent=5 // pred_region
      %s195 = ssub.s32 %s12, 1
      %p196 = scmp.lt.s32.totalorder %s17, 1
      %s197 = scalar_select %p196, %s17, 1
      %s198 = smul.addr %s197, 32
      %s199 = smul.addr %s198, 8
      %s200 = scalar_lea.vmem %s0, %s199
      %p201 = pneg %p38
      %p202 = pneg %p35
      %p203 = pneg %p59
      %p204 = pneg %p56
      %p205 = pneg %p80
      %p206 = pneg %p77
      %p207 = pneg %p101
      %p208 = pneg %p98
      %p209 = pneg %p127
      %p210 = pneg %p124
      %p211 = scmp.lt.s32.totalorder %s17, 1
      %s212 = scalar_select %p211, %s17, 1
      %s213 = smul.addr %s212, 32
      %s214 = smul.addr %s213, 8
      %s215 = scalar_lea.vmem %s4, %s214
      %p216 = pneg %p153
      %p217 = pneg %p150
      %p218 = scmp.lt.s32.totalorder %s17, 1
      %s219 = scalar_select %p218, %s17, 1
      %s220 = smul.addr %s219, 2
      %s221 = scalar_lea.vmem %s5, %s220
      %p222 = scmp.lt.s32.totalorder %s17, 1
      %s223 = scalar_select %p222, %s17, 1
      %s224 = smul.addr %s223, 32
      %s225 = smul.addr %s224, 8
      %s226 = scalar_lea.vmem %s0, %s225
      %p227 = scmp.lt.s32.totalorder %s17, 1
      %s228 = scalar_select %p227, %s17, 1
      %s229 = smul.addr %s228, 32
      %s230 = smul.addr %s229, 8
      %s231 = scalar_lea.vmem %s4, %s230
      %p232 = scmp.lt.s32.totalorder %s17, 1
      %s233 = scalar_select %p232, %s17, 1
      %s234 = smul.addr %s233, 2
      %s235 = scalar_lea.vmem %s5, %s234
      %v236 = vld [vmem:[%s226] sm:$0xff]
      %v237 = vld [vmem:[%s226 + $0x8] sm:$0xff]
      %v238 = vld [vmem:[%s226 + $0x10] sm:$0xff]
      %v239 = vld [vmem:[%s226 + $0x18] sm:$0xff]
      %v240 = vld [vmem:[%s226 + $0x20] sm:$0xff]
      %v241 = vld [vmem:[%s226 + $0x28] sm:$0xff]
      %v242 = vld [vmem:[%s226 + $0x30] sm:$0xff]
      %v243 = vld [vmem:[%s226 + $0x38] sm:$0xff]
      %v244 = vld [vmem:[%s226 + $0x40] sm:$0xff]
      %v245 = vld [vmem:[%s226 + $0x48] sm:$0xff]
      %v246 = vld [vmem:[%s226 + $0x50] sm:$0xff]
      %v247 = vld [vmem:[%s226 + $0x58] sm:$0xff]
      %v248 = vld [vmem:[%s226 + $0x60] sm:$0xff]
      %v249 = vld [vmem:[%s226 + $0x68] sm:$0xff]
      %v250 = vld [vmem:[%s226 + $0x70] sm:$0xff]
      %v251 = vld [vmem:[%s226 + $0x78] sm:$0xff]
      %v252 = vld [vmem:[%s226 + $0x80] sm:$0xff]
      %v253 = vld [vmem:[%s226 + $0x88] sm:$0xff]
      %v254 = vld [vmem:[%s226 + $0x90] sm:$0xff]
      %v255 = vld [vmem:[%s226 + $0x98] sm:$0xff]
      %v256 = vld [vmem:[%s226 + $0xa0] sm:$0xff]
      %v257 = vld [vmem:[%s226 + $0xa8] sm:$0xff]
      %v258 = vld [vmem:[%s226 + $0xb0] sm:$0xff]
      %v259 = vld [vmem:[%s226 + $0xb8] sm:$0xff]
      %v260 = vld [vmem:[%s226 + $0xc0] sm:$0xff]
      %v261 = vld [vmem:[%s226 + $0xc8] sm:$0xff]
      %v262 = vld [vmem:[%s226 + $0xd0] sm:$0xff]
      %v263 = vld [vmem:[%s226 + $0xd8] sm:$0xff]
      %v264 = vld [vmem:[%s226 + $0xe0] sm:$0xff]
      %v265 = vld [vmem:[%s226 + $0xe8] sm:$0xff]
      %v266 = vld [vmem:[%s226 + $0xf0] sm:$0xff]
      %v267 = vld [vmem:[%s226 + $0xf8] sm:$0xff]
      %v268 = vld [vmem:[%s1] sm:$0x1]
      %v270 = vperm.slane %v268, 0
      %v272 = vmul.f32 %v236, %v270
      %v273 = vmul.f32 %v237, %v270
      %v274 = vmul.f32 %v238, %v270
      %v275 = vmul.f32 %v239, %v270
      %v276 = vmul.f32 %v240, %v270
      %v277 = vmul.f32 %v241, %v270
      %v278 = vmul.f32 %v242, %v270
      %v279 = vmul.f32 %v243, %v270
      %v280 = vmul.f32 %v244, %v270
      %v281 = vmul.f32 %v245, %v270
      %v282 = vmul.f32 %v246, %v270
      %v283 = vmul.f32 %v247, %v270
      %v284 = vmul.f32 %v248, %v270
      %v285 = vmul.f32 %v249, %v270
      %v286 = vmul.f32 %v250, %v270
      %v287 = vmul.f32 %v251, %v270
      %v288 = vmul.f32 %v252, %v270
      %v289 = vmul.f32 %v253, %v270
      %v290 = vmul.f32 %v254, %v270
      %v291 = vmul.f32 %v255, %v270
      %v292 = vmul.f32 %v256, %v270
      %v293 = vmul.f32 %v257, %v270
      %v294 = vmul.f32 %v258, %v270
      %v295 = vmul.f32 %v259, %v270
      %v296 = vmul.f32 %v260, %v270
      %v297 = vmul.f32 %v261, %v270
      %v298 = vmul.f32 %v262, %v270
      %v299 = vmul.f32 %v263, %v270
      %v300 = vmul.f32 %v264, %v270
      %v301 = vmul.f32 %v265, %v270
      %v302 = vmul.f32 %v266, %v270
      %v303 = vmul.f32 %v267, %v270
      %v304 = vld [vmem:[%s2] sm:$0x1]
      %v306 = vperm.slane %v304, 0
      %v308 = vadd.f32 %v272, %v306
      %v309 = vadd.f32 %v273, %v306
      %v310 = vadd.f32 %v274, %v306
      %v311 = vadd.f32 %v275, %v306
      %v312 = vadd.f32 %v276, %v306
      %v313 = vadd.f32 %v277, %v306
      %v314 = vadd.f32 %v278, %v306
      %v315 = vadd.f32 %v279, %v306
      %v316 = vadd.f32 %v280, %v306
      %v317 = vadd.f32 %v281, %v306
      %v318 = vadd.f32 %v282, %v306
      %v319 = vadd.f32 %v283, %v306
      %v320 = vadd.f32 %v284, %v306
      %v321 = vadd.f32 %v285, %v306
      %v322 = vadd.f32 %v286, %v306
      %v323 = vadd.f32 %v287, %v306
      %v324 = vadd.f32 %v288, %v306
      %v325 = vadd.f32 %v289, %v306
      %v326 = vadd.f32 %v290, %v306
      %v327 = vadd.f32 %v291, %v306
      %v328 = vadd.f32 %v292, %v306
      %v329 = vadd.f32 %v293, %v306
      %v330 = vadd.f32 %v294, %v306
      %v331 = vadd.f32 %v295, %v306
      %v332 = vadd.f32 %v296, %v306
      %v333 = vadd.f32 %v297, %v306
      %v334 = vadd.f32 %v298, %v306
      %v335 = vadd.f32 %v299, %v306
      %v336 = vadd.f32 %v300, %v306
      %v337 = vadd.f32 %v301, %v306
      %v338 = vadd.f32 %v302, %v306
      %v339 = vadd.f32 %v303, %v306
      %v340 = vmul.f32 %v308, 0.5
      %v341 = vmul.f32 %v309, 0.5
      %v342 = vmul.f32 %v310, 0.5
      %v343 = vmul.f32 %v311, 0.5
      %v344 = vmul.f32 %v312, 0.5
      %v345 = vmul.f32 %v313, 0.5
      %v346 = vmul.f32 %v314, 0.5
      %v347 = vmul.f32 %v315, 0.5
      %v348 = vmul.f32 %v316, 0.5
      %v349 = vmul.f32 %v317, 0.5
      %v350 = vmul.f32 %v318, 0.5
      %v351 = vmul.f32 %v319, 0.5
      %v352 = vmul.f32 %v320, 0.5
      %v353 = vmul.f32 %v321, 0.5
      %v354 = vmul.f32 %v322, 0.5
      %v355 = vmul.f32 %v323, 0.5
      %v356 = vmul.f32 %v324, 0.5
      %v357 = vmul.f32 %v325, 0.5
      %v358 = vmul.f32 %v326, 0.5
      %v359 = vmul.f32 %v327, 0.5
      %v360 = vmul.f32 %v328, 0.5
      %v361 = vmul.f32 %v329, 0.5
      %v362 = vmul.f32 %v330, 0.5
      %v363 = vmul.f32 %v331, 0.5
      %v364 = vmul.f32 %v332, 0.5
      %v365 = vmul.f32 %v333, 0.5
      %v366 = vmul.f32 %v334, 0.5
      %v367 = vmul.f32 %v335, 0.5
      %v368 = vmul.f32 %v336, 0.5
      %v369 = vmul.f32 %v337, 0.5
      %v370 = vmul.f32 %v338, 0.5
      %v371 = vmul.f32 %v339, 0.5
      %v372 = vtanh.pop %v340
      %v373 = vtanh.pop %v341
      %v374 = vtanh.pop %v342
      %v375 = vtanh.pop %v343
      %v376 = vtanh.pop %v344
      %v377 = vtanh.pop %v345
      %v378 = vtanh.pop %v346
      %v379 = vtanh.pop %v347
      %v380 = vtanh.pop %v348
      %v381 = vtanh.pop %v349
      %v382 = vtanh.pop %v350
      %v383 = vtanh.pop %v351
      %v384 = vtanh.pop %v352
      %v385 = vtanh.pop %v353
      %v386 = vtanh.pop %v354
      %v387 = vtanh.pop %v355
      %v388 = vtanh.pop %v356
      %v389 = vtanh.pop %v357
      %v390 = vtanh.pop %v358
      %v391 = vtanh.pop %v359
      %v392 = vtanh.pop %v360
      %v393 = vtanh.pop %v361
      %v394 = vtanh.pop %v362
      %v395 = vtanh.pop %v363
      %v396 = vtanh.pop %v364
      %v397 = vtanh.pop %v365
      %v398 = vtanh.pop %v366
      %v399 = vtanh.pop %v367
      %v400 = vtanh.pop %v368
      %v401 = vtanh.pop %v369
      %v402 = vtanh.pop %v370
      %v403 = vtanh.pop %v371
      %v404 = vadd.f32 %v372, 1.0
      %v405 = vadd.f32 %v373, 1.0
      %v406 = vadd.f32 %v374, 1.0
      %v407 = vadd.f32 %v375, 1.0
      %v408 = vadd.f32 %v376, 1.0
      %v409 = vadd.f32 %v377, 1.0
      %v410 = vadd.f32 %v378, 1.0
      %v411 = vadd.f32 %v379, 1.0
      %v412 = vadd.f32 %v380, 1.0
      %v413 = vadd.f32 %v381, 1.0
      %v414 = vadd.f32 %v382, 1.0
      %v415 = vadd.f32 %v383, 1.0
      %v416 = vadd.f32 %v384, 1.0
      %v417 = vadd.f32 %v385, 1.0
      %v418 = vadd.f32 %v386, 1.0
      %v419 = vadd.f32 %v387, 1.0
      %v420 = vadd.f32 %v388, 1.0
      %v421 = vadd.f32 %v389, 1.0
      %v422 = vadd.f32 %v390, 1.0
      %v423 = vadd.f32 %v391, 1.0
      %v424 = vadd.f32 %v392, 1.0
      %v425 = vadd.f32 %v393, 1.0
      %v426 = vadd.f32 %v394, 1.0
      %v427 = vadd.f32 %v395, 1.0
      %v428 = vadd.f32 %v396, 1.0
      %v429 = vadd.f32 %v397, 1.0
      %v430 = vadd.f32 %v398, 1.0
      %v431 = vadd.f32 %v399, 1.0
      %v432 = vadd.f32 %v400, 1.0
      %v433 = vadd.f32 %v401, 1.0
      %v434 = vadd.f32 %v402, 1.0
      %v435 = vadd.f32 %v403, 1.0
      %v436 = vmul.f32 %v404, 0.5
      %v437 = vmul.f32 %v405, 0.5
      %v438 = vmul.f32 %v406, 0.5
      %v439 = vmul.f32 %v407, 0.5
      %v440 = vmul.f32 %v408, 0.5
      %v441 = vmul.f32 %v409, 0.5
      %v442 = vmul.f32 %v410, 0.5
      %v443 = vmul.f32 %v411, 0.5
      %v444 = vmul.f32 %v412, 0.5
      %v445 = vmul.f32 %v413, 0.5
      %v446 = vmul.f32 %v414, 0.5
      %v447 = vmul.f32 %v415, 0.5
      %v448 = vmul.f32 %v416, 0.5
      %v449 = vmul.f32 %v417, 0.5
      %v450 = vmul.f32 %v418, 0.5
      %v451 = vmul.f32 %v419, 0.5
      %v452 = vmul.f32 %v420, 0.5
      %v453 = vmul.f32 %v421, 0.5
      %v454 = vmul.f32 %v422, 0.5
      %v455 = vmul.f32 %v423, 0.5
      %v456 = vmul.f32 %v424, 0.5
      %v457 = vmul.f32 %v425, 0.5
      %v458 = vmul.f32 %v426, 0.5
      %v459 = vmul.f32 %v427, 0.5
      %v460 = vmul.f32 %v428, 0.5
      %v461 = vmul.f32 %v429, 0.5
      %v462 = vmul.f32 %v430, 0.5
      %v463 = vmul.f32 %v431, 0.5
      %v464 = vmul.f32 %v432, 0.5
      %v465 = vmul.f32 %v433, 0.5
      %v466 = vmul.f32 %v434, 0.5
      %v467 = vmul.f32 %v435, 0.5
      %v468 = vmul.f32 %v308, %v436
      %v469 = vmul.f32 %v309, %v437
      %v470 = vmul.f32 %v310, %v438
      %v471 = vmul.f32 %v311, %v439
      %v472 = vmul.f32 %v312, %v440
      %v473 = vmul.f32 %v313, %v441
      %v474 = vmul.f32 %v314, %v442
      %v475 = vmul.f32 %v315, %v443
      %v476 = vmul.f32 %v316, %v444
      %v477 = vmul.f32 %v317, %v445
      %v478 = vmul.f32 %v318, %v446
      %v479 = vmul.f32 %v319, %v447
      %v480 = vmul.f32 %v320, %v448
      %v481 = vmul.f32 %v321, %v449
      %v482 = vmul.f32 %v322, %v450
      %v483 = vmul.f32 %v323, %v451
      %v484 = vmul.f32 %v324, %v452
      %v485 = vmul.f32 %v325, %v453
      %v486 = vmul.f32 %v326, %v454
      %v487 = vmul.f32 %v327, %v455
      %v488 = vmul.f32 %v328, %v456
      %v489 = vmul.f32 %v329, %v457
      %v490 = vmul.f32 %v330, %v458
      %v491 = vmul.f32 %v331, %v459
      %v492 = vmul.f32 %v332, %v460
      %v493 = vmul.f32 %v333, %v461
      %v494 = vmul.f32 %v334, %v462
      %v495 = vmul.f32 %v335, %v463
      %v496 = vmul.f32 %v336, %v464
      %v497 = vmul.f32 %v337, %v465
      %v498 = vmul.f32 %v338, %v466
      %v499 = vmul.f32 %v339, %v467
      %500 = vst [vmem:[#allocation2] sm:$0xff] 0.0
      %501 = vst [vmem:[#allocation2 + $0x8] sm:$0xff] 0.0
      %502 = vst [vmem:[#allocation2 + $0x10] sm:$0x3] 0.0
      %s503 = scalar_lea.vmem [#allocation2], 408
      %504 = vst [vmem:[%s503] sm:$0xff] 0.0
      %505 = vst [vmem:[%s503 + $0x8] sm:$0xff] 0.0
      %506 = vst [vmem:[%s503 + $0x10] sm:$0x3] 0.0
      %s507 = scalar_lea.vmem [#allocation2], 24
      %508 = vst [vmem:[%s507] sm:$0x1] 0.0
      %509 = vst [vmem:[%s507 + $0x18] sm:$0x1] 0.0
      %510 = vst [vmem:[%s507 + $0x30] sm:$0x1] 0.0
      %511 = vst [vmem:[%s507 + $0x48] sm:$0x1] 0.0
      %512 = vst [vmem:[%s507 + $0x60] sm:$0x1] 0.0
      %513 = vst [vmem:[%s507 + $0x78] sm:$0x1] 0.0
      %514 = vst [vmem:[%s507 + $0x90] sm:$0x1] 0.0
      %515 = vst [vmem:[%s507 + $0xa8] sm:$0x1] 0.0
      %516 = vst [vmem:[%s507 + $0xc0] sm:$0x1] 0.0
      %517 = vst [vmem:[%s507 + $0xd8] sm:$0x1] 0.0
      %518 = vst [vmem:[%s507 + $0xf0] sm:$0x1] 0.0
      %519 = vst [vmem:[%s507 + $0x108] sm:$0x1] 0.0
      %520 = vst [vmem:[%s507 + $0x120] sm:$0x1] 0.0
      %521 = vst [vmem:[%s507 + $0x138] sm:$0x1] 0.0
      %522 = vst [vmem:[%s507 + $0x150] sm:$0x1] 0.0
      %523 = vst [vmem:[%s507 + $0x168] sm:$0x1] 0.0
      %524 = vst [vmem:[%s507 + $0x11] sm:$0x1] 0.0
      %525 = vst [vmem:[%s507 + $0x29] sm:$0x1] 0.0
      %526 = vst [vmem:[%s507 + $0x41] sm:$0x1] 0.0
      %527 = vst [vmem:[%s507 + $0x59] sm:$0x1] 0.0
      %528 = vst [vmem:[%s507 + $0x71] sm:$0x1] 0.0
      %529 = vst [vmem:[%s507 + $0x89] sm:$0x1] 0.0
      %530 = vst [vmem:[%s507 + $0xa1] sm:$0x1] 0.0
      %531 = vst [vmem:[%s507 + $0xb9] sm:$0x1] 0.0
      %532 = vst [vmem:[%s507 + $0xd1] sm:$0x1] 0.0
      %533 = vst [vmem:[%s507 + $0xe9] sm:$0x1] 0.0
      %534 = vst [vmem:[%s507 + $0x101] sm:$0x1] 0.0
      %535 = vst [vmem:[%s507 + $0x119] sm:$0x1] 0.0
      %536 = vst [vmem:[%s507 + $0x131] sm:$0x1] 0.0
      %537 = vst [vmem:[%s507 + $0x149] sm:$0x1] 0.0
      %538 = vst [vmem:[%s507 + $0x161] sm:$0x1] 0.0
      %539 = vst [vmem:[%s507 + $0x179] sm:$0x1] 0.0
      %540 = vst [vmem:[%s507 + $0x1] sm:$0xff] %v468
      %541 = vst [vmem:[%s507 + $0x9] sm:$0xff] %v469
      %542 = vst [vmem:[%s507 + $0x19] sm:$0xff] %v470
      %543 = vst [vmem:[%s507 + $0x21] sm:$0xff] %v471
      %544 = vst [vmem:[%s507 + $0x31] sm:$0xff] %v472
      %545 = vst [vmem:[%s507 + $0x39] sm:$0xff] %v473
      %546 = vst [vmem:[%s507 + $0x49] sm:$0xff] %v474
      %547 = vst [vmem:[%s507 + $0x51] sm:$0xff] %v475
      %548 = vst [vmem:[%s507 + $0x61] sm:$0xff] %v476
      %549 = vst [vmem:[%s507 + $0x69] sm:$0xff] %v477
      %550 = vst [vmem:[%s507 + $0x79] sm:$0xff] %v478
      %551 = vst [vmem:[%s507 + $0x81] sm:$0xff] %v479
      %552 = vst [vmem:[%s507 + $0x91] sm:$0xff] %v480
      %553 = vst [vmem:[%s507 + $0x99] sm:$0xff] %v481
      %554 = vst [vmem:[%s507 + $0xa9] sm:$0xff] %v482
      %555 = vst [vmem:[%s507 + $0xb1] sm:$0xff] %v483
      %556 = vst [vmem:[%s507 + $0xc1] sm:$0xff] %v484
      %557 = vst [vmem:[%s507 + $0xc9] sm:$0xff] %v485
      %558 = vst [vmem:[%s507 + $0xd9] sm:$0xff] %v486
      %559 = vst [vmem:[%s507 + $0xe1] sm:$0xff] %v487
      %560 = vst [vmem:[%s507 + $0xf1] sm:$0xff] %v488
      %561 = vst [vmem:[%s507 + $0xf9] sm:$0xff] %v489
      %562 = vst [vmem:[%s507 + $0x109] sm:$0xff] %v490
      %563 = vst [vmem:[%s507 + $0x111] sm:$0xff] %v491
      %564 = vst [vmem:[%s507 + $0x121] sm:$0xff] %v492
      %565 = vst [vmem:[%s507 + $0x129] sm:$0xff] %v493
      %566 = vst [vmem:[%s507 + $0x139] sm:$0xff] %v494
      %567 = vst [vmem:[%s507 + $0x141] sm:$0xff] %v495
      %568 = vst [vmem:[%s507 + $0x151] sm:$0xff] %v496
      %569 = vst [vmem:[%s507 + $0x159] sm:$0xff] %v497
      %570 = vst [vmem:[%s507 + $0x169] sm:$0xff] %v498
      %571 = vst [vmem:[%s507 + $0x171] sm:$0xff] %v499
      %v572 = vld [vmem:[#allocation2] sm:$0xff]
      %v573 = vld [vmem:[#allocation2 + $0x8] sm:$0xff]
      %v574 = vld [vmem:[#allocation2 + $0x18] sm:$0xff]
      %v575 = vld [vmem:[#allocation2 + $0x20] sm:$0xff]
      %v576 = vld [vmem:[#allocation2 + $0x30] sm:$0xff]
      %v577 = vld [vmem:[#allocation2 + $0x38] sm:$0xff]
      %v578 = vld [vmem:[#allocation2 + $0x48] sm:$0xff]
      %v579 = vld [vmem:[#allocation2 + $0x50] sm:$0xff]
      %v580 = vld [vmem:[#allocation2 + $0x60] sm:$0xff]
      %v581 = vld [vmem:[#allocation2 + $0x68] sm:$0xff]
      %v582 = vld [vmem:[#allocation2 + $0x78] sm:$0xff]
      %v583 = vld [vmem:[#allocation2 + $0x80] sm:$0xff]
      %v584 = vld [vmem:[#allocation2 + $0x90] sm:$0xff]
      %v585 = vld [vmem:[#allocation2 + $0x98] sm:$0xff]
      %v586 = vld [vmem:[#allocation2 + $0xa8] sm:$0xff]
      %v587 = vld [vmem:[#allocation2 + $0xb0] sm:$0xff]
      %v588 = vld [vmem:[#allocation2 + $0xc0] sm:$0xff]
      %v589 = vld [vmem:[#allocation2 + $0xc8] sm:$0xff]
      %v590 = vld [vmem:[#allocation2 + $0xd8] sm:$0xff]
      %v591 = vld [vmem:[#allocation2 + $0xe0] sm:$0xff]
      %v592 = vld [vmem:[#allocation2 + $0xf0] sm:$0xff]
      %v593 = vld [vmem:[#allocation2 + $0xf8] sm:$0xff]
      %v594 = vld [vmem:[#allocation2 + $0x108] sm:$0xff]
      %v595 = vld [vmem:[#allocation2 + $0x110] sm:$0xff]
      %v596 = vld [vmem:[#allocation2 + $0x120] sm:$0xff]
      %v597 = vld [vmem:[#allocation2 + $0x128] sm:$0xff]
      %v598 = vld [vmem:[#allocation2 + $0x138] sm:$0xff]
      %v599 = vld [vmem:[#allocation2 + $0x140] sm:$0xff]
      %v600 = vld [vmem:[#allocation2 + $0x150] sm:$0xff]
      %v601 = vld [vmem:[#allocation2 + $0x158] sm:$0xff]
      %v602 = vld [vmem:[#allocation2 + $0x168] sm:$0xff]
      %v603 = vld [vmem:[#allocation2 + $0x170] sm:$0xff]
      %v604 = vld [vmem:[%s3] sm:$0xff]
      %v605 = vld [vmem:[%s3 + $0x8] sm:$0xff]
      %v606 = vld [vmem:[%s3 + $0x10] sm:$0xff]
      %v607 = vld [vmem:[%s3 + $0x18] sm:$0xff]
      %v608 = vld [vmem:[%s3 + $0x20] sm:$0xff]
      %v609 = vld [vmem:[%s3 + $0x28] sm:$0xff]
      %v610 = vld [vmem:[%s3 + $0x30] sm:$0xff]
      %v611 = vld [vmem:[%s3 + $0x38] sm:$0xff]
      %v612 = vld [vmem:[%s3 + $0x40] sm:$0xff]
      %v613 = vld [vmem:[%s3 + $0x48] sm:$0xff]
      %v614 = vld [vmem:[%s3 + $0x50] sm:$0xff]
      %v615 = vld [vmem:[%s3 + $0x58] sm:$0xff]
      %v616 = vld [vmem:[%s3 + $0x60] sm:$0xff]
      %v617 = vld [vmem:[%s3 + $0x68] sm:$0xff]
      %v618 = vld [vmem:[%s3 + $0x70] sm:$0xff]
      %v619 = vld [vmem:[%s3 + $0x78] sm:$0xff]
      %v620 = vld [vmem:[#allocation2 + $0x1] sm:$0xff]
      %v621 = vld [vmem:[#allocation2 + $0x9] sm:$0xff]
      %v622 = vld [vmem:[#allocation2 + $0x19] sm:$0xff]
      %v623 = vld [vmem:[#allocation2 + $0x21] sm:$0xff]
      %v624 = vld [vmem:[#allocation2 + $0x31] sm:$0xff]
      %v625 = vld [vmem:[#allocation2 + $0x39] sm:$0xff]
      %v626 = vld [vmem:[#allocation2 + $0x49] sm:$0xff]
      %v627 = vld [vmem:[#allocation2 + $0x51] sm:$0xff]
      %v628 = vld [vmem:[#allocation2 + $0x61] sm:$0xff]
      %v629 = vld [vmem:[#allocation2 + $0x69] sm:$0xff]
      %v630 = vld [vmem:[#allocation2 + $0x79] sm:$0xff]
      %v631 = vld [vmem:[#allocation2 + $0x81] sm:$0xff]
      %v632 = vld [vmem:[#allocation2 + $0x91] sm:$0xff]
      %v633 = vld [vmem:[#allocation2 + $0x99] sm:$0xff]
      %v634 = vld [vmem:[#allocation2 + $0xa9] sm:$0xff]
      %v635 = vld [vmem:[#allocation2 + $0xb1] sm:$0xff]
      %v636 = vld [vmem:[#allocation2 + $0xc1] sm:$0xff]
      %v637 = vld [vmem:[#allocation2 + $0xc9] sm:$0xff]
      %v638 = vld [vmem:[#allocation2 + $0xd9] sm:$0xff]
      %v639 = vld [vmem:[#allocation2 + $0xe1] sm:$0xff]
      %v640 = vld [vmem:[#allocation2 + $0xf1] sm:$0xff]
      %v641 = vld [vmem:[#allocation2 + $0xf9] sm:$0xff]
      %v642 = vld [vmem:[#allocation2 + $0x109] sm:$0xff]
      %v643 = vld [vmem:[#allocation2 + $0x111] sm:$0xff]
      %v644 = vld [vmem:[#allocation2 + $0x121] sm:$0xff]
      %v645 = vld [vmem:[#allocation2 + $0x129] sm:$0xff]
      %v646 = vld [vmem:[#allocation2 + $0x139] sm:$0xff]
      %v647 = vld [vmem:[#allocation2 + $0x141] sm:$0xff]
      %v648 = vld [vmem:[#allocation2 + $0x151] sm:$0xff]
      %v649 = vld [vmem:[#allocation2 + $0x159] sm:$0xff]
      %v650 = vld [vmem:[#allocation2 + $0x169] sm:$0xff]
      %v651 = vld [vmem:[#allocation2 + $0x171] sm:$0xff]
      %s652 = scalar_lea.vmem %s3, 128
      %v653 = vld [vmem:[%s652] sm:$0xff]
      %v654 = vld [vmem:[%s652 + $0x8] sm:$0xff]
      %v655 = vld [vmem:[%s652 + $0x10] sm:$0xff]
      %v656 = vld [vmem:[%s652 + $0x18] sm:$0xff]
      %v657 = vld [vmem:[%s652 + $0x20] sm:$0xff]
      %v658 = vld [vmem:[%s652 + $0x28] sm:$0xff]
      %v659 = vld [vmem:[%s652 + $0x30] sm:$0xff]
      %v660 = vld [vmem:[%s652 + $0x38] sm:$0xff]
      %v661 = vld [vmem:[%s652 + $0x40] sm:$0xff]
      %v662 = vld [vmem:[%s652 + $0x48] sm:$0xff]
      %v663 = vld [vmem:[%s652 + $0x50] sm:$0xff]
      %v664 = vld [vmem:[%s652 + $0x58] sm:$0xff]
      %v665 = vld [vmem:[%s652 + $0x60] sm:$0xff]
      %v666 = vld [vmem:[%s652 + $0x68] sm:$0xff]
      %v667 = vld [vmem:[%s652 + $0x70] sm:$0xff]
      %v668 = vld [vmem:[%s652 + $0x78] sm:$0xff]
      %669 = vmatpush.msra.mxu0 %v668
      %670 = vmatpush.msra.mxu0 %v667
      %671 = vmatpush.msra.mxu0 %v666
      %672 = vmatpush.msra.mxu0 %v665
      %673 = vmatpush.msra.mxu0 %v664
      %674 = vmatpush.msra.mxu0 %v663
      %675 = vmatpush.msra.mxu0 %v662
      %676 = vmatpush.msra.mxu0 %v661
      %677 = vmatpush.msra.mxu0 %v660
      %678 = vmatpush.msra.mxu0 %v659
      %679 = vmatpush.msra.mxu0 %v658
      %680 = vmatpush.msra.mxu0 %v657
      %681 = vmatpush.msra.mxu0 %v656
      %682 = vmatpush.msra.mxu0 %v655
      %683 = vmatpush.msra.mxu0 %v654
      %684 = vmatpush.msra.mxu0 %v653
      %685 = vmatmul.f32.gmra.mxu0 %v620
      %v686 = vpop.f32.mrf.mxu0
      %v687 = vadd.f32 0.0, %v686
      %688 = vmatmul.f32.gmra.mxu0 %v621
      %v689 = vpop.f32.mrf.mxu0
      %v690 = vadd.f32 0.0, %v689
      %691 = vmatmul.f32.gmra.mxu0 %v622
      %v692 = vpop.f32.mrf.mxu0
      %v693 = vadd.f32 0.0, %v692
      %694 = vmatmul.f32.gmra.mxu0 %v623
      %v695 = vpop.f32.mrf.mxu0
      %v696 = vadd.f32 0.0, %v695
      %697 = vmatmul.f32.gmra.mxu0 %v624
      %v698 = vpop.f32.mrf.mxu0
      %v699 = vadd.f32 0.0, %v698
      %700 = vmatmul.f32.gmra.mxu0 %v625
      %v701 = vpop.f32.mrf.mxu0
      %v702 = vadd.f32 0.0, %v701
      %703 = vmatmul.f32.gmra.mxu0 %v626
      %v704 = vpop.f32.mrf.mxu0
      %v705 = vadd.f32 0.0, %v704
      %706 = vmatmul.f32.gmra.mxu0 %v627
      %v707 = vpop.f32.mrf.mxu0
      %v708 = vadd.f32 0.0, %v707
      %709 = vmatmul.f32.gmra.mxu0 %v628
      %v710 = vpop.f32.mrf.mxu0
      %v711 = vadd.f32 0.0, %v710
      %712 = vmatmul.f32.gmra.mxu0 %v629
      %v713 = vpop.f32.mrf.mxu0
      %v714 = vadd.f32 0.0, %v713
      %715 = vmatmul.f32.gmra.mxu0 %v630
      %v716 = vpop.f32.mrf.mxu0
      %v717 = vadd.f32 0.0, %v716
      %718 = vmatmul.f32.gmra.mxu0 %v631
      %v719 = vpop.f32.mrf.mxu0
      %v720 = vadd.f32 0.0, %v719
      %721 = vmatmul.f32.gmra.mxu0 %v632
      %v722 = vpop.f32.mrf.mxu0
      %v723 = vadd.f32 0.0, %v722
      %724 = vmatmul.f32.gmra.mxu0 %v633
      %v725 = vpop.f32.mrf.mxu0
      %v726 = vadd.f32 0.0, %v725
      %727 = vmatmul.f32.gmra.mxu0 %v634
      %v728 = vpop.f32.mrf.mxu0
      %v729 = vadd.f32 0.0, %v728
      %730 = vmatmul.f32.gmra.mxu0 %v635
      %v731 = vpop.f32.mrf.mxu0
      %v732 = vadd.f32 0.0, %v731
      %733 = vmatmul.f32.gmra.mxu0 %v636
      %v734 = vpop.f32.mrf.mxu0
      %v735 = vadd.f32 0.0, %v734
      %736 = vmatmul.f32.gmra.mxu0 %v637
      %v737 = vpop.f32.mrf.mxu0
      %v738 = vadd.f32 0.0, %v737
      %739 = vmatmul.f32.gmra.mxu0 %v638
      %v740 = vpop.f32.mrf.mxu0
      %v741 = vadd.f32 0.0, %v740
      %742 = vmatmul.f32.gmra.mxu0 %v639
      %v743 = vpop.f32.mrf.mxu0
      %v744 = vadd.f32 0.0, %v743
      %745 = vmatmul.f32.gmra.mxu0 %v640
      %v746 = vpop.f32.mrf.mxu0
      %v747 = vadd.f32 0.0, %v746
      %748 = vmatmul.f32.gmra.mxu0 %v641
      %v749 = vpop.f32.mrf.mxu0
      %v750 = vadd.f32 0.0, %v749
      %751 = vmatmul.f32.gmra.mxu0 %v642
      %v752 = vpop.f32.mrf.mxu0
      %v753 = vadd.f32 0.0, %v752
      %754 = vmatmul.f32.gmra.mxu0 %v643
      %v755 = vpop.f32.mrf.mxu0
      %v756 = vadd.f32 0.0, %v755
      %757 = vmatmul.f32.gmra.mxu0 %v644
      %v758 = vpop.f32.mrf.mxu0
      %v759 = vadd.f32 0.0, %v758
      %760 = vmatmul.f32.gmra.mxu0 %v645
      %v761 = vpop.f32.mrf.mxu0
      %v762 = vadd.f32 0.0, %v761
      %763 = vmatmul.f32.gmra.mxu0 %v646
      %v764 = vpop.f32.mrf.mxu0
      %v765 = vadd.f32 0.0, %v764
      %766 = vmatmul.f32.gmra.mxu0 %v647
      %v767 = vpop.f32.mrf.mxu0
      %v768 = vadd.f32 0.0, %v767
      %769 = vmatmul.f32.gmra.mxu0 %v648
      %v770 = vpop.f32.mrf.mxu0
      %v771 = vadd.f32 0.0, %v770
      %772 = vmatmul.f32.gmra.mxu0 %v649
      %v773 = vpop.f32.mrf.mxu0
      %v774 = vadd.f32 0.0, %v773
      %775 = vmatmul.f32.gmra.mxu0 %v650
      %v776 = vpop.f32.mrf.mxu0
      %v777 = vadd.f32 0.0, %v776
      %778 = vmatmul.f32.gmra.mxu0 %v651
      %v779 = vpop.f32.mrf.mxu0
      %v780 = vadd.f32 0.0, %v779
      %781 = vdwg.mxu0
      %782 = vmatpush.msra.mxu0 %v619
      %783 = vmatpush.msra.mxu0 %v618
      %784 = vmatpush.msra.mxu0 %v617
      %785 = vmatpush.msra.mxu0 %v616
      %786 = vmatpush.msra.mxu0 %v615
      %787 = vmatpush.msra.mxu0 %v614
      %788 = vmatpush.msra.mxu0 %v613
      %789 = vmatpush.msra.mxu0 %v612
      %790 = vmatpush.msra.mxu0 %v611
      %791 = vmatpush.msra.mxu0 %v610
      %792 = vmatpush.msra.mxu0 %v609
      %793 = vmatpush.msra.mxu0 %v608
      %794 = vmatpush.msra.mxu0 %v607
      %795 = vmatpush.msra.mxu0 %v606
      %796 = vmatpush.msra.mxu0 %v605
      %797 = vmatpush.msra.mxu0 %v604
      %798 = vmatmul.f32.gmra.mxu0 %v572
      %v799 = vpop.f32.mrf.mxu0
      %v800 = vadd.f32 %v687, %v799
      %801 = vmatmul.f32.gmra.mxu0 %v573
      %v802 = vpop.f32.mrf.mxu0
      %v803 = vadd.f32 %v690, %v802
      %804 = vmatmul.f32.gmra.mxu0 %v574
      %v805 = vpop.f32.mrf.mxu0
      %v806 = vadd.f32 %v693, %v805
      %807 = vmatmul.f32.gmra.mxu0 %v575
      %v808 = vpop.f32.mrf.mxu0
      %v809 = vadd.f32 %v696, %v808
      %810 = vmatmul.f32.gmra.mxu0 %v576
      %v811 = vpop.f32.mrf.mxu0
      %v812 = vadd.f32 %v699, %v811
      %813 = vmatmul.f32.gmra.mxu0 %v577
      %v814 = vpop.f32.mrf.mxu0
      %v815 = vadd.f32 %v702, %v814
      %816 = vmatmul.f32.gmra.mxu0 %v578
      %v817 = vpop.f32.mrf.mxu0
      %v818 = vadd.f32 %v705, %v817
      %819 = vmatmul.f32.gmra.mxu0 %v579
      %v820 = vpop.f32.mrf.mxu0
      %v821 = vadd.f32 %v708, %v820
      %822 = vmatmul.f32.gmra.mxu0 %v580
      %v823 = vpop.f32.mrf.mxu0
      %v824 = vadd.f32 %v711, %v823
      %825 = vmatmul.f32.gmra.mxu0 %v581
      %v826 = vpop.f32.mrf.mxu0
      %v827 = vadd.f32 %v714, %v826
      %828 = vmatmul.f32.gmra.mxu0 %v582
      %v829 = vpop.f32.mrf.mxu0
      %v830 = vadd.f32 %v717, %v829
      %831 = vmatmul.f32.gmra.mxu0 %v583
      %v832 = vpop.f32.mrf.mxu0
      %v833 = vadd.f32 %v720, %v832
      %834 = vmatmul.f32.gmra.mxu0 %v584
      %v835 = vpop.f32.mrf.mxu0
      %v836 = vadd.f32 %v723, %v835
      %837 = vmatmul.f32.gmra.mxu0 %v585
      %v838 = vpop.f32.mrf.mxu0
      %v839 = vadd.f32 %v726, %v838
      %840 = vmatmul.f32.gmra.mxu0 %v586
      %v841 = vpop.f32.mrf.mxu0
      %v842 = vadd.f32 %v729, %v841
      %843 = vmatmul.f32.gmra.mxu0 %v587
      %v844 = vpop.f32.mrf.mxu0
      %v845 = vadd.f32 %v732, %v844
      %846 = vmatmul.f32.gmra.mxu0 %v588
      %v847 = vpop.f32.mrf.mxu0
      %v848 = vadd.f32 %v735, %v847
      %849 = vmatmul.f32.gmra.mxu0 %v589
      %v850 = vpop.f32.mrf.mxu0
      %v851 = vadd.f32 %v738, %v850
      %852 = vmatmul.f32.gmra.mxu0 %v590
      %v853 = vpop.f32.mrf.mxu0
      %v854 = vadd.f32 %v741, %v853
      %855 = vmatmul.f32.gmra.mxu0 %v591
      %v856 = vpop.f32.mrf.mxu0
      %v857 = vadd.f32 %v744, %v856
      %858 = vmatmul.f32.gmra.mxu0 %v592
      %v859 = vpop.f32.mrf.mxu0
      %v860 = vadd.f32 %v747, %v859
      %861 = vmatmul.f32.gmra.mxu0 %v593
      %v862 = vpop.f32.mrf.mxu0
      %v863 = vadd.f32 %v750, %v862
      %864 = vmatmul.f32.gmra.mxu0 %v594
      %v865 = vpop.f32.mrf.mxu0
      %v866 = vadd.f32 %v753, %v865
      %867 = vmatmul.f32.gmra.mxu0 %v595
      %v868 = vpop.f32.mrf.mxu0
      %v869 = vadd.f32 %v756, %v868
      %870 = vmatmul.f32.gmra.mxu0 %v596
      %v871 = vpop.f32.mrf.mxu0
      %v872 = vadd.f32 %v759, %v871
      %873 = vmatmul.f32.gmra.mxu0 %v597
      %v874 = vpop.f32.mrf.mxu0
      %v875 = vadd.f32 %v762, %v874
      %876 = vmatmul.f32.gmra.mxu0 %v598
      %v877 = vpop.f32.mrf.mxu0
      %v878 = vadd.f32 %v765, %v877
      %879 = vmatmul.f32.gmra.mxu0 %v599
      %v880 = vpop.f32.mrf.mxu0
      %v881 = vadd.f32 %v768, %v880
      %882 = vmatmul.f32.gmra.mxu0 %v600
      %v883 = vpop.f32.mrf.mxu0
      %v884 = vadd.f32 %v771, %v883
      %885 = vmatmul.f32.gmra.mxu0 %v601
      %v886 = vpop.f32.mrf.mxu0
      %v887 = vadd.f32 %v774, %v886
      %888 = vmatmul.f32.gmra.mxu0 %v602
      %v889 = vpop.f32.mrf.mxu0
      %v890 = vadd.f32 %v777, %v889
      %891 = vmatmul.f32.gmra.mxu0 %v603
      %v892 = vpop.f32.mrf.mxu0
      %v893 = vadd.f32 %v780, %v892
      %894 = vdwg.mxu0
      %v895 = vld [vmem:[#allocation2 + $0x2] sm:$0xff]
      %v896 = vld [vmem:[#allocation2 + $0xa] sm:$0xff]
      %v897 = vld [vmem:[#allocation2 + $0x1a] sm:$0xff]
      %v898 = vld [vmem:[#allocation2 + $0x22] sm:$0xff]
      %v899 = vld [vmem:[#allocation2 + $0x32] sm:$0xff]
      %v900 = vld [vmem:[#allocation2 + $0x3a] sm:$0xff]
      %v901 = vld [vmem:[#allocation2 + $0x4a] sm:$0xff]
      %v902 = vld [vmem:[#allocation2 + $0x52] sm:$0xff]
      %v903 = vld [vmem:[#allocation2 + $0x62] sm:$0xff]
      %v904 = vld [vmem:[#allocation2 + $0x6a] sm:$0xff]
      %v905 = vld [vmem:[#allocation2 + $0x7a] sm:$0xff]
      %v906 = vld [vmem:[#allocation2 + $0x82] sm:$0xff]
      %v907 = vld [vmem:[#allocation2 + $0x92] sm:$0xff]
      %v908 = vld [vmem:[#allocation2 + $0x9a] sm:$0xff]
      %v909 = vld [vmem:[#allocation2 + $0xaa] sm:$0xff]
      %v910 = vld [vmem:[#allocation2 + $0xb2] sm:$0xff]
      %v911 = vld [vmem:[#allocation2 + $0xc2] sm:$0xff]
      %v912 = vld [vmem:[#allocation2 + $0xca] sm:$0xff]
      %v913 = vld [vmem:[#allocation2 + $0xda] sm:$0xff]
      %v914 = vld [vmem:[#allocation2 + $0xe2] sm:$0xff]
      %v915 = vld [vmem:[#allocation2 + $0xf2] sm:$0xff]
      %v916 = vld [vmem:[#allocation2 + $0xfa] sm:$0xff]
      %v917 = vld [vmem:[#allocation2 + $0x10a] sm:$0xff]
      %v918 = vld [vmem:[#allocation2 + $0x112] sm:$0xff]
      %v919 = vld [vmem:[#allocation2 + $0x122] sm:$0xff]
      %v920 = vld [vmem:[#allocation2 + $0x12a] sm:$0xff]
      %v921 = vld [vmem:[#allocation2 + $0x13a] sm:$0xff]
      %v922 = vld [vmem:[#allocation2 + $0x142] sm:$0xff]
      %v923 = vld [vmem:[#allocation2 + $0x152] sm:$0xff]
      %v924 = vld [vmem:[#allocation2 + $0x15a] sm:$0xff]
      %v925 = vld [vmem:[#allocation2 + $0x16a] sm:$0xff]
      %v926 = vld [vmem:[#allocation2 + $0x172] sm:$0xff]
      %s927 = scalar_lea.vmem %s3, 256
      %v928 = vld [vmem:[%s927] sm:$0xff]
      %v929 = vld [vmem:[%s927 + $0x8] sm:$0xff]
      %v930 = vld [vmem:[%s927 + $0x10] sm:$0xff]
      %v931 = vld [vmem:[%s927 + $0x18] sm:$0xff]
      %v932 = vld [vmem:[%s927 + $0x20] sm:$0xff]
      %v933 = vld [vmem:[%s927 + $0x28] sm:$0xff]
      %v934 = vld [vmem:[%s927 + $0x30] sm:$0xff]
      %v935 = vld [vmem:[%s927 + $0x38] sm:$0xff]
      %v936 = vld [vmem:[%s927 + $0x40] sm:$0xff]
      %v937 = vld [vmem:[%s927 + $0x48] sm:$0xff]
      %v938 = vld [vmem:[%s927 + $0x50] sm:$0xff]
      %v939 = vld [vmem:[%s927 + $0x58] sm:$0xff]
      %v940 = vld [vmem:[%s927 + $0x60] sm:$0xff]
      %v941 = vld [vmem:[%s927 + $0x68] sm:$0xff]
      %v942 = vld [vmem:[%s927 + $0x70] sm:$0xff]
      %v943 = vld [vmem:[%s927 + $0x78] sm:$0xff]
      %944 = vmatpush.msra.mxu0 %v943
      %945 = vmatpush.msra.mxu0 %v942
      %946 = vmatpush.msra.mxu0 %v941
      %947 = vmatpush.msra.mxu0 %v940
      %948 = vmatpush.msra.mxu0 %v939
      %949 = vmatpush.msra.mxu0 %v938
      %950 = vmatpush.msra.mxu0 %v937
      %951 = vmatpush.msra.mxu0 %v936
      %952 = vmatpush.msra.mxu0 %v935
      %953 = vmatpush.msra.mxu0 %v934
      %954 = vmatpush.msra.mxu0 %v933
      %955 = vmatpush.msra.mxu0 %v932
      %956 = vmatpush.msra.mxu0 %v931
      %957 = vmatpush.msra.mxu0 %v930
      %958 = vmatpush.msra.mxu0 %v929
      %959 = vmatpush.msra.mxu0 %v928
      %960 = vmatmul.f32.gmra.mxu0 %v895
      %v961 = vpop.f32.mrf.mxu0
      %v962 = vadd.f32 0.0, %v961
      %963 = vmatmul.f32.gmra.mxu0 %v896
      %v964 = vpop.f32.mrf.mxu0
      %v965 = vadd.f32 0.0, %v964
      %966 = vmatmul.f32.gmra.mxu0 %v897
      %v967 = vpop.f32.mrf.mxu0
      %v968 = vadd.f32 0.0, %v967
      %969 = vmatmul.f32.gmra.mxu0 %v898
      %v970 = vpop.f32.mrf.mxu0
      %v971 = vadd.f32 0.0, %v970
      %972 = vmatmul.f32.gmra.mxu0 %v899
      %v973 = vpop.f32.mrf.mxu0
      %v974 = vadd.f32 0.0, %v973
      %975 = vmatmul.f32.gmra.mxu0 %v900
      %v976 = vpop.f32.mrf.mxu0
      %v977 = vadd.f32 0.0, %v976
      %978 = vmatmul.f32.gmra.mxu0 %v901
      %v979 = vpop.f32.mrf.mxu0
      %v980 = vadd.f32 0.0, %v979
      %981 = vmatmul.f32.gmra.mxu0 %v902
      %v982 = vpop.f32.mrf.mxu0
      %v983 = vadd.f32 0.0, %v982
      %984 = vmatmul.f32.gmra.mxu0 %v903
      %v985 = vpop.f32.mrf.mxu0
      %v986 = vadd.f32 0.0, %v985
      %987 = vmatmul.f32.gmra.mxu0 %v904
      %v988 = vpop.f32.mrf.mxu0
      %v989 = vadd.f32 0.0, %v988
      %990 = vmatmul.f32.gmra.mxu0 %v905
      %v991 = vpop.f32.mrf.mxu0
      %v992 = vadd.f32 0.0, %v991
      %993 = vmatmul.f32.gmra.mxu0 %v906
      %v994 = vpop.f32.mrf.mxu0
      %v995 = vadd.f32 0.0, %v994
      %996 = vmatmul.f32.gmra.mxu0 %v907
      %v997 = vpop.f32.mrf.mxu0
      %v998 = vadd.f32 0.0, %v997
      %999 = vmatmul.f32.gmra.mxu0 %v908
      %v1000 = vpop.f32.mrf.mxu0
      %v1001 = vadd.f32 0.0, %v1000
      %1002 = vmatmul.f32.gmra.mxu0 %v909
      %v1003 = vpop.f32.mrf.mxu0
      %v1004 = vadd.f32 0.0, %v1003
      %1005 = vmatmul.f32.gmra.mxu0 %v910
      %v1006 = vpop.f32.mrf.mxu0
      %v1007 = vadd.f32 0.0, %v1006
      %1008 = vmatmul.f32.gmra.mxu0 %v911
      %v1009 = vpop.f32.mrf.mxu0
      %v1010 = vadd.f32 0.0, %v1009
      %1011 = vmatmul.f32.gmra.mxu0 %v912
      %v1012 = vpop.f32.mrf.mxu0
      %v1013 = vadd.f32 0.0, %v1012
      %1014 = vmatmul.f32.gmra.mxu0 %v913
      %v1015 = vpop.f32.mrf.mxu0
      %v1016 = vadd.f32 0.0, %v1015
      %1017 = vmatmul.f32.gmra.mxu0 %v914
      %v1018 = vpop.f32.mrf.mxu0
      %v1019 = vadd.f32 0.0, %v1018
      %1020 = vmatmul.f32.gmra.mxu0 %v915
      %v1021 = vpop.f32.mrf.mxu0
      %v1022 = vadd.f32 0.0, %v1021
      %1023 = vmatmul.f32.gmra.mxu0 %v916
      %v1024 = vpop.f32.mrf.mxu0
      %v1025 = vadd.f32 0.0, %v1024
      %1026 = vmatmul.f32.gmra.mxu0 %v917
      %v1027 = vpop.f32.mrf.mxu0
      %v1028 = vadd.f32 0.0, %v1027
      %1029 = vmatmul.f32.gmra.mxu0 %v918
      %v1030 = vpop.f32.mrf.mxu0
      %v1031 = vadd.f32 0.0, %v1030
      %1032 = vmatmul.f32.gmra.mxu0 %v919
      %v1033 = vpop.f32.mrf.mxu0
      %v1034 = vadd.f32 0.0, %v1033
      %1035 = vmatmul.f32.gmra.mxu0 %v920
      %v1036 = vpop.f32.mrf.mxu0
      %v1037 = vadd.f32 0.0, %v1036
      %1038 = vmatmul.f32.gmra.mxu0 %v921
      %v1039 = vpop.f32.mrf.mxu0
      %v1040 = vadd.f32 0.0, %v1039
      %1041 = vmatmul.f32.gmra.mxu0 %v922
      %v1042 = vpop.f32.mrf.mxu0
      %v1043 = vadd.f32 0.0, %v1042
      %1044 = vmatmul.f32.gmra.mxu0 %v923
      %v1045 = vpop.f32.mrf.mxu0
      %v1046 = vadd.f32 0.0, %v1045
      %1047 = vmatmul.f32.gmra.mxu0 %v924
      %v1048 = vpop.f32.mrf.mxu0
      %v1049 = vadd.f32 0.0, %v1048
      %1050 = vmatmul.f32.gmra.mxu0 %v925
      %v1051 = vpop.f32.mrf.mxu0
      %v1052 = vadd.f32 0.0, %v1051
      %1053 = vmatmul.f32.gmra.mxu0 %v926
      %v1054 = vpop.f32.mrf.mxu0
      %v1055 = vadd.f32 0.0, %v1054
      %1056 = vdwg.mxu0
      %v1057 = vadd.f32 %v800, %v962
      %v1058 = vadd.f32 %v803, %v965
      %v1059 = vadd.f32 %v806, %v968
      %v1060 = vadd.f32 %v809, %v971
      %v1061 = vadd.f32 %v812, %v974
      %v1062 = vadd.f32 %v815, %v977
      %v1063 = vadd.f32 %v818, %v980
      %v1064 = vadd.f32 %v821, %v983
      %v1065 = vadd.f32 %v824, %v986
      %v1066 = vadd.f32 %v827, %v989
      %v1067 = vadd.f32 %v830, %v992
      %v1068 = vadd.f32 %v833, %v995
      %v1069 = vadd.f32 %v836, %v998
      %v1070 = vadd.f32 %v839, %v1001
      %v1071 = vadd.f32 %v842, %v1004
      %v1072 = vadd.f32 %v845, %v1007
      %v1073 = vadd.f32 %v848, %v1010
      %v1074 = vadd.f32 %v851, %v1013
      %v1075 = vadd.f32 %v854, %v1016
      %v1076 = vadd.f32 %v857, %v1019
      %v1077 = vadd.f32 %v860, %v1022
      %v1078 = vadd.f32 %v863, %v1025
      %v1079 = vadd.f32 %v866, %v1028
      %v1080 = vadd.f32 %v869, %v1031
      %v1081 = vadd.f32 %v872, %v1034
      %v1082 = vadd.f32 %v875, %v1037
      %v1083 = vadd.f32 %v878, %v1040
      %v1084 = vadd.f32 %v881, %v1043
      %v1085 = vadd.f32 %v884, %v1046
      %v1086 = vadd.f32 %v887, %v1049
      %v1087 = vadd.f32 %v890, %v1052
      %v1088 = vadd.f32 %v893, %v1055
      %v1089 = vld [vmem:[%s507] sm:$0xff]
      %v1090 = vld [vmem:[%s507 + $0x8] sm:$0xff]
      %v1091 = vld [vmem:[%s507 + $0x18] sm:$0xff]
      %v1092 = vld [vmem:[%s507 + $0x20] sm:$0xff]
      %v1093 = vld [vmem:[%s507 + $0x30] sm:$0xff]
      %v1094 = vld [vmem:[%s507 + $0x38] sm:$0xff]
      %v1095 = vld [vmem:[%s507 + $0x48] sm:$0xff]
      %v1096 = vld [vmem:[%s507 + $0x50] sm:$0xff]
      %v1097 = vld [vmem:[%s507 + $0x60] sm:$0xff]
      %v1098 = vld [vmem:[%s507 + $0x68] sm:$0xff]
      %v1099 = vld [vmem:[%s507 + $0x78] sm:$0xff]
      %v1100 = vld [vmem:[%s507 + $0x80] sm:$0xff]
      %v1101 = vld [vmem:[%s507 + $0x90] sm:$0xff]
      %v1102 = vld [vmem:[%s507 + $0x98] sm:$0xff]
      %v1103 = vld [vmem:[%s507 + $0xa8] sm:$0xff]
      %v1104 = vld [vmem:[%s507 + $0xb0] sm:$0xff]
      %v1105 = vld [vmem:[%s507 + $0xc0] sm:$0xff]
      %v1106 = vld [vmem:[%s507 + $0xc8] sm:$0xff]
      %v1107 = vld [vmem:[%s507 + $0xd8] sm:$0xff]
      %v1108 = vld [vmem:[%s507 + $0xe0] sm:$0xff]
      %v1109 = vld [vmem:[%s507 + $0xf0] sm:$0xff]
      %v1110 = vld [vmem:[%s507 + $0xf8] sm:$0xff]
      %v1111 = vld [vmem:[%s507 + $0x108] sm:$0xff]
      %v1112 = vld [vmem:[%s507 + $0x110] sm:$0xff]
      %v1113 = vld [vmem:[%s507 + $0x120] sm:$0xff]
      %v1114 = vld [vmem:[%s507 + $0x128] sm:$0xff]
      %v1115 = vld [vmem:[%s507 + $0x138] sm:$0xff]
      %v1116 = vld [vmem:[%s507 + $0x140] sm:$0xff]
      %v1117 = vld [vmem:[%s507 + $0x150] sm:$0xff]
      %v1118 = vld [vmem:[%s507 + $0x158] sm:$0xff]
      %v1119 = vld [vmem:[%s507 + $0x168] sm:$0xff]
      %v1120 = vld [vmem:[%s507 + $0x170] sm:$0xff]
      %s1121 = scalar_lea.vmem %s3, 384
      %v1122 = vld [vmem:[%s1121] sm:$0xff]
      %v1123 = vld [vmem:[%s1121 + $0x8] sm:$0xff]
      %v1124 = vld [vmem:[%s1121 + $0x10] sm:$0xff]
      %v1125 = vld [vmem:[%s1121 + $0x18] sm:$0xff]
      %v1126 = vld [vmem:[%s1121 + $0x20] sm:$0xff]
      %v1127 = vld [vmem:[%s1121 + $0x28] sm:$0xff]
      %v1128 = vld [vmem:[%s1121 + $0x30] sm:$0xff]
      %v1129 = vld [vmem:[%s1121 + $0x38] sm:$0xff]
      %v1130 = vld [vmem:[%s1121 + $0x40] sm:$0xff]
      %v1131 = vld [vmem:[%s1121 + $0x48] sm:$0xff]
      %v1132 = vld [vmem:[%s1121 + $0x50] sm:$0xff]
      %v1133 = vld [vmem:[%s1121 + $0x58] sm:$0xff]
      %v1134 = vld [vmem:[%s1121 + $0x60] sm:$0xff]
      %v1135 = vld [vmem:[%s1121 + $0x68] sm:$0xff]
      %v1136 = vld [vmem:[%s1121 + $0x70] sm:$0xff]
      %v1137 = vld [vmem:[%s1121 + $0x78] sm:$0xff]
      %1138 = vmatpush.msra.mxu0 %v1137
      %1139 = vmatpush.msra.mxu0 %v1136
      %1140 = vmatpush.msra.mxu0 %v1135
      %1141 = vmatpush.msra.mxu0 %v1134
      %1142 = vmatpush.msra.mxu0 %v1133
      %1143 = vmatpush.msra.mxu0 %v1132
      %1144 = vmatpush.msra.mxu0 %v1131
      %1145 = vmatpush.msra.mxu0 %v1130
      %1146 = vmatpush.msra.mxu0 %v1129
      %1147 = vmatpush.msra.mxu0 %v1128
      %1148 = vmatpush.msra.mxu0 %v1127
      %1149 = vmatpush.msra.mxu0 %v1126
      %1150 = vmatpush.msra.mxu0 %v1125
      %1151 = vmatpush.msra.mxu0 %v1124
      %1152 = vmatpush.msra.mxu0 %v1123
      %1153 = vmatpush.msra.mxu0 %v1122
      %1154 = vmatmul.f32.gmra.mxu0 %v1089
      %v1155 = vpop.f32.mrf.mxu0
      %v1156 = vadd.f32 0.0, %v1155
      %1157 = vmatmul.f32.gmra.mxu0 %v1090
      %v1158 = vpop.f32.mrf.mxu0
      %v1159 = vadd.f32 0.0, %v1158
      %1160 = vmatmul.f32.gmra.mxu0 %v1091
      %v1161 = vpop.f32.mrf.mxu0
      %v1162 = vadd.f32 0.0, %v1161
      %1163 = vmatmul.f32.gmra.mxu0 %v1092
      %v1164 = vpop.f32.mrf.mxu0
      %v1165 = vadd.f32 0.0, %v1164
      %1166 = vmatmul.f32.gmra.mxu0 %v1093
      %v1167 = vpop.f32.mrf.mxu0
      %v1168 = vadd.f32 0.0, %v1167
      %1169 = vmatmul.f32.gmra.mxu0 %v1094
      %v1170 = vpop.f32.mrf.mxu0
      %v1171 = vadd.f32 0.0, %v1170
      %1172 = vmatmul.f32.gmra.mxu0 %v1095
      %v1173 = vpop.f32.mrf.mxu0
      %v1174 = vadd.f32 0.0, %v1173
      %1175 = vmatmul.f32.gmra.mxu0 %v1096
      %v1176 = vpop.f32.mrf.mxu0
      %v1177 = vadd.f32 0.0, %v1176
      %1178 = vmatmul.f32.gmra.mxu0 %v1097
      %v1179 = vpop.f32.mrf.mxu0
      %v1180 = vadd.f32 0.0, %v1179
      %1181 = vmatmul.f32.gmra.mxu0 %v1098
      %v1182 = vpop.f32.mrf.mxu0
      %v1183 = vadd.f32 0.0, %v1182
      %1184 = vmatmul.f32.gmra.mxu0 %v1099
      %v1185 = vpop.f32.mrf.mxu0
      %v1186 = vadd.f32 0.0, %v1185
      %1187 = vmatmul.f32.gmra.mxu0 %v1100
      %v1188 = vpop.f32.mrf.mxu0
      %v1189 = vadd.f32 0.0, %v1188
      %1190 = vmatmul.f32.gmra.mxu0 %v1101
      %v1191 = vpop.f32.mrf.mxu0
      %v1192 = vadd.f32 0.0, %v1191
      %1193 = vmatmul.f32.gmra.mxu0 %v1102
      %v1194 = vpop.f32.mrf.mxu0
      %v1195 = vadd.f32 0.0, %v1194
      %1196 = vmatmul.f32.gmra.mxu0 %v1103
      %v1197 = vpop.f32.mrf.mxu0
      %v1198 = vadd.f32 0.0, %v1197
      %1199 = vmatmul.f32.gmra.mxu0 %v1104
      %v1200 = vpop.f32.mrf.mxu0
      %v1201 = vadd.f32 0.0, %v1200
      %1202 = vmatmul.f32.gmra.mxu0 %v1105
      %v1203 = vpop.f32.mrf.mxu0
      %v1204 = vadd.f32 0.0, %v1203
      %1205 = vmatmul.f32.gmra.mxu0 %v1106
      %v1206 = vpop.f32.mrf.mxu0
      %v1207 = vadd.f32 0.0, %v1206
      %1208 = vmatmul.f32.gmra.mxu0 %v1107
      %v1209 = vpop.f32.mrf.mxu0
      %v1210 = vadd.f32 0.0, %v1209
      %1211 = vmatmul.f32.gmra.mxu0 %v1108
      %v1212 = vpop.f32.mrf.mxu0
      %v1213 = vadd.f32 0.0, %v1212
      %1214 = vmatmul.f32.gmra.mxu0 %v1109
      %v1215 = vpop.f32.mrf.mxu0
      %v1216 = vadd.f32 0.0, %v1215
      %1217 = vmatmul.f32.gmra.mxu0 %v1110
      %v1218 = vpop.f32.mrf.mxu0
      %v1219 = vadd.f32 0.0, %v1218
      %1220 = vmatmul.f32.gmra.mxu0 %v1111
      %v1221 = vpop.f32.mrf.mxu0
      %v1222 = vadd.f32 0.0, %v1221
      %1223 = vmatmul.f32.gmra.mxu0 %v1112
      %v1224 = vpop.f32.mrf.mxu0
      %v1225 = vadd.f32 0.0, %v1224
      %1226 = vmatmul.f32.gmra.mxu0 %v1113
      %v1227 = vpop.f32.mrf.mxu0
      %v1228 = vadd.f32 0.0, %v1227
      %1229 = vmatmul.f32.gmra.mxu0 %v1114
      %v1230 = vpop.f32.mrf.mxu0
      %v1231 = vadd.f32 0.0, %v1230
      %1232 = vmatmul.f32.gmra.mxu0 %v1115
      %v1233 = vpop.f32.mrf.mxu0
      %v1234 = vadd.f32 0.0, %v1233
      %1235 = vmatmul.f32.gmra.mxu0 %v1116
      %v1236 = vpop.f32.mrf.mxu0
      %v1237 = vadd.f32 0.0, %v1236
      %1238 = vmatmul.f32.gmra.mxu0 %v1117
      %v1239 = vpop.f32.mrf.mxu0
      %v1240 = vadd.f32 0.0, %v1239
      %1241 = vmatmul.f32.gmra.mxu0 %v1118
      %v1242 = vpop.f32.mrf.mxu0
      %v1243 = vadd.f32 0.0, %v1242
      %1244 = vmatmul.f32.gmra.mxu0 %v1119
      %v1245 = vpop.f32.mrf.mxu0
      %v1246 = vadd.f32 0.0, %v1245
      %1247 = vmatmul.f32.gmra.mxu0 %v1120
      %v1248 = vpop.f32.mrf.mxu0
      %v1249 = vadd.f32 0.0, %v1248
      %1250 = vdwg.mxu0
      %v1251 = vadd.f32 %v1057, %v1156
      %v1252 = vadd.f32 %v1058, %v1159
      %v1253 = vadd.f32 %v1059, %v1162
      %v1254 = vadd.f32 %v1060, %v1165
      %v1255 = vadd.f32 %v1061, %v1168
      %v1256 = vadd.f32 %v1062, %v1171
      %v1257 = vadd.f32 %v1063, %v1174
      %v1258 = vadd.f32 %v1064, %v1177
      %v1259 = vadd.f32 %v1065, %v1180
      %v1260 = vadd.f32 %v1066, %v1183
      %v1261 = vadd.f32 %v1067, %v1186
      %v1262 = vadd.f32 %v1068, %v1189
      %v1263 = vadd.f32 %v1069, %v1192
      %v1264 = vadd.f32 %v1070, %v1195
      %v1265 = vadd.f32 %v1071, %v1198
      %v1266 = vadd.f32 %v1072, %v1201
      %v1267 = vadd.f32 %v1073, %v1204
      %v1268 = vadd.f32 %v1074, %v1207
      %v1269 = vadd.f32 %v1075, %v1210
      %v1270 = vadd.f32 %v1076, %v1213
      %v1271 = vadd.f32 %v1077, %v1216
      %v1272 = vadd.f32 %v1078, %v1219
      %v1273 = vadd.f32 %v1079, %v1222
      %v1274 = vadd.f32 %v1080, %v1225
      %v1275 = vadd.f32 %v1081, %v1228
      %v1276 = vadd.f32 %v1082, %v1231
      %v1277 = vadd.f32 %v1083, %v1234
      %v1278 = vadd.f32 %v1084, %v1237
      %v1279 = vadd.f32 %v1085, %v1240
      %v1280 = vadd.f32 %v1086, %v1243
      %v1281 = vadd.f32 %v1087, %v1246
      %v1282 = vadd.f32 %v1088, %v1249
      %v1283 = vld [vmem:[%s507 + $0x1] sm:$0xff]
      %v1284 = vld [vmem:[%s507 + $0x9] sm:$0xff]
      %v1285 = vld [vmem:[%s507 + $0x19] sm:$0xff]
      %v1286 = vld [vmem:[%s507 + $0x21] sm:$0xff]
      %v1287 = vld [vmem:[%s507 + $0x31] sm:$0xff]
      %v1288 = vld [vmem:[%s507 + $0x39] sm:$0xff]
      %v1289 = vld [vmem:[%s507 + $0x49] sm:$0xff]
      %v1290 = vld [vmem:[%s507 + $0x51] sm:$0xff]
      %v1291 = vld [vmem:[%s507 + $0x61] sm:$0xff]
      %v1292 = vld [vmem:[%s507 + $0x69] sm:$0xff]
      %v1293 = vld [vmem:[%s507 + $0x79] sm:$0xff]
      %v1294 = vld [vmem:[%s507 + $0x81] sm:$0xff]
      %v1295 = vld [vmem:[%s507 + $0x91] sm:$0xff]
      %v1296 = vld [vmem:[%s507 + $0x99] sm:$0xff]
      %v1297 = vld [vmem:[%s507 + $0xa9] sm:$0xff]
      %v1298 = vld [vmem:[%s507 + $0xb1] sm:$0xff]
      %v1299 = vld [vmem:[%s507 + $0xc1] sm:$0xff]
      %v1300 = vld [vmem:[%s507 + $0xc9] sm:$0xff]
      %v1301 = vld [vmem:[%s507 + $0xd9] sm:$0xff]
      %v1302 = vld [vmem:[%s507 + $0xe1] sm:$0xff]
      %v1303 = vld [vmem:[%s507 + $0xf1] sm:$0xff]
      %v1304 = vld [vmem:[%s507 + $0xf9] sm:$0xff]
      %v1305 = vld [vmem:[%s507 + $0x109] sm:$0xff]
      %v1306 = vld [vmem:[%s507 + $0x111] sm:$0xff]
      %v1307 = vld [vmem:[%s507 + $0x121] sm:$0xff]
      %v1308 = vld [vmem:[%s507 + $0x129] sm:$0xff]
      %v1309 = vld [vmem:[%s507 + $0x139] sm:$0xff]
      %v1310 = vld [vmem:[%s507 + $0x141] sm:$0xff]
      %v1311 = vld [vmem:[%s507 + $0x151] sm:$0xff]
      %v1312 = vld [vmem:[%s507 + $0x159] sm:$0xff]
      %v1313 = vld [vmem:[%s507 + $0x169] sm:$0xff]
      %v1314 = vld [vmem:[%s507 + $0x171] sm:$0xff]
      %s1315 = scalar_lea.vmem %s3, 512
      %v1316 = vld [vmem:[%s1315] sm:$0xff]
      %v1317 = vld [vmem:[%s1315 + $0x8] sm:$0xff]
      %v1318 = vld [vmem:[%s1315 + $0x10] sm:$0xff]
      %v1319 = vld [vmem:[%s1315 + $0x18] sm:$0xff]
      %v1320 = vld [vmem:[%s1315 + $0x20] sm:$0xff]
      %v1321 = vld [vmem:[%s1315 + $0x28] sm:$0xff]
      %v1322 = vld [vmem:[%s1315 + $0x30] sm:$0xff]
      %v1323 = vld [vmem:[%s1315 + $0x38] sm:$0xff]
      %v1324 = vld [vmem:[%s1315 + $0x40] sm:$0xff]
      %v1325 = vld [vmem:[%s1315 + $0x48] sm:$0xff]
      %v1326 = vld [vmem:[%s1315 + $0x50] sm:$0xff]
      %v1327 = vld [vmem:[%s1315 + $0x58] sm:$0xff]
      %v1328 = vld [vmem:[%s1315 + $0x60] sm:$0xff]
      %v1329 = vld [vmem:[%s1315 + $0x68] sm:$0xff]
      %v1330 = vld [vmem:[%s1315 + $0x70] sm:$0xff]
      %v1331 = vld [vmem:[%s1315 + $0x78] sm:$0xff]
      %1332 = vmatpush.msra.mxu0 %v1331
      %1333 = vmatpush.msra.mxu0 %v1330
      %1334 = vmatpush.msra.mxu0 %v1329
      %1335 = vmatpush.msra.mxu0 %v1328
      %1336 = vmatpush.msra.mxu0 %v1327
      %1337 = vmatpush.msra.mxu0 %v1326
      %1338 = vmatpush.msra.mxu0 %v1325
      %1339 = vmatpush.msra.mxu0 %v1324
      %1340 = vmatpush.msra.mxu0 %v1323
      %1341 = vmatpush.msra.mxu0 %v1322
      %1342 = vmatpush.msra.mxu0 %v1321
      %1343 = vmatpush.msra.mxu0 %v1320
      %1344 = vmatpush.msra.mxu0 %v1319
      %1345 = vmatpush.msra.mxu0 %v1318
      %1346 = vmatpush.msra.mxu0 %v1317
      %1347 = vmatpush.msra.mxu0 %v1316
      %1348 = vmatmul.f32.gmra.mxu0 %v1283
      %v1349 = vpop.f32.mrf.mxu0
      %v1350 = vadd.f32 0.0, %v1349
      %1351 = vmatmul.f32.gmra.mxu0 %v1284
      %v1352 = vpop.f32.mrf.mxu0
      %v1353 = vadd.f32 0.0, %v1352
      %1354 = vmatmul.f32.gmra.mxu0 %v1285
      %v1355 = vpop.f32.mrf.mxu0
      %v1356 = vadd.f32 0.0, %v1355
      %1357 = vmatmul.f32.gmra.mxu0 %v1286
      %v1358 = vpop.f32.mrf.mxu0
      %v1359 = vadd.f32 0.0, %v1358
      %1360 = vmatmul.f32.gmra.mxu0 %v1287
      %v1361 = vpop.f32.mrf.mxu0
      %v1362 = vadd.f32 0.0, %v1361
      %1363 = vmatmul.f32.gmra.mxu0 %v1288
      %v1364 = vpop.f32.mrf.mxu0
      %v1365 = vadd.f32 0.0, %v1364
      %1366 = vmatmul.f32.gmra.mxu0 %v1289
      %v1367 = vpop.f32.mrf.mxu0
      %v1368 = vadd.f32 0.0, %v1367
      %1369 = vmatmul.f32.gmra.mxu0 %v1290
      %v1370 = vpop.f32.mrf.mxu0
      %v1371 = vadd.f32 0.0, %v1370
      %1372 = vmatmul.f32.gmra.mxu0 %v1291
      %v1373 = vpop.f32.mrf.mxu0
      %v1374 = vadd.f32 0.0, %v1373
      %1375 = vmatmul.f32.gmra.mxu0 %v1292
      %v1376 = vpop.f32.mrf.mxu0
      %v1377 = vadd.f32 0.0, %v1376
      %1378 = vmatmul.f32.gmra.mxu0 %v1293
      %v1379 = vpop.f32.mrf.mxu0
      %v1380 = vadd.f32 0.0, %v1379
      %1381 = vmatmul.f32.gmra.mxu0 %v1294
      %v1382 = vpop.f32.mrf.mxu0
      %v1383 = vadd.f32 0.0, %v1382
      %1384 = vmatmul.f32.gmra.mxu0 %v1295
      %v1385 = vpop.f32.mrf.mxu0
      %v1386 = vadd.f32 0.0, %v1385
      %1387 = vmatmul.f32.gmra.mxu0 %v1296
      %v1388 = vpop.f32.mrf.mxu0
      %v1389 = vadd.f32 0.0, %v1388
      %1390 = vmatmul.f32.gmra.mxu0 %v1297
      %v1391 = vpop.f32.mrf.mxu0
      %v1392 = vadd.f32 0.0, %v1391
      %1393 = vmatmul.f32.gmra.mxu0 %v1298
      %v1394 = vpop.f32.mrf.mxu0
      %v1395 = vadd.f32 0.0, %v1394
      %1396 = vmatmul.f32.gmra.mxu0 %v1299
      %v1397 = vpop.f32.mrf.mxu0
      %v1398 = vadd.f32 0.0, %v1397
      %1399 = vmatmul.f32.gmra.mxu0 %v1300
      %v1400 = vpop.f32.mrf.mxu0
      %v1401 = vadd.f32 0.0, %v1400
      %1402 = vmatmul.f32.gmra.mxu0 %v1301
      %v1403 = vpop.f32.mrf.mxu0
      %v1404 = vadd.f32 0.0, %v1403
      %1405 = vmatmul.f32.gmra.mxu0 %v1302
      %v1406 = vpop.f32.mrf.mxu0
      %v1407 = vadd.f32 0.0, %v1406
      %1408 = vmatmul.f32.gmra.mxu0 %v1303
      %v1409 = vpop.f32.mrf.mxu0
      %v1410 = vadd.f32 0.0, %v1409
      %1411 = vmatmul.f32.gmra.mxu0 %v1304
      %v1412 = vpop.f32.mrf.mxu0
      %v1413 = vadd.f32 0.0, %v1412
      %1414 = vmatmul.f32.gmra.mxu0 %v1305
      %v1415 = vpop.f32.mrf.mxu0
      %v1416 = vadd.f32 0.0, %v1415
      %1417 = vmatmul.f32.gmra.mxu0 %v1306
      %v1418 = vpop.f32.mrf.mxu0
      %v1419 = vadd.f32 0.0, %v1418
      %1420 = vmatmul.f32.gmra.mxu0 %v1307
      %v1421 = vpop.f32.mrf.mxu0
      %v1422 = vadd.f32 0.0, %v1421
      %1423 = vmatmul.f32.gmra.mxu0 %v1308
      %v1424 = vpop.f32.mrf.mxu0
      %v1425 = vadd.f32 0.0, %v1424
      %1426 = vmatmul.f32.gmra.mxu0 %v1309
      %v1427 = vpop.f32.mrf.mxu0
      %v1428 = vadd.f32 0.0, %v1427
      %1429 = vmatmul.f32.gmra.mxu0 %v1310
      %v1430 = vpop.f32.mrf.mxu0
      %v1431 = vadd.f32 0.0, %v1430
      %1432 = vmatmul.f32.gmra.mxu0 %v1311
      %v1433 = vpop.f32.mrf.mxu0
      %v1434 = vadd.f32 0.0, %v1433
      %1435 = vmatmul.f32.gmra.mxu0 %v1312
      %v1436 = vpop.f32.mrf.mxu0
      %v1437 = vadd.f32 0.0, %v1436
      %1438 = vmatmul.f32.gmra.mxu0 %v1313
      %v1439 = vpop.f32.mrf.mxu0
      %v1440 = vadd.f32 0.0, %v1439
      %1441 = vmatmul.f32.gmra.mxu0 %v1314
      %v1442 = vpop.f32.mrf.mxu0
      %v1443 = vadd.f32 0.0, %v1442
      %1444 = vdwg.mxu0
      %v1445 = vadd.f32 %v1251, %v1350
      %v1446 = vadd.f32 %v1252, %v1353
      %v1447 = vadd.f32 %v1253, %v1356
      %v1448 = vadd.f32 %v1254, %v1359
      %v1449 = vadd.f32 %v1255, %v1362
      %v1450 = vadd.f32 %v1256, %v1365
      %v1451 = vadd.f32 %v1257, %v1368
      %v1452 = vadd.f32 %v1258, %v1371
      %v1453 = vadd.f32 %v1259, %v1374
      %v1454 = vadd.f32 %v1260, %v1377
      %v1455 = vadd.f32 %v1261, %v1380
      %v1456 = vadd.f32 %v1262, %v1383
      %v1457 = vadd.f32 %v1263, %v1386
      %v1458 = vadd.f32 %v1264, %v1389
      %v1459 = vadd.f32 %v1265, %v1392
      %v1460 = vadd.f32 %v1266, %v1395
      %v1461 = vadd.f32 %v1267, %v1398
      %v1462 = vadd.f32 %v1268, %v1401
      %v1463 = vadd.f32 %v1269, %v1404
      %v1464 = vadd.f32 %v1270, %v1407
      %v1465 = vadd.f32 %v1271, %v1410
      %v1466 = vadd.f32 %v1272, %v1413
      %v1467 = vadd.f32 %v1273, %v1416
      %v1468 = vadd.f32 %v1274, %v1419
      %v1469 = vadd.f32 %v1275, %v1422
      %v1470 = vadd.f32 %v1276, %v1425
      %v1471 = vadd.f32 %v1277, %v1428
      %v1472 = vadd.f32 %v1278, %v1431
      %v1473 = vadd.f32 %v1279, %v1434
      %v1474 = vadd.f32 %v1280, %v1437
      %v1475 = vadd.f32 %v1281, %v1440
      %v1476 = vadd.f32 %v1282, %v1443
      %v1477 = vld [vmem:[%s507 + $0x2] sm:$0xff]
      %v1478 = vld [vmem:[%s507 + $0xa] sm:$0xff]
      %v1479 = vld [vmem:[%s507 + $0x1a] sm:$0xff]
      %v1480 = vld [vmem:[%s507 + $0x22] sm:$0xff]
      %v1481 = vld [vmem:[%s507 + $0x32] sm:$0xff]
      %v1482 = vld [vmem:[%s507 + $0x3a] sm:$0xff]
      %v1483 = vld [vmem:[%s507 + $0x4a] sm:$0xff]
      %v1484 = vld [vmem:[%s507 + $0x52] sm:$0xff]
      %v1485 = vld [vmem:[%s507 + $0x62] sm:$0xff]
      %v1486 = vld [vmem:[%s507 + $0x6a] sm:$0xff]
      %v1487 = vld [vmem:[%s507 + $0x7a] sm:$0xff]
      %v1488 = vld [vmem:[%s507 + $0x82] sm:$0xff]
      %v1489 = vld [vmem:[%s507 + $0x92] sm:$0xff]
      %v1490 = vld [vmem:[%s507 + $0x9a] sm:$0xff]
      %v1491 = vld [vmem:[%s507 + $0xaa] sm:$0xff]
      %v1492 = vld [vmem:[%s507 + $0xb2] sm:$0xff]
      %v1493 = vld [vmem:[%s507 + $0xc2] sm:$0xff]
      %v1494 = vld [vmem:[%s507 + $0xca] sm:$0xff]
      %v1495 = vld [vmem:[%s507 + $0xda] sm:$0xff]
      %v1496 = vld [vmem:[%s507 + $0xe2] sm:$0xff]
      %v1497 = vld [vmem:[%s507 + $0xf2] sm:$0xff]
      %v1498 = vld [vmem:[%s507 + $0xfa] sm:$0xff]
      %v1499 = vld [vmem:[%s507 + $0x10a] sm:$0xff]
      %v1500 = vld [vmem:[%s507 + $0x112] sm:$0xff]
      %v1501 = vld [vmem:[%s507 + $0x122] sm:$0xff]
      %v1502 = vld [vmem:[%s507 + $0x12a] sm:$0xff]
      %v1503 = vld [vmem:[%s507 + $0x13a] sm:$0xff]
      %v1504 = vld [vmem:[%s507 + $0x142] sm:$0xff]
      %v1505 = vld [vmem:[%s507 + $0x152] sm:$0xff]
      %v1506 = vld [vmem:[%s507 + $0x15a] sm:$0xff]
      %v1507 = vld [vmem:[%s507 + $0x16a] sm:$0xff]
      %v1508 = vld [vmem:[%s507 + $0x172] sm:$0xff]
      %s1509 = scalar_lea.vmem %s3, 640
      %v1510 = vld [vmem:[%s1509] sm:$0xff]
      %v1511 = vld [vmem:[%s1509 + $0x8] sm:$0xff]
      %v1512 = vld [vmem:[%s1509 + $0x10] sm:$0xff]
      %v1513 = vld [vmem:[%s1509 + $0x18] sm:$0xff]
      %v1514 = vld [vmem:[%s1509 + $0x20] sm:$0xff]
      %v1515 = vld [vmem:[%s1509 + $0x28] sm:$0xff]
      %v1516 = vld [vmem:[%s1509 + $0x30] sm:$0xff]
      %v1517 = vld [vmem:[%s1509 + $0x38] sm:$0xff]
      %v1518 = vld [vmem:[%s1509 + $0x40] sm:$0xff]
      %v1519 = vld [vmem:[%s1509 + $0x48] sm:$0xff]
      %v1520 = vld [vmem:[%s1509 + $0x50] sm:$0xff]
      %v1521 = vld [vmem:[%s1509 + $0x58] sm:$0xff]
      %v1522 = vld [vmem:[%s1509 + $0x60] sm:$0xff]
      %v1523 = vld [vmem:[%s1509 + $0x68] sm:$0xff]
      %v1524 = vld [vmem:[%s1509 + $0x70] sm:$0xff]
      %v1525 = vld [vmem:[%s1509 + $0x78] sm:$0xff]
      %1526 = vmatpush.msra.mxu0 %v1525
      %1527 = vmatpush.msra.mxu0 %v1524
      %1528 = vmatpush.msra.mxu0 %v1523
      %1529 = vmatpush.msra.mxu0 %v1522
      %1530 = vmatpush.msra.mxu0 %v1521
      %1531 = vmatpush.msra.mxu0 %v1520
      %1532 = vmatpush.msra.mxu0 %v1519
      %1533 = vmatpush.msra.mxu0 %v1518
      %1534 = vmatpush.msra.mxu0 %v1517
      %1535 = vmatpush.msra.mxu0 %v1516
      %1536 = vmatpush.msra.mxu0 %v1515
      %1537 = vmatpush.msra.mxu0 %v1514
      %1538 = vmatpush.msra.mxu0 %v1513
      %1539 = vmatpush.msra.mxu0 %v1512
      %1540 = vmatpush.msra.mxu0 %v1511
      %1541 = vmatpush.msra.mxu0 %v1510
      %1542 = vmatmul.f32.gmra.mxu0 %v1477
      %v1543 = vpop.f32.mrf.mxu0
      %v1544 = vadd.f32 0.0, %v1543
      %1545 = vmatmul.f32.gmra.mxu0 %v1478
      %v1546 = vpop.f32.mrf.mxu0
      %v1547 = vadd.f32 0.0, %v1546
      %1548 = vmatmul.f32.gmra.mxu0 %v1479
      %v1549 = vpop.f32.mrf.mxu0
      %v1550 = vadd.f32 0.0, %v1549
      %1551 = vmatmul.f32.gmra.mxu0 %v1480
      %v1552 = vpop.f32.mrf.mxu0
      %v1553 = vadd.f32 0.0, %v1552
      %1554 = vmatmul.f32.gmra.mxu0 %v1481
      %v1555 = vpop.f32.mrf.mxu0
      %v1556 = vadd.f32 0.0, %v1555
      %1557 = vmatmul.f32.gmra.mxu0 %v1482
      %v1558 = vpop.f32.mrf.mxu0
      %v1559 = vadd.f32 0.0, %v1558
      %1560 = vmatmul.f32.gmra.mxu0 %v1483
      %v1561 = vpop.f32.mrf.mxu0
      %v1562 = vadd.f32 0.0, %v1561
      %1563 = vmatmul.f32.gmra.mxu0 %v1484
      %v1564 = vpop.f32.mrf.mxu0
      %v1565 = vadd.f32 0.0, %v1564
      %1566 = vmatmul.f32.gmra.mxu0 %v1485
      %v1567 = vpop.f32.mrf.mxu0
      %v1568 = vadd.f32 0.0, %v1567
      %1569 = vmatmul.f32.gmra.mxu0 %v1486
      %v1570 = vpop.f32.mrf.mxu0
      %v1571 = vadd.f32 0.0, %v1570
      %1572 = vmatmul.f32.gmra.mxu0 %v1487
      %v1573 = vpop.f32.mrf.mxu0
      %v1574 = vadd.f32 0.0, %v1573
      %1575 = vmatmul.f32.gmra.mxu0 %v1488
      %v1576 = vpop.f32.mrf.mxu0
      %v1577 = vadd.f32 0.0, %v1576
      %1578 = vmatmul.f32.gmra.mxu0 %v1489
      %v1579 = vpop.f32.mrf.mxu0
      %v1580 = vadd.f32 0.0, %v1579
      %1581 = vmatmul.f32.gmra.mxu0 %v1490
      %v1582 = vpop.f32.mrf.mxu0
      %v1583 = vadd.f32 0.0, %v1582
      %1584 = vmatmul.f32.gmra.mxu0 %v1491
      %v1585 = vpop.f32.mrf.mxu0
      %v1586 = vadd.f32 0.0, %v1585
      %1587 = vmatmul.f32.gmra.mxu0 %v1492
      %v1588 = vpop.f32.mrf.mxu0
      %v1589 = vadd.f32 0.0, %v1588
      %1590 = vmatmul.f32.gmra.mxu0 %v1493
      %v1591 = vpop.f32.mrf.mxu0
      %v1592 = vadd.f32 0.0, %v1591
      %1593 = vmatmul.f32.gmra.mxu0 %v1494
      %v1594 = vpop.f32.mrf.mxu0
      %v1595 = vadd.f32 0.0, %v1594
      %1596 = vmatmul.f32.gmra.mxu0 %v1495
      %v1597 = vpop.f32.mrf.mxu0
      %v1598 = vadd.f32 0.0, %v1597
      %1599 = vmatmul.f32.gmra.mxu0 %v1496
      %v1600 = vpop.f32.mrf.mxu0
      %v1601 = vadd.f32 0.0, %v1600
      %1602 = vmatmul.f32.gmra.mxu0 %v1497
      %v1603 = vpop.f32.mrf.mxu0
      %v1604 = vadd.f32 0.0, %v1603
      %1605 = vmatmul.f32.gmra.mxu0 %v1498
      %v1606 = vpop.f32.mrf.mxu0
      %v1607 = vadd.f32 0.0, %v1606
      %1608 = vmatmul.f32.gmra.mxu0 %v1499
      %v1609 = vpop.f32.mrf.mxu0
      %v1610 = vadd.f32 0.0, %v1609
      %1611 = vmatmul.f32.gmra.mxu0 %v1500
      %v1612 = vpop.f32.mrf.mxu0
      %v1613 = vadd.f32 0.0, %v1612
      %1614 = vmatmul.f32.gmra.mxu0 %v1501
      %v1615 = vpop.f32.mrf.mxu0
      %v1616 = vadd.f32 0.0, %v1615
      %1617 = vmatmul.f32.gmra.mxu0 %v1502
      %v1618 = vpop.f32.mrf.mxu0
      %v1619 = vadd.f32 0.0, %v1618
      %1620 = vmatmul.f32.gmra.mxu0 %v1503
      %v1621 = vpop.f32.mrf.mxu0
      %v1622 = vadd.f32 0.0, %v1621
      %1623 = vmatmul.f32.gmra.mxu0 %v1504
      %v1624 = vpop.f32.mrf.mxu0
      %v1625 = vadd.f32 0.0, %v1624
      %1626 = vmatmul.f32.gmra.mxu0 %v1505
      %v1627 = vpop.f32.mrf.mxu0
      %v1628 = vadd.f32 0.0, %v1627
      %1629 = vmatmul.f32.gmra.mxu0 %v1506
      %v1630 = vpop.f32.mrf.mxu0
      %v1631 = vadd.f32 0.0, %v1630
      %1632 = vmatmul.f32.gmra.mxu0 %v1507
      %v1633 = vpop.f32.mrf.mxu0
      %v1634 = vadd.f32 0.0, %v1633
      %1635 = vmatmul.f32.gmra.mxu0 %v1508
      %v1636 = vpop.f32.mrf.mxu0
      %v1637 = vadd.f32 0.0, %v1636
      %1638 = vdwg.mxu0
      %v1639 = vadd.f32 %v1445, %v1544
      %v1640 = vadd.f32 %v1446, %v1547
      %v1641 = vadd.f32 %v1447, %v1550
      %v1642 = vadd.f32 %v1448, %v1553
      %v1643 = vadd.f32 %v1449, %v1556
      %v1644 = vadd.f32 %v1450, %v1559
      %v1645 = vadd.f32 %v1451, %v1562
      %v1646 = vadd.f32 %v1452, %v1565
      %v1647 = vadd.f32 %v1453, %v1568
      %v1648 = vadd.f32 %v1454, %v1571
      %v1649 = vadd.f32 %v1455, %v1574
      %v1650 = vadd.f32 %v1456, %v1577
      %v1651 = vadd.f32 %v1457, %v1580
      %v1652 = vadd.f32 %v1458, %v1583
      %v1653 = vadd.f32 %v1459, %v1586
      %v1654 = vadd.f32 %v1460, %v1589
      %v1655 = vadd.f32 %v1461, %v1592
      %v1656 = vadd.f32 %v1462, %v1595
      %v1657 = vadd.f32 %v1463, %v1598
      %v1658 = vadd.f32 %v1464, %v1601
      %v1659 = vadd.f32 %v1465, %v1604
      %v1660 = vadd.f32 %v1466, %v1607
      %v1661 = vadd.f32 %v1467, %v1610
      %v1662 = vadd.f32 %v1468, %v1613
      %v1663 = vadd.f32 %v1469, %v1616
      %v1664 = vadd.f32 %v1470, %v1619
      %v1665 = vadd.f32 %v1471, %v1622
      %v1666 = vadd.f32 %v1472, %v1625
      %v1667 = vadd.f32 %v1473, %v1628
      %v1668 = vadd.f32 %v1474, %v1631
      %v1669 = vadd.f32 %v1475, %v1634
      %v1670 = vadd.f32 %v1476, %v1637
      %s1671 = scalar_lea.vmem [#allocation2], 48
      %v1672 = vld [vmem:[%s1671] sm:$0xff]
      %v1673 = vld [vmem:[%s1671 + $0x8] sm:$0xff]
      %v1674 = vld [vmem:[%s1671 + $0x18] sm:$0xff]
      %v1675 = vld [vmem:[%s1671 + $0x20] sm:$0xff]
      %v1676 = vld [vmem:[%s1671 + $0x30] sm:$0xff]
      %v1677 = vld [vmem:[%s1671 + $0x38] sm:$0xff]
      %v1678 = vld [vmem:[%s1671 + $0x48] sm:$0xff]
      %v1679 = vld [vmem:[%s1671 + $0x50] sm:$0xff]
      %v1680 = vld [vmem:[%s1671 + $0x60] sm:$0xff]
      %v1681 = vld [vmem:[%s1671 + $0x68] sm:$0xff]
      %v1682 = vld [vmem:[%s1671 + $0x78] sm:$0xff]
      %v1683 = vld [vmem:[%s1671 + $0x80] sm:$0xff]
      %v1684 = vld [vmem:[%s1671 + $0x90] sm:$0xff]
      %v1685 = vld [vmem:[%s1671 + $0x98] sm:$0xff]
      %v1686 = vld [vmem:[%s1671 + $0xa8] sm:$0xff]
      %v1687 = vld [vmem:[%s1671 + $0xb0] sm:$0xff]
      %v1688 = vld [vmem:[%s1671 + $0xc0] sm:$0xff]
      %v1689 = vld [vmem:[%s1671 + $0xc8] sm:$0xff]
      %v1690 = vld [vmem:[%s1671 + $0xd8] sm:$0xff]
      %v1691 = vld [vmem:[%s1671 + $0xe0] sm:$0xff]
      %v1692 = vld [vmem:[%s1671 + $0xf0] sm:$0xff]
      %v1693 = vld [vmem:[%s1671 + $0xf8] sm:$0xff]
      %v1694 = vld [vmem:[%s1671 + $0x108] sm:$0xff]
      %v1695 = vld [vmem:[%s1671 + $0x110] sm:$0xff]
      %v1696 = vld [vmem:[%s1671 + $0x120] sm:$0xff]
      %v1697 = vld [vmem:[%s1671 + $0x128] sm:$0xff]
      %v1698 = vld [vmem:[%s1671 + $0x138] sm:$0xff]
      %v1699 = vld [vmem:[%s1671 + $0x140] sm:$0xff]
      %v1700 = vld [vmem:[%s1671 + $0x150] sm:$0xff]
      %v1701 = vld [vmem:[%s1671 + $0x158] sm:$0xff]
      %v1702 = vld [vmem:[%s1671 + $0x168] sm:$0xff]
      %v1703 = vld [vmem:[%s1671 + $0x170] sm:$0xff]
      %s1704 = scalar_lea.vmem %s3, 768
      %v1705 = vld [vmem:[%s1704] sm:$0xff]
      %v1706 = vld [vmem:[%s1704 + $0x8] sm:$0xff]
      %v1707 = vld [vmem:[%s1704 + $0x10] sm:$0xff]
      %v1708 = vld [vmem:[%s1704 + $0x18] sm:$0xff]
      %v1709 = vld [vmem:[%s1704 + $0x20] sm:$0xff]
      %v1710 = vld [vmem:[%s1704 + $0x28] sm:$0xff]
      %v1711 = vld [vmem:[%s1704 + $0x30] sm:$0xff]
      %v1712 = vld [vmem:[%s1704 + $0x38] sm:$0xff]
      %v1713 = vld [vmem:[%s1704 + $0x40] sm:$0xff]
      %v1714 = vld [vmem:[%s1704 + $0x48] sm:$0xff]
      %v1715 = vld [vmem:[%s1704 + $0x50] sm:$0xff]
      %v1716 = vld [vmem:[%s1704 + $0x58] sm:$0xff]
      %v1717 = vld [vmem:[%s1704 + $0x60] sm:$0xff]
      %v1718 = vld [vmem:[%s1704 + $0x68] sm:$0xff]
      %v1719 = vld [vmem:[%s1704 + $0x70] sm:$0xff]
      %v1720 = vld [vmem:[%s1704 + $0x78] sm:$0xff]
      %1721 = vmatpush.msra.mxu0 %v1720
      %1722 = vmatpush.msra.mxu0 %v1719
      %1723 = vmatpush.msra.mxu0 %v1718
      %1724 = vmatpush.msra.mxu0 %v1717
      %1725 = vmatpush.msra.mxu0 %v1716
      %1726 = vmatpush.msra.mxu0 %v1715
      %1727 = vmatpush.msra.mxu0 %v1714
      %1728 = vmatpush.msra.mxu0 %v1713
      %1729 = vmatpush.msra.mxu0 %v1712
      %1730 = vmatpush.msra.mxu0 %v1711
      %1731 = vmatpush.msra.mxu0 %v1710
      %1732 = vmatpush.msra.mxu0 %v1709
      %1733 = vmatpush.msra.mxu0 %v1708
      %1734 = vmatpush.msra.mxu0 %v1707
      %1735 = vmatpush.msra.mxu0 %v1706
      %1736 = vmatpush.msra.mxu0 %v1705
      %1737 = vmatmul.f32.gmra.mxu0 %v1672
      %v1738 = vpop.f32.mrf.mxu0
      %v1739 = vadd.f32 0.0, %v1738
      %1740 = vmatmul.f32.gmra.mxu0 %v1673
      %v1741 = vpop.f32.mrf.mxu0
      %v1742 = vadd.f32 0.0, %v1741
      %1743 = vmatmul.f32.gmra.mxu0 %v1674
      %v1744 = vpop.f32.mrf.mxu0
      %v1745 = vadd.f32 0.0, %v1744
      %1746 = vmatmul.f32.gmra.mxu0 %v1675
      %v1747 = vpop.f32.mrf.mxu0
      %v1748 = vadd.f32 0.0, %v1747
      %1749 = vmatmul.f32.gmra.mxu0 %v1676
      %v1750 = vpop.f32.mrf.mxu0
      %v1751 = vadd.f32 0.0, %v1750
      %1752 = vmatmul.f32.gmra.mxu0 %v1677
      %v1753 = vpop.f32.mrf.mxu0
      %v1754 = vadd.f32 0.0, %v1753
      %1755 = vmatmul.f32.gmra.mxu0 %v1678
      %v1756 = vpop.f32.mrf.mxu0
      %v1757 = vadd.f32 0.0, %v1756
      %1758 = vmatmul.f32.gmra.mxu0 %v1679
      %v1759 = vpop.f32.mrf.mxu0
      %v1760 = vadd.f32 0.0, %v1759
      %1761 = vmatmul.f32.gmra.mxu0 %v1680
      %v1762 = vpop.f32.mrf.mxu0
      %v1763 = vadd.f32 0.0, %v1762
      %1764 = vmatmul.f32.gmra.mxu0 %v1681
      %v1765 = vpop.f32.mrf.mxu0
      %v1766 = vadd.f32 0.0, %v1765
      %1767 = vmatmul.f32.gmra.mxu0 %v1682
      %v1768 = vpop.f32.mrf.mxu0
      %v1769 = vadd.f32 0.0, %v1768
      %1770 = vmatmul.f32.gmra.mxu0 %v1683
      %v1771 = vpop.f32.mrf.mxu0
      %v1772 = vadd.f32 0.0, %v1771
      %1773 = vmatmul.f32.gmra.mxu0 %v1684
      %v1774 = vpop.f32.mrf.mxu0
      %v1775 = vadd.f32 0.0, %v1774
      %1776 = vmatmul.f32.gmra.mxu0 %v1685
      %v1777 = vpop.f32.mrf.mxu0
      %v1778 = vadd.f32 0.0, %v1777
      %1779 = vmatmul.f32.gmra.mxu0 %v1686
      %v1780 = vpop.f32.mrf.mxu0
      %v1781 = vadd.f32 0.0, %v1780
      %1782 = vmatmul.f32.gmra.mxu0 %v1687
      %v1783 = vpop.f32.mrf.mxu0
      %v1784 = vadd.f32 0.0, %v1783
      %1785 = vmatmul.f32.gmra.mxu0 %v1688
      %v1786 = vpop.f32.mrf.mxu0
      %v1787 = vadd.f32 0.0, %v1786
      %1788 = vmatmul.f32.gmra.mxu0 %v1689
      %v1789 = vpop.f32.mrf.mxu0
      %v1790 = vadd.f32 0.0, %v1789
      %1791 = vmatmul.f32.gmra.mxu0 %v1690
      %v1792 = vpop.f32.mrf.mxu0
      %v1793 = vadd.f32 0.0, %v1792
      %1794 = vmatmul.f32.gmra.mxu0 %v1691
      %v1795 = vpop.f32.mrf.mxu0
      %v1796 = vadd.f32 0.0, %v1795
      %1797 = vmatmul.f32.gmra.mxu0 %v1692
      %v1798 = vpop.f32.mrf.mxu0
      %v1799 = vadd.f32 0.0, %v1798
      %1800 = vmatmul.f32.gmra.mxu0 %v1693
      %v1801 = vpop.f32.mrf.mxu0
      %v1802 = vadd.f32 0.0, %v1801
      %1803 = vmatmul.f32.gmra.mxu0 %v1694
      %v1804 = vpop.f32.mrf.mxu0
      %v1805 = vadd.f32 0.0, %v1804
      %1806 = vmatmul.f32.gmra.mxu0 %v1695
      %v1807 = vpop.f32.mrf.mxu0
      %v1808 = vadd.f32 0.0, %v1807
      %1809 = vmatmul.f32.gmra.mxu0 %v1696
      %v1810 = vpop.f32.mrf.mxu0
      %v1811 = vadd.f32 0.0, %v1810
      %1812 = vmatmul.f32.gmra.mxu0 %v1697
      %v1813 = vpop.f32.mrf.mxu0
      %v1814 = vadd.f32 0.0, %v1813
      %1815 = vmatmul.f32.gmra.mxu0 %v1698
      %v1816 = vpop.f32.mrf.mxu0
      %v1817 = vadd.f32 0.0, %v1816
      %1818 = vmatmul.f32.gmra.mxu0 %v1699
      %v1819 = vpop.f32.mrf.mxu0
      %v1820 = vadd.f32 0.0, %v1819
      %1821 = vmatmul.f32.gmra.mxu0 %v1700
      %v1822 = vpop.f32.mrf.mxu0
      %v1823 = vadd.f32 0.0, %v1822
      %1824 = vmatmul.f32.gmra.mxu0 %v1701
      %v1825 = vpop.f32.mrf.mxu0
      %v1826 = vadd.f32 0.0, %v1825
      %1827 = vmatmul.f32.gmra.mxu0 %v1702
      %v1828 = vpop.f32.mrf.mxu0
      %v1829 = vadd.f32 0.0, %v1828
      %1830 = vmatmul.f32.gmra.mxu0 %v1703
      %v1831 = vpop.f32.mrf.mxu0
      %v1832 = vadd.f32 0.0, %v1831
      %1833 = vdwg.mxu0
      %v1834 = vadd.f32 %v1639, %v1739
      %v1835 = vadd.f32 %v1640, %v1742
      %v1836 = vadd.f32 %v1641, %v1745
      %v1837 = vadd.f32 %v1642, %v1748
      %v1838 = vadd.f32 %v1643, %v1751
      %v1839 = vadd.f32 %v1644, %v1754
      %v1840 = vadd.f32 %v1645, %v1757
      %v1841 = vadd.f32 %v1646, %v1760
      %v1842 = vadd.f32 %v1647, %v1763
      %v1843 = vadd.f32 %v1648, %v1766
      %v1844 = vadd.f32 %v1649, %v1769
      %v1845 = vadd.f32 %v1650, %v1772
      %v1846 = vadd.f32 %v1651, %v1775
      %v1847 = vadd.f32 %v1652, %v1778
      %v1848 = vadd.f32 %v1653, %v1781
      %v1849 = vadd.f32 %v1654, %v1784
      %v1850 = vadd.f32 %v1655, %v1787
      %v1851 = vadd.f32 %v1656, %v1790
      %v1852 = vadd.f32 %v1657, %v1793
      %v1853 = vadd.f32 %v1658, %v1796
      %v1854 = vadd.f32 %v1659, %v1799
      %v1855 = vadd.f32 %v1660, %v1802
      %v1856 = vadd.f32 %v1661, %v1805
      %v1857 = vadd.f32 %v1662, %v1808
      %v1858 = vadd.f32 %v1663, %v1811
      %v1859 = vadd.f32 %v1664, %v1814
      %v1860 = vadd.f32 %v1665, %v1817
      %v1861 = vadd.f32 %v1666, %v1820
      %v1862 = vadd.f32 %v1667, %v1823
      %v1863 = vadd.f32 %v1668, %v1826
      %v1864 = vadd.f32 %v1669, %v1829
      %v1865 = vadd.f32 %v1670, %v1832
      %v1866 = vld [vmem:[%s1671 + $0x1] sm:$0xff]
      %v1867 = vld [vmem:[%s1671 + $0x9] sm:$0xff]
      %v1868 = vld [vmem:[%s1671 + $0x19] sm:$0xff]
      %v1869 = vld [vmem:[%s1671 + $0x21] sm:$0xff]
      %v1870 = vld [vmem:[%s1671 + $0x31] sm:$0xff]
      %v1871 = vld [vmem:[%s1671 + $0x39] sm:$0xff]
      %v1872 = vld [vmem:[%s1671 + $0x49] sm:$0xff]
      %v1873 = vld [vmem:[%s1671 + $0x51] sm:$0xff]
      %v1874 = vld [vmem:[%s1671 + $0x61] sm:$0xff]
      %v1875 = vld [vmem:[%s1671 + $0x69] sm:$0xff]
      %v1876 = vld [vmem:[%s1671 + $0x79] sm:$0xff]
      %v1877 = vld [vmem:[%s1671 + $0x81] sm:$0xff]
      %v1878 = vld [vmem:[%s1671 + $0x91] sm:$0xff]
      %v1879 = vld [vmem:[%s1671 + $0x99] sm:$0xff]
      %v1880 = vld [vmem:[%s1671 + $0xa9] sm:$0xff]
      %v1881 = vld [vmem:[%s1671 + $0xb1] sm:$0xff]
      %v1882 = vld [vmem:[%s1671 + $0xc1] sm:$0xff]
      %v1883 = vld [vmem:[%s1671 + $0xc9] sm:$0xff]
      %v1884 = vld [vmem:[%s1671 + $0xd9] sm:$0xff]
      %v1885 = vld [vmem:[%s1671 + $0xe1] sm:$0xff]
      %v1886 = vld [vmem:[%s1671 + $0xf1] sm:$0xff]
      %v1887 = vld [vmem:[%s1671 + $0xf9] sm:$0xff]
      %v1888 = vld [vmem:[%s1671 + $0x109] sm:$0xff]
      %v1889 = vld [vmem:[%s1671 + $0x111] sm:$0xff]
      %v1890 = vld [vmem:[%s1671 + $0x121] sm:$0xff]
      %v1891 = vld [vmem:[%s1671 + $0x129] sm:$0xff]
      %v1892 = vld [vmem:[%s1671 + $0x139] sm:$0xff]
      %v1893 = vld [vmem:[%s1671 + $0x141] sm:$0xff]
      %v1894 = vld [vmem:[%s1671 + $0x151] sm:$0xff]
      %v1895 = vld [vmem:[%s1671 + $0x159] sm:$0xff]
      %v1896 = vld [vmem:[%s1671 + $0x169] sm:$0xff]
      %v1897 = vld [vmem:[%s1671 + $0x171] sm:$0xff]
      %s1898 = scalar_lea.vmem %s3, 896
      %v1899 = vld [vmem:[%s1898] sm:$0xff]
      %v1900 = vld [vmem:[%s1898 + $0x8] sm:$0xff]
      %v1901 = vld [vmem:[%s1898 + $0x10] sm:$0xff]
      %v1902 = vld [vmem:[%s1898 + $0x18] sm:$0xff]
      %v1903 = vld [vmem:[%s1898 + $0x20] sm:$0xff]
      %v1904 = vld [vmem:[%s1898 + $0x28] sm:$0xff]
      %v1905 = vld [vmem:[%s1898 + $0x30] sm:$0xff]
      %v1906 = vld [vmem:[%s1898 + $0x38] sm:$0xff]
      %v1907 = vld [vmem:[%s1898 + $0x40] sm:$0xff]
      %v1908 = vld [vmem:[%s1898 + $0x48] sm:$0xff]
      %v1909 = vld [vmem:[%s1898 + $0x50] sm:$0xff]
      %v1910 = vld [vmem:[%s1898 + $0x58] sm:$0xff]
      %v1911 = vld [vmem:[%s1898 + $0x60] sm:$0xff]
      %v1912 = vld [vmem:[%s1898 + $0x68] sm:$0xff]
      %v1913 = vld [vmem:[%s1898 + $0x70] sm:$0xff]
      %v1914 = vld [vmem:[%s1898 + $0x78] sm:$0xff]
      %1915 = vmatpush.msra.mxu0 %v1914
      %1916 = vmatpush.msra.mxu0 %v1913
      %1917 = vmatpush.msra.mxu0 %v1912
      %1918 = vmatpush.msra.mxu0 %v1911
      %1919 = vmatpush.msra.mxu0 %v1910
      %1920 = vmatpush.msra.mxu0 %v1909
      %1921 = vmatpush.msra.mxu0 %v1908
      %1922 = vmatpush.msra.mxu0 %v1907
      %1923 = vmatpush.msra.mxu0 %v1906
      %1924 = vmatpush.msra.mxu0 %v1905
      %1925 = vmatpush.msra.mxu0 %v1904
      %1926 = vmatpush.msra.mxu0 %v1903
      %1927 = vmatpush.msra.mxu0 %v1902
      %1928 = vmatpush.msra.mxu0 %v1901
      %1929 = vmatpush.msra.mxu0 %v1900
      %1930 = vmatpush.msra.mxu0 %v1899
      %1931 = vmatmul.f32.gmra.mxu0 %v1866
      %v1932 = vpop.f32.mrf.mxu0
      %v1933 = vadd.f32 0.0, %v1932
      %1934 = vmatmul.f32.gmra.mxu0 %v1867
      %v1935 = vpop.f32.mrf.mxu0
      %v1936 = vadd.f32 0.0, %v1935
      %1937 = vmatmul.f32.gmra.mxu0 %v1868
      %v1938 = vpop.f32.mrf.mxu0
      %v1939 = vadd.f32 0.0, %v1938
      %1940 = vmatmul.f32.gmra.mxu0 %v1869
      %v1941 = vpop.f32.mrf.mxu0
      %v1942 = vadd.f32 0.0, %v1941
      %1943 = vmatmul.f32.gmra.mxu0 %v1870
      %v1944 = vpop.f32.mrf.mxu0
      %v1945 = vadd.f32 0.0, %v1944
      %1946 = vmatmul.f32.gmra.mxu0 %v1871
      %v1947 = vpop.f32.mrf.mxu0
      %v1948 = vadd.f32 0.0, %v1947
      %1949 = vmatmul.f32.gmra.mxu0 %v1872
      %v1950 = vpop.f32.mrf.mxu0
      %v1951 = vadd.f32 0.0, %v1950
      %1952 = vmatmul.f32.gmra.mxu0 %v1873
      %v1953 = vpop.f32.mrf.mxu0
      %v1954 = vadd.f32 0.0, %v1953
      %1955 = vmatmul.f32.gmra.mxu0 %v1874
      %v1956 = vpop.f32.mrf.mxu0
      %v1957 = vadd.f32 0.0, %v1956
      %1958 = vmatmul.f32.gmra.mxu0 %v1875
      %v1959 = vpop.f32.mrf.mxu0
      %v1960 = vadd.f32 0.0, %v1959
      %1961 = vmatmul.f32.gmra.mxu0 %v1876
      %v1962 = vpop.f32.mrf.mxu0
      %v1963 = vadd.f32 0.0, %v1962
      %1964 = vmatmul.f32.gmra.mxu0 %v1877
      %v1965 = vpop.f32.mrf.mxu0
      %v1966 = vadd.f32 0.0, %v1965
      %1967 = vmatmul.f32.gmra.mxu0 %v1878
      %v1968 = vpop.f32.mrf.mxu0
      %v1969 = vadd.f32 0.0, %v1968
      %1970 = vmatmul.f32.gmra.mxu0 %v1879
      %v1971 = vpop.f32.mrf.mxu0
      %v1972 = vadd.f32 0.0, %v1971
      %1973 = vmatmul.f32.gmra.mxu0 %v1880
      %v1974 = vpop.f32.mrf.mxu0
      %v1975 = vadd.f32 0.0, %v1974
      %1976 = vmatmul.f32.gmra.mxu0 %v1881
      %v1977 = vpop.f32.mrf.mxu0
      %v1978 = vadd.f32 0.0, %v1977
      %1979 = vmatmul.f32.gmra.mxu0 %v1882
      %v1980 = vpop.f32.mrf.mxu0
      %v1981 = vadd.f32 0.0, %v1980
      %1982 = vmatmul.f32.gmra.mxu0 %v1883
      %v1983 = vpop.f32.mrf.mxu0
      %v1984 = vadd.f32 0.0, %v1983
      %1985 = vmatmul.f32.gmra.mxu0 %v1884
      %v1986 = vpop.f32.mrf.mxu0
      %v1987 = vadd.f32 0.0, %v1986
      %1988 = vmatmul.f32.gmra.mxu0 %v1885
      %v1989 = vpop.f32.mrf.mxu0
      %v1990 = vadd.f32 0.0, %v1989
      %1991 = vmatmul.f32.gmra.mxu0 %v1886
      %v1992 = vpop.f32.mrf.mxu0
      %v1993 = vadd.f32 0.0, %v1992
      %1994 = vmatmul.f32.gmra.mxu0 %v1887
      %v1995 = vpop.f32.mrf.mxu0
      %v1996 = vadd.f32 0.0, %v1995
      %1997 = vmatmul.f32.gmra.mxu0 %v1888
      %v1998 = vpop.f32.mrf.mxu0
      %v1999 = vadd.f32 0.0, %v1998
      %2000 = vmatmul.f32.gmra.mxu0 %v1889
      %v2001 = vpop.f32.mrf.mxu0
      %v2002 = vadd.f32 0.0, %v2001
      %2003 = vmatmul.f32.gmra.mxu0 %v1890
      %v2004 = vpop.f32.mrf.mxu0
      %v2005 = vadd.f32 0.0, %v2004
      %2006 = vmatmul.f32.gmra.mxu0 %v1891
      %v2007 = vpop.f32.mrf.mxu0
      %v2008 = vadd.f32 0.0, %v2007
      %2009 = vmatmul.f32.gmra.mxu0 %v1892
      %v2010 = vpop.f32.mrf.mxu0
      %v2011 = vadd.f32 0.0, %v2010
      %2012 = vmatmul.f32.gmra.mxu0 %v1893
      %v2013 = vpop.f32.mrf.mxu0
      %v2014 = vadd.f32 0.0, %v2013
      %2015 = vmatmul.f32.gmra.mxu0 %v1894
      %v2016 = vpop.f32.mrf.mxu0
      %v2017 = vadd.f32 0.0, %v2016
      %2018 = vmatmul.f32.gmra.mxu0 %v1895
      %v2019 = vpop.f32.mrf.mxu0
      %v2020 = vadd.f32 0.0, %v2019
      %2021 = vmatmul.f32.gmra.mxu0 %v1896
      %v2022 = vpop.f32.mrf.mxu0
      %v2023 = vadd.f32 0.0, %v2022
      %2024 = vmatmul.f32.gmra.mxu0 %v1897
      %v2025 = vpop.f32.mrf.mxu0
      %v2026 = vadd.f32 0.0, %v2025
      %2027 = vdwg.mxu0
      %v2028 = vadd.f32 %v1834, %v1933
      %v2029 = vadd.f32 %v1835, %v1936
      %v2030 = vadd.f32 %v1836, %v1939
      %v2031 = vadd.f32 %v1837, %v1942
      %v2032 = vadd.f32 %v1838, %v1945
      %v2033 = vadd.f32 %v1839, %v1948
      %v2034 = vadd.f32 %v1840, %v1951
      %v2035 = vadd.f32 %v1841, %v1954
      %v2036 = vadd.f32 %v1842, %v1957
      %v2037 = vadd.f32 %v1843, %v1960
      %v2038 = vadd.f32 %v1844, %v1963
      %v2039 = vadd.f32 %v1845, %v1966
      %v2040 = vadd.f32 %v1846, %v1969
      %v2041 = vadd.f32 %v1847, %v1972
      %v2042 = vadd.f32 %v1848, %v1975
      %v2043 = vadd.f32 %v1849, %v1978
      %v2044 = vadd.f32 %v1850, %v1981
      %v2045 = vadd.f32 %v1851, %v1984
      %v2046 = vadd.f32 %v1852, %v1987
      %v2047 = vadd.f32 %v1853, %v1990
      %v2048 = vadd.f32 %v1854, %v1993
      %v2049 = vadd.f32 %v1855, %v1996
      %v2050 = vadd.f32 %v1856, %v1999
      %v2051 = vadd.f32 %v1857, %v2002
      %v2052 = vadd.f32 %v1858, %v2005
      %v2053 = vadd.f32 %v1859, %v2008
      %v2054 = vadd.f32 %v1860, %v2011
      %v2055 = vadd.f32 %v1861, %v2014
      %v2056 = vadd.f32 %v1862, %v2017
      %v2057 = vadd.f32 %v1863, %v2020
      %v2058 = vadd.f32 %v1864, %v2023
      %v2059 = vadd.f32 %v1865, %v2026
      %v2060 = vld [vmem:[%s1671 + $0x2] sm:$0xff]
      %v2061 = vld [vmem:[%s1671 + $0xa] sm:$0xff]
      %v2062 = vld [vmem:[%s1671 + $0x1a] sm:$0xff]
      %v2063 = vld [vmem:[%s1671 + $0x22] sm:$0xff]
      %v2064 = vld [vmem:[%s1671 + $0x32] sm:$0xff]
      %v2065 = vld [vmem:[%s1671 + $0x3a] sm:$0xff]
      %v2066 = vld [vmem:[%s1671 + $0x4a] sm:$0xff]
      %v2067 = vld [vmem:[%s1671 + $0x52] sm:$0xff]
      %v2068 = vld [vmem:[%s1671 + $0x62] sm:$0xff]
      %v2069 = vld [vmem:[%s1671 + $0x6a] sm:$0xff]
      %v2070 = vld [vmem:[%s1671 + $0x7a] sm:$0xff]
      %v2071 = vld [vmem:[%s1671 + $0x82] sm:$0xff]
      %v2072 = vld [vmem:[%s1671 + $0x92] sm:$0xff]
      %v2073 = vld [vmem:[%s1671 + $0x9a] sm:$0xff]
      %v2074 = vld [vmem:[%s1671 + $0xaa] sm:$0xff]
      %v2075 = vld [vmem:[%s1671 + $0xb2] sm:$0xff]
      %v2076 = vld [vmem:[%s1671 + $0xc2] sm:$0xff]
      %v2077 = vld [vmem:[%s1671 + $0xca] sm:$0xff]
      %v2078 = vld [vmem:[%s1671 + $0xda] sm:$0xff]
      %v2079 = vld [vmem:[%s1671 + $0xe2] sm:$0xff]
      %v2080 = vld [vmem:[%s1671 + $0xf2] sm:$0xff]
      %v2081 = vld [vmem:[%s1671 + $0xfa] sm:$0xff]
      %v2082 = vld [vmem:[%s1671 + $0x10a] sm:$0xff]
      %v2083 = vld [vmem:[%s1671 + $0x112] sm:$0xff]
      %v2084 = vld [vmem:[%s1671 + $0x122] sm:$0xff]
      %v2085 = vld [vmem:[%s1671 + $0x12a] sm:$0xff]
      %v2086 = vld [vmem:[%s1671 + $0x13a] sm:$0xff]
      %v2087 = vld [vmem:[%s1671 + $0x142] sm:$0xff]
      %v2088 = vld [vmem:[%s1671 + $0x152] sm:$0xff]
      %v2089 = vld [vmem:[%s1671 + $0x15a] sm:$0xff]
      %v2090 = vld [vmem:[%s1671 + $0x16a] sm:$0xff]
      %v2091 = vld [vmem:[%s1671 + $0x172] sm:$0xff]
      %s2092 = scalar_lea.vmem %s3, 1024
      %v2093 = vld [vmem:[%s2092] sm:$0xff]
      %v2094 = vld [vmem:[%s2092 + $0x8] sm:$0xff]
      %v2095 = vld [vmem:[%s2092 + $0x10] sm:$0xff]
      %v2096 = vld [vmem:[%s2092 + $0x18] sm:$0xff]
      %v2097 = vld [vmem:[%s2092 + $0x20] sm:$0xff]
      %v2098 = vld [vmem:[%s2092 + $0x28] sm:$0xff]
      %v2099 = vld [vmem:[%s2092 + $0x30] sm:$0xff]
      %v2100 = vld [vmem:[%s2092 + $0x38] sm:$0xff]
      %v2101 = vld [vmem:[%s2092 + $0x40] sm:$0xff]
      %v2102 = vld [vmem:[%s2092 + $0x48] sm:$0xff]
      %v2103 = vld [vmem:[%s2092 + $0x50] sm:$0xff]
      %v2104 = vld [vmem:[%s2092 + $0x58] sm:$0xff]
      %v2105 = vld [vmem:[%s2092 + $0x60] sm:$0xff]
      %v2106 = vld [vmem:[%s2092 + $0x68] sm:$0xff]
      %v2107 = vld [vmem:[%s2092 + $0x70] sm:$0xff]
      %v2108 = vld [vmem:[%s2092 + $0x78] sm:$0xff]
      %2109 = vmatpush.msra.mxu0 %v2108
      %2110 = vmatpush.msra.mxu0 %v2107
      %2111 = vmatpush.msra.mxu0 %v2106
      %2112 = vmatpush.msra.mxu0 %v2105
      %2113 = vmatpush.msra.mxu0 %v2104
      %2114 = vmatpush.msra.mxu0 %v2103
      %2115 = vmatpush.msra.mxu0 %v2102
      %2116 = vmatpush.msra.mxu0 %v2101
      %2117 = vmatpush.msra.mxu0 %v2100
      %2118 = vmatpush.msra.mxu0 %v2099
      %2119 = vmatpush.msra.mxu0 %v2098
      %2120 = vmatpush.msra.mxu0 %v2097
      %2121 = vmatpush.msra.mxu0 %v2096
      %2122 = vmatpush.msra.mxu0 %v2095
      %2123 = vmatpush.msra.mxu0 %v2094
      %2124 = vmatpush.msra.mxu0 %v2093
      %2125 = vmatmul.f32.gmra.mxu0 %v2060
      %v2126 = vpop.f32.mrf.mxu0
      %v2127 = vadd.f32 0.0, %v2126
      %2128 = vmatmul.f32.gmra.mxu0 %v2061
      %v2129 = vpop.f32.mrf.mxu0
      %v2130 = vadd.f32 0.0, %v2129
      %2131 = vmatmul.f32.gmra.mxu0 %v2062
      %v2132 = vpop.f32.mrf.mxu0
      %v2133 = vadd.f32 0.0, %v2132
      %2134 = vmatmul.f32.gmra.mxu0 %v2063
      %v2135 = vpop.f32.mrf.mxu0
      %v2136 = vadd.f32 0.0, %v2135
      %2137 = vmatmul.f32.gmra.mxu0 %v2064
      %v2138 = vpop.f32.mrf.mxu0
      %v2139 = vadd.f32 0.0, %v2138
      %2140 = vmatmul.f32.gmra.mxu0 %v2065
      %v2141 = vpop.f32.mrf.mxu0
      %v2142 = vadd.f32 0.0, %v2141
      %2143 = vmatmul.f32.gmra.mxu0 %v2066
      %v2144 = vpop.f32.mrf.mxu0
      %v2145 = vadd.f32 0.0, %v2144
      %2146 = vmatmul.f32.gmra.mxu0 %v2067
      %v2147 = vpop.f32.mrf.mxu0
      %v2148 = vadd.f32 0.0, %v2147
      %2149 = vmatmul.f32.gmra.mxu0 %v2068
      %v2150 = vpop.f32.mrf.mxu0
      %v2151 = vadd.f32 0.0, %v2150
      %2152 = vmatmul.f32.gmra.mxu0 %v2069
      %v2153 = vpop.f32.mrf.mxu0
      %v2154 = vadd.f32 0.0, %v2153
      %2155 = vmatmul.f32.gmra.mxu0 %v2070
      %v2156 = vpop.f32.mrf.mxu0
      %v2157 = vadd.f32 0.0, %v2156
      %2158 = vmatmul.f32.gmra.mxu0 %v2071
      %v2159 = vpop.f32.mrf.mxu0
      %v2160 = vadd.f32 0.0, %v2159
      %2161 = vmatmul.f32.gmra.mxu0 %v2072
      %v2162 = vpop.f32.mrf.mxu0
      %v2163 = vadd.f32 0.0, %v2162
      %2164 = vmatmul.f32.gmra.mxu0 %v2073
      %v2165 = vpop.f32.mrf.mxu0
      %v2166 = vadd.f32 0.0, %v2165
      %2167 = vmatmul.f32.gmra.mxu0 %v2074
      %v2168 = vpop.f32.mrf.mxu0
      %v2169 = vadd.f32 0.0, %v2168
      %2170 = vmatmul.f32.gmra.mxu0 %v2075
      %v2171 = vpop.f32.mrf.mxu0
      %v2172 = vadd.f32 0.0, %v2171
      %2173 = vmatmul.f32.gmra.mxu0 %v2076
      %v2174 = vpop.f32.mrf.mxu0
      %v2175 = vadd.f32 0.0, %v2174
      %2176 = vmatmul.f32.gmra.mxu0 %v2077
      %v2177 = vpop.f32.mrf.mxu0
      %v2178 = vadd.f32 0.0, %v2177
      %2179 = vmatmul.f32.gmra.mxu0 %v2078
      %v2180 = vpop.f32.mrf.mxu0
      %v2181 = vadd.f32 0.0, %v2180
      %2182 = vmatmul.f32.gmra.mxu0 %v2079
      %v2183 = vpop.f32.mrf.mxu0
      %v2184 = vadd.f32 0.0, %v2183
      %2185 = vmatmul.f32.gmra.mxu0 %v2080
      %v2186 = vpop.f32.mrf.mxu0
      %v2187 = vadd.f32 0.0, %v2186
      %2188 = vmatmul.f32.gmra.mxu0 %v2081
      %v2189 = vpop.f32.mrf.mxu0
      %v2190 = vadd.f32 0.0, %v2189
      %2191 = vmatmul.f32.gmra.mxu0 %v2082
      %v2192 = vpop.f32.mrf.mxu0
      %v2193 = vadd.f32 0.0, %v2192
      %2194 = vmatmul.f32.gmra.mxu0 %v2083
      %v2195 = vpop.f32.mrf.mxu0
      %v2196 = vadd.f32 0.0, %v2195
      %2197 = vmatmul.f32.gmra.mxu0 %v2084
      %v2198 = vpop.f32.mrf.mxu0
      %v2199 = vadd.f32 0.0, %v2198
      %2200 = vmatmul.f32.gmra.mxu0 %v2085
      %v2201 = vpop.f32.mrf.mxu0
      %v2202 = vadd.f32 0.0, %v2201
      %2203 = vmatmul.f32.gmra.mxu0 %v2086
      %v2204 = vpop.f32.mrf.mxu0
      %v2205 = vadd.f32 0.0, %v2204
      %2206 = vmatmul.f32.gmra.mxu0 %v2087
      %v2207 = vpop.f32.mrf.mxu0
      %v2208 = vadd.f32 0.0, %v2207
      %2209 = vmatmul.f32.gmra.mxu0 %v2088
      %v2210 = vpop.f32.mrf.mxu0
      %v2211 = vadd.f32 0.0, %v2210
      %2212 = vmatmul.f32.gmra.mxu0 %v2089
      %v2213 = vpop.f32.mrf.mxu0
      %v2214 = vadd.f32 0.0, %v2213
      %2215 = vmatmul.f32.gmra.mxu0 %v2090
      %v2216 = vpop.f32.mrf.mxu0
      %v2217 = vadd.f32 0.0, %v2216
      %2218 = vmatmul.f32.gmra.mxu0 %v2091
      %v2219 = vpop.f32.mrf.mxu0
      %v2220 = vadd.f32 0.0, %v2219
      %2221 = vdwg.mxu0
      %v2222 = vadd.f32 %v2028, %v2127
      %v2223 = vadd.f32 %v2029, %v2130
      %v2224 = vadd.f32 %v2030, %v2133
      %v2225 = vadd.f32 %v2031, %v2136
      %v2226 = vadd.f32 %v2032, %v2139
      %v2227 = vadd.f32 %v2033, %v2142
      %v2228 = vadd.f32 %v2034, %v2145
      %v2229 = vadd.f32 %v2035, %v2148
      %v2230 = vadd.f32 %v2036, %v2151
      %v2231 = vadd.f32 %v2037, %v2154
      %v2232 = vadd.f32 %v2038, %v2157
      %v2233 = vadd.f32 %v2039, %v2160
      %v2234 = vadd.f32 %v2040, %v2163
      %v2235 = vadd.f32 %v2041, %v2166
      %v2236 = vadd.f32 %v2042, %v2169
      %v2237 = vadd.f32 %v2043, %v2172
      %v2238 = vadd.f32 %v2044, %v2175
      %v2239 = vadd.f32 %v2045, %v2178
      %v2240 = vadd.f32 %v2046, %v2181
      %v2241 = vadd.f32 %v2047, %v2184
      %v2242 = vadd.f32 %v2048, %v2187
      %v2243 = vadd.f32 %v2049, %v2190
      %v2244 = vadd.f32 %v2050, %v2193
      %v2245 = vadd.f32 %v2051, %v2196
      %v2246 = vadd.f32 %v2052, %v2199
      %v2247 = vadd.f32 %v2053, %v2202
      %v2248 = vadd.f32 %v2054, %v2205
      %v2249 = vadd.f32 %v2055, %v2208
      %v2250 = vadd.f32 %v2056, %v2211
      %v2251 = vadd.f32 %v2057, %v2214
      %v2252 = vadd.f32 %v2058, %v2217
      %v2253 = vadd.f32 %v2059, %v2220
      %2254 = vst [vmem:[%s231] sm:$0xff] %v2222
      %2255 = vst [vmem:[%s231 + $0x8] sm:$0xff] %v2223
      %2256 = vst [vmem:[%s231 + $0x10] sm:$0xff] %v2224
      %2257 = vst [vmem:[%s231 + $0x18] sm:$0xff] %v2225
      %2258 = vst [vmem:[%s231 + $0x20] sm:$0xff] %v2226
      %2259 = vst [vmem:[%s231 + $0x28] sm:$0xff] %v2227
      %2260 = vst [vmem:[%s231 + $0x30] sm:$0xff] %v2228
      %2261 = vst [vmem:[%s231 + $0x38] sm:$0xff] %v2229
      %2262 = vst [vmem:[%s231 + $0x40] sm:$0xff] %v2230
      %2263 = vst [vmem:[%s231 + $0x48] sm:$0xff] %v2231
      %2264 = vst [vmem:[%s231 + $0x50] sm:$0xff] %v2232
      %2265 = vst [vmem:[%s231 + $0x58] sm:$0xff] %v2233
      %2266 = vst [vmem:[%s231 + $0x60] sm:$0xff] %v2234
      %2267 = vst [vmem:[%s231 + $0x68] sm:$0xff] %v2235
      %2268 = vst [vmem:[%s231 + $0x70] sm:$0xff] %v2236
      %2269 = vst [vmem:[%s231 + $0x78] sm:$0xff] %v2237
      %2270 = vst [vmem:[%s231 + $0x80] sm:$0xff] %v2238
      %2271 = vst [vmem:[%s231 + $0x88] sm:$0xff] %v2239
      %2272 = vst [vmem:[%s231 + $0x90] sm:$0xff] %v2240
      %2273 = vst [vmem:[%s231 + $0x98] sm:$0xff] %v2241
      %2274 = vst [vmem:[%s231 + $0xa0] sm:$0xff] %v2242
      %2275 = vst [vmem:[%s231 + $0xa8] sm:$0xff] %v2243
      %2276 = vst [vmem:[%s231 + $0xb0] sm:$0xff] %v2244
      %2277 = vst [vmem:[%s231 + $0xb8] sm:$0xff] %v2245
      %2278 = vst [vmem:[%s231 + $0xc0] sm:$0xff] %v2246
      %2279 = vst [vmem:[%s231 + $0xc8] sm:$0xff] %v2247
      %2280 = vst [vmem:[%s231 + $0xd0] sm:$0xff] %v2248
      %2281 = vst [vmem:[%s231 + $0xd8] sm:$0xff] %v2249
      %2282 = vst [vmem:[%s231 + $0xe0] sm:$0xff] %v2250
      %2283 = vst [vmem:[%s231 + $0xe8] sm:$0xff] %v2251
      %2284 = vst [vmem:[%s231 + $0xf0] sm:$0xff] %v2252
      %2285 = vst [vmem:[%s231 + $0xf8] sm:$0xff] %v2253
      %v2286 = vadd.f32 %v2222, %v2223
      %v2287 = vadd.f32 %v2286, %v2224
      %v2288 = vadd.f32 %v2287, %v2225
      %v2289 = vadd.f32 %v2288, %v2226
      %v2290 = vadd.f32 %v2289, %v2227
      %v2291 = vadd.f32 %v2290, %v2228
      %v2292 = vadd.f32 %v2291, %v2229
      %v2293 = vadd.f32 %v2292, %v2230
      %v2294 = vadd.f32 %v2293, %v2231
      %v2295 = vadd.f32 %v2294, %v2232
      %v2296 = vadd.f32 %v2295, %v2233
      %v2297 = vadd.f32 %v2296, %v2234
      %v2298 = vadd.f32 %v2297, %v2235
      %v2299 = vadd.f32 %v2298, %v2236
      %v2300 = vadd.f32 %v2299, %v2237
      %v2301 = vadd.f32 %v2300, %v2238
      %v2302 = vadd.f32 %v2301, %v2239
      %v2303 = vadd.f32 %v2302, %v2240
      %v2304 = vadd.f32 %v2303, %v2241
      %v2305 = vadd.f32 %v2304, %v2242
      %v2306 = vadd.f32 %v2305, %v2243
      %v2307 = vadd.f32 %v2306, %v2244
      %v2308 = vadd.f32 %v2307, %v2245
      %v2309 = vadd.f32 %v2308, %v2246
      %v2310 = vadd.f32 %v2309, %v2247
      %v2311 = vadd.f32 %v2310, %v2248
      %v2312 = vadd.f32 %v2311, %v2249
      %v2313 = vadd.f32 %v2312, %v2250
      %v2314 = vadd.f32 %v2313, %v2251
      %v2315 = vadd.f32 %v2314, %v2252
      %v2316 = vadd.f32 %v2315, %v2253
      %v2317 = vrot.slane %v2316, 4
      %v2318 = vadd.f32 %v2316, %v2317
      %v2319 = vrot.slane %v2318, 2
      %v2320 = vadd.f32 %v2318, %v2319
      %v2321 = vrot.slane %v2320, 1
      %v2322 = vadd.f32 %v2320, %v2321
      %2323 = vst [vmem:[%s235] sm:$0x1] %v2322
      %v2324 = vmul.f32 %v2222, %v2222
      %v2325 = vmul.f32 %v2223, %v2223
      %v2326 = vmul.f32 %v2224, %v2224
      %v2327 = vmul.f32 %v2225, %v2225
      %v2328 = vmul.f32 %v2226, %v2226
      %v2329 = vmul.f32 %v2227, %v2227
      %v2330 = vmul.f32 %v2228, %v2228
      %v2331 = vmul.f32 %v2229, %v2229
      %v2332 = vmul.f32 %v2230, %v2230
      %v2333 = vmul.f32 %v2231, %v2231
      %v2334 = vmul.f32 %v2232, %v2232
      %v2335 = vmul.f32 %v2233, %v2233
      %v2336 = vmul.f32 %v2234, %v2234
      %v2337 = vmul.f32 %v2235, %v2235
      %v2338 = vmul.f32 %v2236, %v2236
      %v2339 = vmul.f32 %v2237, %v2237
      %v2340 = vmul.f32 %v2238, %v2238
      %v2341 = vmul.f32 %v2239, %v2239
      %v2342 = vmul.f32 %v2240, %v2240
      %v2343 = vmul.f32 %v2241, %v2241
      %v2344 = vmul.f32 %v2242, %v2242
      %v2345 = vmul.f32 %v2243, %v2243
      %v2346 = vmul.f32 %v2244, %v2244
      %v2347 = vmul.f32 %v2245, %v2245
      %v2348 = vmul.f32 %v2246, %v2246
      %v2349 = vmul.f32 %v2247, %v2247
      %v2350 = vmul.f32 %v2248, %v2248
      %v2351 = vmul.f32 %v2249, %v2249
      %v2352 = vmul.f32 %v2250, %v2250
      %v2353 = vmul.f32 %v2251, %v2251
      %v2354 = vmul.f32 %v2252, %v2252
      %v2355 = vmul.f32 %v2253, %v2253
      %v2356 = vadd.f32 %v2324, %v2325
      %v2357 = vadd.f32 %v2356, %v2326
      %v2358 = vadd.f32 %v2357, %v2327
      %v2359 = vadd.f32 %v2358, %v2328
      %v2360 = vadd.f32 %v2359, %v2329
      %v2361 = vadd.f32 %v2360, %v2330
      %v2362 = vadd.f32 %v2361, %v2331
      %v2363 = vadd.f32 %v2362, %v2332
      %v2364 = vadd.f32 %v2363, %v2333
      %v2365 = vadd.f32 %v2364, %v2334
      %v2366 = vadd.f32 %v2365, %v2335
      %v2367 = vadd.f32 %v2366, %v2336
      %v2368 = vadd.f32 %v2367, %v2337
      %v2369 = vadd.f32 %v2368, %v2338
      %v2370 = vadd.f32 %v2369, %v2339
      %v2371 = vadd.f32 %v2370, %v2340
      %v2372 = vadd.f32 %v2371, %v2341
      %v2373 = vadd.f32 %v2372, %v2342
      %v2374 = vadd.f32 %v2373, %v2343
      %v2375 = vadd.f32 %v2374, %v2344
      %v2376 = vadd.f32 %v2375, %v2345
      %v2377 = vadd.f32 %v2376, %v2346
      %v2378 = vadd.f32 %v2377, %v2347
      %v2379 = vadd.f32 %v2378, %v2348
      %v2380 = vadd.f32 %v2379, %v2349
      %v2381 = vadd.f32 %v2380, %v2350
      %v2382 = vadd.f32 %v2381, %v2351
      %v2383 = vadd.f32 %v2382, %v2352
      %v2384 = vadd.f32 %v2383, %v2353
      %v2385 = vadd.f32 %v2384, %v2354
      %v2386 = vadd.f32 %v2385, %v2355
      %v2387 = vrot.slane %v2386, 4
      %v2388 = vadd.f32 %v2386, %v2387
      %v2389 = vrot.slane %v2388, 2
      %v2390 = vadd.f32 %v2388, %v2389
      %v2391 = vrot.slane %v2390, 1
      %v2392 = vadd.f32 %v2390, %v2391
      %2393 = vst [vmem:[%s235 + $0x1] sm:$0x1] %v2392
      %p2394 = scmp.lt.s32.totalorder %s17, 1
      %s2395 = scalar_select %p2394, %s17, 1
      %s2396 = smul.addr %s2395, 32
      %s2397 = smul.addr %s2396, 8
      %s2398 = scalar_lea.vmem %s4, %s2397
      %p2399 = scmp.lt.s32.totalorder %s17, 1
      %s2400 = scalar_select %p2399, %s17, 1
      %s2401 = smul.addr %s2400, 2
      %s2402 = scalar_lea.vmem %s5, %s2401
      // Predicated region
      $region37: #{bottleneck_pallas.4} parent=35 // pred_check
        %p2403 = pneg %p124
      $region38: #{bottleneck_pallas.4} parent=35 // pred_check_branch
        %2405 = sbr.rel (%p2403) target = $region40
      $region39: #{bottleneck_pallas.4} parent=35 // pred_region
        _
      $region40: #{bottleneck_pallas.4} parent=35 // pred_fallthru
        _
      // Predicated region
      $region41: #{bottleneck_pallas.4} parent=35 // pred_check
        %p2406 = pneg %p150
      $region42: #{bottleneck_pallas.4} parent=35 // pred_check_branch
        %2408 = sbr.rel (%p2406) target = $region44
      $region43: #{bottleneck_pallas.4} parent=35 // pred_region
        _
      $region44: #{bottleneck_pallas.4} parent=35 // pred_fallthru
        _
    $region36: #{bottleneck_pallas.4} parent=5 // pred_fallthru
      _
    %p2409 = scmp.le.s32.totalorder 2, %s12
    // Predicated region
    $region45: #{bottleneck_pallas.4} parent=5 // pred_check
      %p2410 = pneg %p2409
    $region46: #{bottleneck_pallas.4} parent=5 // pred_check_branch
      %2412 = sbr.rel (%p2410) target = $region48
    $region47: #{bottleneck_pallas.4} parent=5 // pred_region
      %s2413 = ssub.s32 %s12, 2
      // Predicated region
      $region49: #{bottleneck_pallas.4} parent=47 // pred_check
        %p2414 = pneg %p130
      $region50: #{bottleneck_pallas.4} parent=47 // pred_check_branch
        %2416 = sbr.rel (%p2414) target = $region52
      $region51: #{bottleneck_pallas.4} parent=47 // pred_region
        %p2417 = scmp.lt.s32.totalorder %s18, 1
        %s2418 = scalar_select %p2417, %s18, 1
        %s2419 = smul.addr %s2418, 32
        %s2420 = smul.addr %s2419, 8
        %s2421 = scalar_lea.vmem %s4, %s2420
      $region52: #{bottleneck_pallas.4} parent=47 // pred_fallthru
        _
      // Predicated region
      $region53: #{bottleneck_pallas.4} parent=47 // pred_check
        %p2422 = pneg %p156
      $region54: #{bottleneck_pallas.4} parent=47 // pred_check_branch
        %2424 = sbr.rel (%p2422) target = $region56
      $region55: #{bottleneck_pallas.4} parent=47 // pred_region
        %p2425 = scmp.lt.s32.totalorder %s18, 1
        %s2426 = scalar_select %p2425, %s18, 1
        %s2427 = smul.addr %s2426, 2
        %s2428 = scalar_lea.vmem %s5, %s2427
      $region56: #{bottleneck_pallas.4} parent=47 // pred_fallthru
        _
    $region48: #{bottleneck_pallas.4} parent=5 // pred_fallthru
      _
  $region6: #{bottleneck_pallas.4} parent=0 // loop_footer
    %s16 = sadd.s32 1, %s12
  $region7: #{bottleneck_pallas.4} parent=0 // loop_footer_branch
    %11 = sbr.rel target = $region3
  $region8: #{bottleneck_pallas.4} parent=0 // loop_exit
    _

</llo_original>
